<compile_context>
chip_gen: v6e
topology: v6e:2x2x1
jax: 0.10.0
libtpu: 0.0.40
codegen_flags: <defaults>
</compile_context>

<pallas_src>
import math

import jax
import jax.numpy as jnp
import numpy as np
from jax import lax
from jax.experimental import pallas as pl
from jax.experimental.pallas import tpu as pltpu

_LANE = 128


def _round_up(v, m):
    return (v + m - 1) // m * m


def _vmem_limit_bytes():
    """Generation-aware scoped-VMEM limit."""
    try:
        cap = pltpu.get_tpu_info().vmem_capacity_bytes
    except Exception:
        cap = 64 * 1024 * 1024          # conservative fallback (v7x-sized)
    if cap >= 100 * 1024 * 1024:        # v5e / v6e: 128 MiB physical
        return 96 * 1024 * 1024
    return 48 * 1024 * 1024             # v7x: 64 MiB physical per TC


def _make_kernel(n_real, tm):
    """Kernel factory; n_real = true node count (rest is zero padding)."""
    n_real_f = float(n_real)

    def kernel(adj_ref, x_ref, noise_ref,
               wh_ref, bh_ref, wmv_ref, bmv_ref,
               w1_ref, w0_ref, b10_ref, w2_ref, b2_ref,
               out_ref, upd_ref):
        f32 = jnp.float32
        bf16 = jnp.bfloat16
        t = pl.program_id(1)

        def dot_bf16(a, b):
            # bf16 MXU operands, f32 accumulation (astype is a no-op for
            # operands already cast to bf16 in the wrapper).
            return jnp.dot(a.astype(bf16), b.astype(bf16),
                           preferred_element_type=f32)

        relu = lambda v: jnp.maximum(v, 0.0)

        # ------ encoder + Graphite decoder: once per graph (tile 0) ------
        @pl.when(t == 0)
        def _():
            adj = adj_ref[0]          # (Np, Np) bf16
            x = x_ref[0]              # (Np, Fp) bf16
            noise = noise_ref[0]      # (Np, Ep) f32
            n_pad, e_pad = noise.shape

            # GCN encoder; z_mean | z_logv fused into one wide matmul.
            support = relu(dot_bf16(adj, dot_bf16(x, wh_ref[...])) + bh_ref[...])
            mv = relu(dot_bf16(adj, dot_bf16(support, wmv_ref[...])) + bmv_ref[...])
            mean, logv = mv[:, :e_pad], mv[:, e_pad:]

            # reparameterization; mask keeps padded node rows exactly zero.
            row_ids = lax.broadcasted_iota(jnp.int32, (n_pad, 1), 0)
            mask = (row_ids < n_real).astype(f32)
            z = (noise * jnp.exp(logv) + mean) * mask

            # recon_1: row L2 normalize (F.normalize, eps=1e-12)
            norm = jnp.sqrt(jnp.sum(z * z, axis=1, keepdims=True))
            r1 = z / jnp.maximum(norm, 1e-12)

            # degree normalization; recon_2 is rank-1 (ones/sqrt(E)), its d
            # contribution is exactly +N and its propagation collapses to
            # dm * (dm^T @ y).
            s1 = jnp.sum(r1, axis=0, keepdims=True)
            d = lax.rsqrt(jnp.sum(r1 * s1, axis=1, keepdims=True) + n_real_f)
            r1 = r1 * d
            dm = d * mask

            r1_b = r1.astype(bf16)    # cast once ...
            r1t_b = r1_b.T            # ... then transpose in bf16 (half XLU bytes)

            def propagate(y, use_relu):
                t1 = dot_bf16(r1t_b, y)
                out = dot_bf16(r1_b, t1) + dm * jnp.sum(dm * y, axis=0,
                                                        keepdims=True)
                return relu(out) if use_relu else out

            # Fused decode1|decode0 propagation: Y = [z@w1 | x@w0] + [b1|b0]
            y = jnp.concatenate(
                [dot_bf16(z, w1_ref[...]), dot_bf16(x, w0_ref[...])], axis=1)
            y = y + b10_ref[...]
            g = propagate(y, True)
            d_pad = g.shape[1] // 2
            upd = g[:, :d_pad] + g[:, d_pad:]

            # decode2 + autoregressive mix (scalar = 0.5)
            y2 = dot_bf16(upd, w2_ref[...]) + b2_ref[...]
            upd = 0.5 * z + 0.5 * propagate(y2, False)
            upd_ref[...] = upd.astype(bf16)

        # ------ row-tiled reconstruction: rows[t] @ upd^T (trans_b on MXU) ------
        start = pl.multiple_of(t * tm, tm)
        rows = upd_ref[pl.ds(start, tm), :]
        res = lax.dot_general(rows, upd_ref[...],
                              dimension_numbers=(((1,), (1,)), ((), ())),
                              preferred_element_type=f32)
        out_ref[0] = res.astype(out_ref.dtype)

    return kernel


def graphite_vae_forward_batched(adj, x, noise, params, *,
                                 out_dtype=jnp.float32, return_padded=False):
    """adj: (B,N,N), x: (B,N,F), noise: (B,N,E); params as from init_params."""
    B, N, _ = adj.shape
    F_dim, E_dim = x.shape[-1], noise.shape[-1]
    wh, bh, wm, bm, wv, bv, w1, b1, w0, b0, w2, b2 = params
    H_dim, D_dim = wh.shape[1], w1.shape[1]

    Np = _round_up(N, _LANE)
    Fp = _round_up(F_dim, _LANE)
    Hp = _round_up(H_dim, _LANE)
    Ep = _round_up(E_dim, _LANE)
    Dp = _round_up(D_dim, _LANE)

    tm = max(tv for tv in (512, 256, 128) if Np % tv == 0)
    n_tiles = Np // tm

    f32, bf16 = jnp.float32, jnp.bfloat16

    def pad2(a, r, c, dt):
        a = a.astype(dt)
        return jnp.pad(a, ((0, r - a.shape[0]), (0, c - a.shape[1])))

    def pad3(a, r, c, dt):
        a = a.astype(dt)
        return jnp.pad(a, ((0, 0), (0, r - a.shape[1]), (0, c - a.shape[2])))

    # bf16 graph inputs: halves HBM traffic / VMEM blocks on the biggest arrays.
    adj_p = pad3(adj, Np, Np, bf16)
    x_p = pad3(x, Np, Fp, bf16)
    noise_p = pad3(noise, Np, Ep, f32)

    # bf16 MXU weights; f32 biases (added after f32 accumulation).
    wh_p, bh_p = pad2(wh, Fp, Hp, bf16), pad2(bh, 1, Hp, f32)
    wmv_p = jnp.concatenate([pad2(wm, Hp, Ep, bf16), pad2(wv, Hp, Ep, bf16)], axis=1)
    bmv_p = jnp.concatenate([pad2(bm, 1, Ep, f32), pad2(bv, 1, Ep, f32)], axis=1)
    w1_p, w0_p = pad2(w1, Ep, Dp, bf16), pad2(w0, Fp, Dp, bf16)
    b10_p = jnp.concatenate([pad2(b1, 1, Dp, f32), pad2(b0, 1, Dp, f32)], axis=1)
    w2_p, b2_p = pad2(w2, Dp, Ep, bf16), pad2(b2, 1, Ep, f32)
    weights = (wh_p, bh_p, wmv_p, bmv_p, w1_p, w0_p, b10_p, w2_p, b2_p)

    vmem_limit = _vmem_limit_bytes()

    # VMEM guard: double-buffered blocks + scratch + rough in-kernel temporaries.
    w_bytes = sum(int(np.prod(w.shape)) * w.dtype.itemsize for w in weights)
    out_itemsize = np.dtype(out_dtype).itemsize
    est = (2 * (Np * Np * 2 + Np * Fp * 2 + Np * Ep * 4)   # graph inputs (x2 buf)
           + 2 * tm * Np * out_itemsize                    # output tile (x2 buf)
           + 2 * w_bytes                                   # weights (x2 buf)
           + Np * Ep * 2                                   # upd scratch (bf16)
           + 4 * Np * (Hp + 6 * Ep + 4 * Dp)               # f32 temporaries
           + 2 * Np * (2 * Ep + 2 * Dp))                   # bf16 temporaries
    assert est < int(0.9 * vmem_limit), (
        f"estimated VMEM {est / 2**20:.1f} MiB exceeds "
        f"{0.9 * vmem_limit / 2**20:.1f} MiB budget; reduce tm or graph size")

    graph_spec = lambda cols: pl.BlockSpec((1, Np, cols), lambda b, t: (b, 0, 0))
    weight_specs = [pl.BlockSpec(tuple(w.shape), lambda b, t: (0, 0))
                    for w in weights]

    out_p = pl.pallas_call(
        _make_kernel(N, tm),
        out_shape=jax.ShapeDtypeStruct((B, Np, Np), out_dtype),
        grid=(B, n_tiles),
        in_specs=[graph_spec(Np), graph_spec(Fp), graph_spec(Ep)] + weight_specs,
        out_specs=pl.BlockSpec((1, tm, Np), lambda b, t: (b, t, 0)),
        scratch_shapes=[pltpu.VMEM((Np, Ep), jnp.bfloat16)],
        compiler_params=pltpu.CompilerParams(
            dimension_semantics=("parallel", "arbitrary"),
            vmem_limit_bytes=vmem_limit),
    )(adj_p, x_p, noise_p, *weights)

    if return_padded:
        return out_p          # skip the N x N slice (extra HBM pass) if tolerated
    return out_p[:, :N, :N]


def graphite_vae_forward(adj, x, noise, params, **kw):
    """Single-graph convenience wrapper."""
    return graphite_vae_forward_batched(adj[None], x[None], noise[None],
                                        params, **kw)[0]


def init_params(key, num_features, hidden_dim, embed_dim, decode_dim):
    """Deterministic init matching torch uniform(-1/sqrt(out), 1/sqrt(out))."""
    def layer(k, fan_in, fan_out):
        k1, k2 = jax.random.split(k)
        stdv = 1.0 / math.sqrt(fan_out)
        w = jax.random.uniform(k1, (fan_in, fan_out), jnp.float32, -stdv, stdv)
        b = jax.random.uniform(k2, (1, fan_out), jnp.float32, -stdv, stdv)
        return w, b

    keys = jax.random.split(key, 6)
    wh, bh = layer(keys[0], num_features, hidden_dim)   # hidden
    wm, bm = layer(keys[1], hidden_dim, embed_dim)      # z_mean
    wv, bv = layer(keys[2], hidden_dim, embed_dim)      # z_logv
    w1, b1 = layer(keys[3], embed_dim, decode_dim)      # decode1
    w0, b0 = layer(keys[4], num_features, decode_dim)   # decode0
    w2, b2 = layer(keys[5], decode_dim, embed_dim)      # decode2
    return (wh, bh, wm, bm, wv, bv, w1, b1, w0, b0, w2, b2)


def _reference(adj, x, noise, params):
    """Pure-JAX f32 reference mirroring the PyTorch forward (single graph)."""
    (wh, bh, wm, bm, wv, bv, w1, b1, w0, b0, w2, b2) = params
    relu = lambda t: jnp.maximum(t, 0.0)
    support = relu(adj @ (x @ wh) + bh)
    mean = relu(adj @ (support @ wm) + bm)
    logv = relu(adj @ (support @ wv) + bv)
    z = noise * jnp.exp(logv) + mean
    r1 = z / jnp.maximum(jnp.sqrt(jnp.sum(z * z, axis=1, keepdims=True)), 1e-12)
    r2 = jnp.ones_like(z) / jnp.sqrt(float(z.shape[1]))
    d = r1 @ jnp.sum(r1, axis=0)[:, None] + r2 @ jnp.sum(r2, axis=0)[:, None]
    d = d ** -0.5
    r1, r2 = r1 * d, r2 * d

    def glayer(inp, w, b, act):
        y = inp @ w + b
        return act(r1 @ (r1.T @ y) + r2 @ (r2.T @ y))

    upd = glayer(z, w1, b1, relu) + glayer(x, w0, b0, relu)
    upd = glayer(upd, w2, b2, lambda t: t)
    upd = 0.5 * z + 0.5 * upd
    return upd @ upd.T


def _make_inputs(key, B, N, F_dim, E_dim):
    k_adj, k_x, k_noise = jax.random.split(key, 3)
    raw = jax.random.uniform(k_adj, (B, N, N), jnp.float32)
    adj = 0.5 * (raw + jnp.swapaxes(raw, 1, 2))            # symmetric adjacency
    deg = jnp.sum(adj, axis=-1, keepdims=True)             # GCN degree norm
    adj = adj / jnp.sqrt(deg) / jnp.sqrt(jnp.swapaxes(deg, 1, 2))
    x = jax.random.normal(k_x, (B, N, F_dim), jnp.float32)
    noise = jax.random.uniform(k_noise, (B, N, E_dim), jnp.float32)
    return adj, x, noise


if __name__ == "__main__":
    key = jax.random.PRNGKey(0)
    B, N, F_DIM, H_DIM, E_DIM, D_DIM = 2, 64, 16, 32, 16, 16

    k_in, k_in2, k_p = jax.random.split(key, 3)
    adj, x, noise = _make_inputs(k_in, B, N, F_DIM, E_DIM)
    params = init_params(k_p, F_DIM, H_DIM, E_DIM, D_DIM)

    out = jax.block_until_ready(graphite_vae_forward_batched(adj, x, noise, params))

    # bf16-MXU / f32-accumulate mixed precision -> loose tolerance
    for b in range(B):
        ref = np.asarray(_reference(adj[b], x[b], noise[b], params))
        np.testing.assert_allclose(np.asarray(out[b]), ref, rtol=5e-2, atol=5e-2)

    # padding-leak regression test: N not a multiple of 8 (exercises row mask)
    N2 = 50
    adj2, x2, noise2 = _make_inputs(k_in2, 1, N2, F_DIM, E_DIM)
    out2 = jax.block_until_ready(
        graphite_vae_forward(adj2[0], x2[0], noise2[0], params))
    ref2 = np.asarray(_reference(adj2[0], x2[0], noise2[0], params))
    np.testing.assert_allclose(np.asarray(out2), ref2, rtol=5e-2, atol=5e-2)

    print("KERNEL_OK")
</pallas_src>

<mosaic_0001>
module attributes {stable_mosaic.version = 11 : i64} {
  func.func @kernel(%arg0: i32, %arg1: i32, %arg2: memref<1x128x128xbf16, #tpu.memory_space<vmem>>, %arg3: memref<1x128x128xbf16, #tpu.memory_space<vmem>>, %arg4: memref<1x128x128xf32, #tpu.memory_space<vmem>>, %arg5: memref<128x128xbf16, #tpu.memory_space<vmem>>, %arg6: memref<1x128xf32, #tpu.memory_space<vmem>>, %arg7: memref<128x256xbf16, #tpu.memory_space<vmem>>, %arg8: memref<1x256xf32, #tpu.memory_space<vmem>>, %arg9: memref<128x128xbf16, #tpu.memory_space<vmem>>, %arg10: memref<128x128xbf16, #tpu.memory_space<vmem>>, %arg11: memref<1x256xf32, #tpu.memory_space<vmem>>, %arg12: memref<128x128xbf16, #tpu.memory_space<vmem>>, %arg13: memref<1x128xf32, #tpu.memory_space<vmem>>, %arg14: memref<1x128x128xf32, #tpu.memory_space<vmem>>, %arg15: memref<128x128xbf16, #tpu.memory_space<vmem>>) attributes {dimension_semantics = [#tpu.dimension_semantics<parallel>, #tpu.dimension_semantics<arbitrary>], iteration_bounds = array<i64: 2, 1>, scalar_prefetch = 0 : i64, scratch_operands = 1 : i64, tpu.core_type = #tpu.core_type<tc>, window_params = [{transform_indices = @transform_0, window_bounds = array<i64: 1, 128, 128>}, {transform_indices = @transform_1, window_bounds = array<i64: 1, 128, 128>}, {transform_indices = @transform_2, window_bounds = array<i64: 1, 128, 128>}, {pipeline_mode = #tpu.pipeline_mode<synchronous>, transform_indices = @transform_3, window_bounds = array<i64: 128, 128>}, {pipeline_mode = #tpu.pipeline_mode<synchronous>, transform_indices = @transform_4, window_bounds = array<i64: 1, 128>}, {pipeline_mode = #tpu.pipeline_mode<synchronous>, transform_indices = @transform_5, window_bounds = array<i64: 128, 256>}, {pipeline_mode = #tpu.pipeline_mode<synchronous>, transform_indices = @transform_6, window_bounds = array<i64: 1, 256>}, {pipeline_mode = #tpu.pipeline_mode<synchronous>, transform_indices = @transform_7, window_bounds = array<i64: 128, 128>}, {pipeline_mode = #tpu.pipeline_mode<synchronous>, transform_indices = @transform_8, window_bounds = array<i64: 128, 128>}, {pipeline_mode = #tpu.pipeline_mode<synchronous>, transform_indices = @transform_9, window_bounds = array<i64: 1, 256>}, {pipeline_mode = #tpu.pipeline_mode<synchronous>, transform_indices = @transform_10, window_bounds = array<i64: 128, 128>}, {pipeline_mode = #tpu.pipeline_mode<synchronous>, transform_indices = @transform_11, window_bounds = array<i64: 1, 128>}, {transform_indices = @transform_12, window_bounds = array<i64: 1, 128, 128>}]} {
    %c0_i32 = arith.constant 0 : i32
    %0 = arith.cmpi eq, %arg1, %c0_i32 : i32
    %1 = arith.extui %0 : i1 to i32
    %c0_i32_0 = arith.constant 0 : i32
    %2 = arith.cmpi ne, %1, %c0_i32_0 : i32
    scf.if %2 {
      %c0_6 = arith.constant 0 : index
      %c0_7 = arith.constant 0 : index
      %c0_8 = arith.constant 0 : index
      %12 = vector.load %arg2[%c0_6, %c0_7, %c0_8] : memref<1x128x128xbf16, #tpu.memory_space<vmem>>, vector<1x128x128xbf16>
      %13 = vector.shape_cast %12 : vector<1x128x128xbf16> to vector<128x128xbf16>
      %c0_9 = arith.constant 0 : index
      %c0_10 = arith.constant 0 : index
      %c0_11 = arith.constant 0 : index
      %14 = vector.load %arg3[%c0_9, %c0_10, %c0_11] : memref<1x128x128xbf16, #tpu.memory_space<vmem>>, vector<1x128x128xbf16>
      %15 = vector.shape_cast %14 : vector<1x128x128xbf16> to vector<128x128xbf16>
      %c0_12 = arith.constant 0 : index
      %c0_13 = arith.constant 0 : index
      %c0_14 = arith.constant 0 : index
      %16 = vector.load %arg4[%c0_12, %c0_13, %c0_14] : memref<1x128x128xf32, #tpu.memory_space<vmem>>, vector<1x128x128xf32>
      %17 = vector.shape_cast %16 : vector<1x128x128xf32> to vector<128x128xf32>
      %c0_15 = arith.constant 0 : index
      %c0_16 = arith.constant 0 : index
      %18 = vector.load %arg5[%c0_15, %c0_16] : memref<128x128xbf16, #tpu.memory_space<vmem>>, vector<128x128xbf16>
      %cst_17 = arith.constant dense<0.000000e+00> : vector<128x128xf32>
      %19 = tpu.matmul %15, %18, %cst_17 {dimension_numbers = #tpu.dot_dimension_numbers<[1], [0], [0], [1], [0, 0, 1, 1], [], []>} : vector<128x128xbf16>, vector<128x128xbf16>, vector<128x128xf32> -> vector<128x128xf32>
      %20 = arith.truncf %19 : vector<128x128xf32> to vector<128x128xbf16>
      %cst_18 = arith.constant dense<0.000000e+00> : vector<128x128xf32>
      %21 = tpu.matmul %13, %20, %cst_18 {dimension_numbers = #tpu.dot_dimension_numbers<[1], [0], [0], [1], [0, 0, 1, 1], [], []>} : vector<128x128xbf16>, vector<128x128xbf16>, vector<128x128xf32> -> vector<128x128xf32>
      %c0_19 = arith.constant 0 : index
      %c0_20 = arith.constant 0 : index
      %22 = vector.load %arg6[%c0_19, %c0_20] : memref<1x128xf32, #tpu.memory_space<vmem>>, vector<1x128xf32>
      %23 = vector.broadcast %22 : vector<1x128xf32> to vector<128x128xf32>
      %24 = arith.addf %21, %23 : vector<128x128xf32>
      %cst_21 = arith.constant 0.000000e+00 : f32
      %25 = vector.broadcast %cst_21 : f32 to vector<128x128xf32>
      %26 = arith.maximumf %24, %25 : vector<128x128xf32>
      %c0_22 = arith.constant 0 : index
      %c0_23 = arith.constant 0 : index
      %27 = vector.load %arg7[%c0_22, %c0_23] : memref<128x256xbf16, #tpu.memory_space<vmem>>, vector<128x256xbf16>
      %28 = arith.truncf %26 : vector<128x128xf32> to vector<128x128xbf16>
      %cst_24 = arith.constant dense<0.000000e+00> : vector<128x256xf32>
      %29 = tpu.matmul %28, %27, %cst_24 {dimension_numbers = #tpu.dot_dimension_numbers<[1], [0], [0], [1], [0, 0, 1, 1], [], []>} : vector<128x128xbf16>, vector<128x256xbf16>, vector<128x256xf32> -> vector<128x256xf32>
      %30 = arith.truncf %29 : vector<128x256xf32> to vector<128x256xbf16>
      %cst_25 = arith.constant dense<0.000000e+00> : vector<128x256xf32>
      %31 = tpu.matmul %13, %30, %cst_25 {dimension_numbers = #tpu.dot_dimension_numbers<[1], [0], [0], [1], [0, 0, 1, 1], [], []>} : vector<128x128xbf16>, vector<128x256xbf16>, vector<128x256xf32> -> vector<128x256xf32>
      %c0_26 = arith.constant 0 : index
      %c0_27 = arith.constant 0 : index
      %32 = vector.load %arg8[%c0_26, %c0_27] : memref<1x256xf32, #tpu.memory_space<vmem>>, vector<1x256xf32>
      %33 = vector.broadcast %32 : vector<1x256xf32> to vector<128x256xf32>
      %34 = arith.addf %31, %33 : vector<128x256xf32>
      %cst_28 = arith.constant 0.000000e+00 : f32
      %35 = vector.broadcast %cst_28 : f32 to vector<128x256xf32>
      %36 = arith.maximumf %34, %35 : vector<128x256xf32>
      %37 = vector.extract_strided_slice %36 {offsets = [0, 0], sizes = [128, 128], strides = [1, 1]} : vector<128x256xf32> to vector<128x128xf32>
      %38 = vector.extract_strided_slice %36 {offsets = [0, 128], sizes = [128, 128], strides = [1, 1]} : vector<128x256xf32> to vector<128x128xf32>
      %39 = tpu.iota {dimensions = array<i32: 0>} : vector<128x1xi32>
      %c64_i32 = arith.constant 64 : i32
      %40 = vector.broadcast %c64_i32 : i32 to vector<128x1xi32>
      %41 = arith.cmpi slt, %39, %40 : vector<128x1xi32>
      %42 = arith.extui %41 : vector<128x1xi1> to vector<128x1xi32>
      %43 = arith.sitofp %42 : vector<128x1xi32> to vector<128x1xf32>
      %44 = math.exp %38 : vector<128x128xf32>
      %45 = arith.mulf %17, %44 : vector<128x128xf32>
      %46 = arith.addf %45, %37 : vector<128x128xf32>
      %47 = vector.broadcast %43 : vector<128x1xf32> to vector<128x128xf32>
      %48 = arith.mulf %46, %47 : vector<128x128xf32>
      %49 = arith.mulf %48, %48 : vector<128x128xf32>
      %cst_29 = arith.constant dense<0.000000e+00> : vector<128xf32>
      %50 = vector.multi_reduction <add>, %49, %cst_29 [1] : vector<128x128xf32> to vector<128xf32>
      %51 = vector.shape_cast %50 : vector<128xf32> to vector<128x1xf32>
      %52 = math.sqrt %51 : vector<128x1xf32>
      %cst_30 = arith.constant 9.99999996E-13 : f32
      %53 = vector.broadcast %cst_30 : f32 to vector<128x1xf32>
      %54 = arith.maximumf %52, %53 : vector<128x1xf32>
      %55 = vector.broadcast %54 : vector<128x1xf32> to vector<128x128xf32>
      %56 = arith.divf %48, %55 : vector<128x128xf32>
      %cst_31 = arith.constant dense<0.000000e+00> : vector<128xf32>
      %57 = vector.multi_reduction <add>, %56, %cst_31 [0] : vector<128x128xf32> to vector<128xf32>
      %58 = vector.shape_cast %57 : vector<128xf32> to vector<1x128xf32>
      %59 = vector.broadcast %58 : vector<1x128xf32> to vector<128x128xf32>
      %60 = arith.mulf %56, %59 : vector<128x128xf32>
      %cst_32 = arith.constant dense<0.000000e+00> : vector<128xf32>
      %61 = vector.multi_reduction <add>, %60, %cst_32 [1] : vector<128x128xf32> to vector<128xf32>
      %62 = vector.shape_cast %61 : vector<128xf32> to vector<128x1xf32>
      %cst_33 = arith.constant 6.400000e+01 : f32
      %63 = vector.broadcast %cst_33 : f32 to vector<128x1xf32>
      %64 = arith.addf %62, %63 : vector<128x1xf32>
      %65 = math.rsqrt %64 : vector<128x1xf32>
      %66 = vector.broadcast %65 : vector<128x1xf32> to vector<128x128xf32>
      %67 = arith.mulf %56, %66 : vector<128x128xf32>
      %68 = arith.mulf %65, %43 : vector<128x1xf32>
      %69 = arith.truncf %67 : vector<128x128xf32> to vector<128x128xbf16>
      %70 = tpu.transpose %69, [1, 0] : vector<128x128xbf16> -> vector<128x128xbf16>
      %c0_34 = arith.constant 0 : index
      %c0_35 = arith.constant 0 : index
      %71 = vector.load %arg9[%c0_34, %c0_35] : memref<128x128xbf16, #tpu.memory_space<vmem>>, vector<128x128xbf16>
      %72 = arith.truncf %48 : vector<128x128xf32> to vector<128x128xbf16>
      %cst_36 = arith.constant dense<0.000000e+00> : vector<128x128xf32>
      %73 = tpu.matmul %72, %71, %cst_36 {dimension_numbers = #tpu.dot_dimension_numbers<[1], [0], [0], [1], [0, 0, 1, 1], [], []>} : vector<128x128xbf16>, vector<128x128xbf16>, vector<128x128xf32> -> vector<128x128xf32>
      %c0_37 = arith.constant 0 : index
      %c0_38 = arith.constant 0 : index
      %74 = vector.load %arg10[%c0_37, %c0_38] : memref<128x128xbf16, #tpu.memory_space<vmem>>, vector<128x128xbf16>
      %cst_39 = arith.constant dense<0.000000e+00> : vector<128x128xf32>
      %75 = tpu.matmul %15, %74, %cst_39 {dimension_numbers = #tpu.dot_dimension_numbers<[1], [0], [0], [1], [0, 0, 1, 1], [], []>} : vector<128x128xbf16>, vector<128x128xbf16>, vector<128x128xf32> -> vector<128x128xf32>
      %76 = tpu.concatenate %73, %75 in 1 : vector<128x128xf32>, vector<128x128xf32> -> vector<128x256xf32>
      %c0_40 = arith.constant 0 : index
      %c0_41 = arith.constant 0 : index
      %77 = vector.load %arg11[%c0_40, %c0_41] : memref<1x256xf32, #tpu.memory_space<vmem>>, vector<1x256xf32>
      %78 = vector.broadcast %77 : vector<1x256xf32> to vector<128x256xf32>
      %79 = arith.addf %76, %78 : vector<128x256xf32>
      %80 = arith.truncf %79 : vector<128x256xf32> to vector<128x256xbf16>
      %cst_42 = arith.constant dense<0.000000e+00> : vector<128x256xf32>
      %81 = tpu.matmul %70, %80, %cst_42 {dimension_numbers = #tpu.dot_dimension_numbers<[1], [0], [0], [1], [0, 0, 1, 1], [], []>} : vector<128x128xbf16>, vector<128x256xbf16>, vector<128x256xf32> -> vector<128x256xf32>
      %82 = arith.truncf %81 : vector<128x256xf32> to vector<128x256xbf16>
      %cst_43 = arith.constant dense<0.000000e+00> : vector<128x256xf32>
      %83 = tpu.matmul %69, %82, %cst_43 {dimension_numbers = #tpu.dot_dimension_numbers<[1], [0], [0], [1], [0, 0, 1, 1], [], []>} : vector<128x128xbf16>, vector<128x256xbf16>, vector<128x256xf32> -> vector<128x256xf32>
      %84 = vector.broadcast %68 : vector<128x1xf32> to vector<128x256xf32>
      %85 = arith.mulf %84, %79 : vector<128x256xf32>
      %cst_44 = arith.constant dense<0.000000e+00> : vector<256xf32>
      %86 = vector.multi_reduction <add>, %85, %cst_44 [0] : vector<128x256xf32> to vector<256xf32>
      %87 = vector.shape_cast %86 : vector<256xf32> to vector<1x256xf32>
      %88 = vector.broadcast %68 : vector<128x1xf32> to vector<128x256xf32>
      %89 = vector.broadcast %87 : vector<1x256xf32> to vector<128x256xf32>
      %90 = arith.mulf %88, %89 : vector<128x256xf32>
      %91 = arith.addf %83, %90 : vector<128x256xf32>
      %cst_45 = arith.constant 0.000000e+00 : f32
      %92 = vector.broadcast %cst_45 : f32 to vector<128x256xf32>
      %93 = arith.maximumf %91, %92 : vector<128x256xf32>
      %94 = vector.extract_strided_slice %93 {offsets = [0, 0], sizes = [128, 128], strides = [1, 1]} : vector<128x256xf32> to vector<128x128xf32>
      %95 = vector.extract_strided_slice %93 {offsets = [0, 128], sizes = [128, 128], strides = [1, 1]} : vector<128x256xf32> to vector<128x128xf32>
      %96 = arith.addf %94, %95 : vector<128x128xf32>
      %c0_46 = arith.constant 0 : index
      %c0_47 = arith.constant 0 : index
      %97 = vector.load %arg12[%c0_46, %c0_47] : memref<128x128xbf16, #tpu.memory_space<vmem>>, vector<128x128xbf16>
      %98 = arith.truncf %96 : vector<128x128xf32> to vector<128x128xbf16>
      %cst_48 = arith.constant dense<0.000000e+00> : vector<128x128xf32>
      %99 = tpu.matmul %98, %97, %cst_48 {dimension_numbers = #tpu.dot_dimension_numbers<[1], [0], [0], [1], [0, 0, 1, 1], [], []>} : vector<128x128xbf16>, vector<128x128xbf16>, vector<128x128xf32> -> vector<128x128xf32>
      %c0_49 = arith.constant 0 : index
      %c0_50 = arith.constant 0 : index
      %100 = vector.load %arg13[%c0_49, %c0_50] : memref<1x128xf32, #tpu.memory_space<vmem>>, vector<1x128xf32>
      %101 = vector.broadcast %100 : vector<1x128xf32> to vector<128x128xf32>
      %102 = arith.addf %99, %101 : vector<128x128xf32>
      %cst_51 = arith.constant 5.000000e-01 : f32
      %103 = vector.broadcast %cst_51 : f32 to vector<128x128xf32>
      %104 = arith.mulf %103, %48 : vector<128x128xf32>
      %105 = arith.truncf %102 : vector<128x128xf32> to vector<128x128xbf16>
      %cst_52 = arith.constant dense<0.000000e+00> : vector<128x128xf32>
      %106 = tpu.matmul %70, %105, %cst_52 {dimension_numbers = #tpu.dot_dimension_numbers<[1], [0], [0], [1], [0, 0, 1, 1], [], []>} : vector<128x128xbf16>, vector<128x128xbf16>, vector<128x128xf32> -> vector<128x128xf32>
      %107 = arith.truncf %106 : vector<128x128xf32> to vector<128x128xbf16>
      %cst_53 = arith.constant dense<0.000000e+00> : vector<128x128xf32>
      %108 = tpu.matmul %69, %107, %cst_53 {dimension_numbers = #tpu.dot_dimension_numbers<[1], [0], [0], [1], [0, 0, 1, 1], [], []>} : vector<128x128xbf16>, vector<128x128xbf16>, vector<128x128xf32> -> vector<128x128xf32>
      %109 = vector.broadcast %68 : vector<128x1xf32> to vector<128x128xf32>
      %110 = arith.mulf %109, %102 : vector<128x128xf32>
      %cst_54 = arith.constant dense<0.000000e+00> : vector<128xf32>
      %111 = vector.multi_reduction <add>, %110, %cst_54 [0] : vector<128x128xf32> to vector<128xf32>
      %112 = vector.shape_cast %111 : vector<128xf32> to vector<1x128xf32>
      %113 = vector.broadcast %68 : vector<128x1xf32> to vector<128x128xf32>
      %114 = vector.broadcast %112 : vector<1x128xf32> to vector<128x128xf32>
      %115 = arith.mulf %113, %114 : vector<128x128xf32>
      %116 = arith.addf %108, %115 : vector<128x128xf32>
      %cst_55 = arith.constant 5.000000e-01 : f32
      %117 = vector.broadcast %cst_55 : f32 to vector<128x128xf32>
      %118 = arith.mulf %117, %116 : vector<128x128xf32>
      %119 = arith.addf %104, %118 : vector<128x128xf32>
      %120 = arith.truncf %119 : vector<128x128xf32> to vector<128x128xbf16>
      %c0_56 = arith.constant 0 : index
      %c0_57 = arith.constant 0 : index
      %121 = vector.load %arg15[%c0_56, %c0_57] : memref<128x128xbf16, #tpu.memory_space<vmem>>, vector<128x128xbf16>
      tpu.vector_store %arg15[%c0_56, %c0_57], %120 {strides = array<i32>} : memref<128x128xbf16, #tpu.memory_space<vmem>>, vector<128x128xbf16>,
    } else {
    }
    %c128_i32 = arith.constant 128 : i32
    %3 = arith.muli %arg1, %c128_i32 : i32
    %4 = tpu.assume_multiple %3, 128 : i32
    %5 = arith.index_cast %4 : i32 to index
    %c0 = arith.constant 0 : index
    %6 = vector.load %arg15[%5, %c0] : memref<128x128xbf16, #tpu.memory_space<vmem>>, vector<128x128xbf16>
    %c0_1 = arith.constant 0 : index
    %c0_2 = arith.constant 0 : index
    %7 = vector.load %arg15[%c0_1, %c0_2] : memref<128x128xbf16, #tpu.memory_space<vmem>>, vector<128x128xbf16>
    %cst = arith.constant dense<0.000000e+00> : vector<128x128xf32>
    %8 = tpu.matmul %6, %7, %cst {dimension_numbers = #tpu.dot_dimension_numbers<[1], [1], [0], [0], [0, 0, 1, 0], [], []>} : vector<128x128xbf16>, vector<128x128xbf16>, vector<128x128xf32> -> vector<128x128xf32>
    %c0_3 = arith.constant 0 : index
    %c0_4 = arith.constant 0 : index
    %c0_5 = arith.constant 0 : index
    %9 = vector.load %arg14[%c0_3, %c0_4, %c0_5] : memref<1x128x128xf32, #tpu.memory_space<vmem>>, vector<1x128x128xf32>
    %10 = vector.shape_cast %9 : vector<1x128x128xf32> to vector<128x128xf32>
    %11 = vector.shape_cast %8 : vector<128x128xf32> to vector<1x128x128xf32>
    tpu.vector_store %arg14[%c0_3, %c0_4, %c0_5], %11 {strides = array<i32>} : memref<1x128x128xf32, #tpu.memory_space<vmem>>, vector<1x128x128xf32>,
    return
  }
  func.func @transform_0(%arg0: i32, %arg1: i32) -> (i32, i32, i32) {
    %c0_i32 = arith.constant 0 : i32
    %c0_i32_0 = arith.constant 0 : i32
    %c0_i32_1 = arith.constant 0 : i32
    return %arg0, %c0_i32, %c0_i32_0 : i32, i32, i32
  }
  func.func @transform_1(%arg0: i32, %arg1: i32) -> (i32, i32, i32) {
    %c0_i32 = arith.constant 0 : i32
    %c0_i32_0 = arith.constant 0 : i32
    %c0_i32_1 = arith.constant 0 : i32
    return %arg0, %c0_i32, %c0_i32_0 : i32, i32, i32
  }
  func.func @transform_2(%arg0: i32, %arg1: i32) -> (i32, i32, i32) {
    %c0_i32 = arith.constant 0 : i32
    %c0_i32_0 = arith.constant 0 : i32
    %c0_i32_1 = arith.constant 0 : i32
    return %arg0, %c0_i32, %c0_i32_0 : i32, i32, i32
  }
  func.func @transform_3(%arg0: i32, %arg1: i32) -> (i32, i32) {
    %c0_i32 = arith.constant 0 : i32
    %c0_i32_0 = arith.constant 0 : i32
    %c0_i32_1 = arith.constant 0 : i32
    return %c0_i32, %c0_i32_0 : i32, i32
  }
  func.func @transform_4(%arg0: i32, %arg1: i32) -> (i32, i32) {
    %c0_i32 = arith.constant 0 : i32
    %c0_i32_0 = arith.constant 0 : i32
    %c0_i32_1 = arith.constant 0 : i32
    return %c0_i32, %c0_i32_0 : i32, i32
  }
  func.func @transform_5(%arg0: i32, %arg1: i32) -> (i32, i32) {
    %c0_i32 = arith.constant 0 : i32
    %c0_i32_0 = arith.constant 0 : i32
    %c0_i32_1 = arith.constant 0 : i32
    return %c0_i32, %c0_i32_0 : i32, i32
  }
  func.func @transform_6(%arg0: i32, %arg1: i32) -> (i32, i32) {
    %c0_i32 = arith.constant 0 : i32
    %c0_i32_0 = arith.constant 0 : i32
    %c0_i32_1 = arith.constant 0 : i32
    return %c0_i32, %c0_i32_0 : i32, i32
  }
  func.func @transform_7(%arg0: i32, %arg1: i32) -> (i32, i32) {
    %c0_i32 = arith.constant 0 : i32
    %c0_i32_0 = arith.constant 0 : i32
    %c0_i32_1 = arith.constant 0 : i32
    return %c0_i32, %c0_i32_0 : i32, i32
  }
  func.func @transform_8(%arg0: i32, %arg1: i32) -> (i32, i32) {
    %c0_i32 = arith.constant 0 : i32
    %c0_i32_0 = arith.constant 0 : i32
    %c0_i32_1 = arith.constant 0 : i32
    return %c0_i32, %c0_i32_0 : i32, i32
  }
  func.func @transform_9(%arg0: i32, %arg1: i32) -> (i32, i32) {
    %c0_i32 = arith.constant 0 : i32
    %c0_i32_0 = arith.constant 0 : i32
    %c0_i32_1 = arith.constant 0 : i32
    return %c0_i32, %c0_i32_0 : i32, i32
  }
  func.func @transform_10(%arg0: i32, %arg1: i32) -> (i32, i32) {
    %c0_i32 = arith.constant 0 : i32
    %c0_i32_0 = arith.constant 0 : i32
    %c0_i32_1 = arith.constant 0 : i32
    return %c0_i32, %c0_i32_0 : i32, i32
  }
  func.func @transform_11(%arg0: i32, %arg1: i32) -> (i32, i32) {
    %c0_i32 = arith.constant 0 : i32
    %c0_i32_0 = arith.constant 0 : i32
    %c0_i32_1 = arith.constant 0 : i32
    return %c0_i32, %c0_i32_0 : i32, i32
  }
  func.func @transform_12(%arg0: i32, %arg1: i32) -> (i32, i32, i32) {
    %c0_i32 = arith.constant 0 : i32
    %c0_i32_0 = arith.constant 0 : i32
    return %arg0, %arg1, %c0_i32 : i32, i32, i32
  }
}

</mosaic_0001>

<llo_original>
// kernel: tpu_custom_call.1
$region0: #{tpu_custom_call.1}
  #allocation0 [shape = 'u32[]', space=smem, size = 0x4, offset = 0x4, fixed_abs, tag = 'smem constant byte address 0x4 - core index']
  #allocation1 [shape = 'u32[144,128]{1,0:T(1,128)}', space=vmem, size = 0x12000, scoped, tag = 'internal scratch']
  #allocation2 [shape = 'bf16[128,128]{1,0:T(8,128)(2,1)}', space=vmem, size = 0x8000, scoped, tag = 'scratch operand']
  %s0 = inlined_call_operand.hbm [shape: bf16[2,128,128], index: 0, kind: input, shape index: {}]
  %s1 = inlined_call_operand.hbm [shape: bf16[2,128,128], index: 1, kind: input, shape index: {}]
  %s2 = inlined_call_operand.hbm [shape: f32[2,128,128], index: 2, kind: input, shape index: {}]
  %s3 = inlined_call_operand.hbm [shape: bf16[128,128], index: 3, kind: input, shape index: {}]
  %s4 = inlined_call_operand.vmem [shape: f32[1,128], index: 4, kind: input, shape index: {}]
  %s5 = inlined_call_operand.hbm [shape: bf16[128,256], index: 5, kind: input, shape index: {}]
  %s6 = inlined_call_operand.vmem [shape: f32[1,256], index: 6, kind: input, shape index: {}]
  %s7 = inlined_call_operand.hbm [shape: bf16[128,128], index: 7, kind: input, shape index: {}]
  %s8 = inlined_call_operand.hbm [shape: bf16[128,128], index: 8, kind: input, shape index: {}]
  %s9 = inlined_call_operand.vmem [shape: f32[1,256], index: 9, kind: input, shape index: {}]
  %s10 = inlined_call_operand.hbm [shape: bf16[128,128], index: 10, kind: input, shape index: {}]
  %s11 = inlined_call_operand.vmem [shape: f32[1,128], index: 11, kind: input, shape index: {}]
  %s12 = inlined_call_operand.hbm [shape: f32[2,128,128], index: 12, kind: output, shape index: {}]
  %s13 = sld [smem:[#allocation0]]
  $region117: #{tpu_custom_call.1} parent=0
    _
  %s15 = ssub.s32 1, %s13
  %s16 = scalar_select 0, %s15, %s13
  $region1: #{tpu_custom_call.1} parent=0
    #allocation3 [shape = 'u8[65536]{0}', space=vmem, size = 0x10000, scoped, tag = 'input window, operand 0']
    #allocation4 [shape = 's32[2]{0}', space=sflag, size = 0x8, scoped, tag = 'scoped memory for tpu_custom_call.1']
    #allocation5 [shape = 's32[2]{0}', space=sflag, size = 0x8, scoped, tag = 'scoped memory for tpu_custom_call.1']
    #allocation6 [shape = 'u8[65536]{0}', space=vmem, size = 0x10000, scoped, tag = 'input window, operand 1']
    #allocation7 [shape = 's32[2]{0}', space=sflag, size = 0x8, scoped, tag = 'scoped memory for tpu_custom_call.1']
    #allocation8 [shape = 'u8[131072]{0}', space=vmem, size = 0x20000, scoped, tag = 'input window, operand 2']
    #allocation9 [shape = 'u8[32768]{0}', space=vmem, size = 0x8000, scoped, tag = 'input window, operand 3, single buffered']
    #allocation10 [shape = 's32[1]{0}', space=sflag, size = 0x4, scoped, tag = 'scoped memory for tpu_custom_call.1']
    #allocation11 [shape = 'u8[65536]{0}', space=vmem, size = 0x10000, scoped, tag = 'input window, operand 5, single buffered']
    #allocation12 [shape = 'u8[32768]{0}', space=vmem, size = 0x8000, scoped, tag = 'input window, operand 7, single buffered']
    #allocation13 [shape = 's32[1]{0}', space=sflag, size = 0x4, scoped, tag = 'scoped memory for tpu_custom_call.1']
    #allocation14 [shape = 'u8[32768]{0}', space=vmem, size = 0x8000, scoped, tag = 'input window, operand 8, single buffered']
    #allocation15 [shape = 'u8[32768]{0}', space=vmem, size = 0x8000, scoped, tag = 'input window, operand 10, single buffered']
    #allocation16 [shape = 's32[1]{0}', space=sflag, size = 0x4, scoped, tag = 'scoped memory for tpu_custom_call.1']
    #allocation17 [shape = 'u8[131072]{0}', space=vmem, size = 0x20000, scoped, tag = 'output window, operand 0']
    %17 = vsyncpa [#allocation4], 0
    %s18 = scalar_lea.sflag [#allocation4], 1
    %19 = vsyncpa %s18, 0
    %20 = vsyncpa [#allocation7], 0
    %s21 = scalar_lea.sflag [#allocation7], 1
    %22 = vsyncpa %s21, 0
    %23 = vsyncpa [#allocation10], 0
    %24 = vsyncpa [#allocation13], 0
    %25 = vsyncpa [#allocation16], 0
    %26 = vsyncpa [#allocation5], 0
    %s27 = scalar_lea.sflag [#allocation5], 1
    %28 = vsyncpa %s27, 0
    loop: start=0, step=1, limit=4
    $region2: #{tpu_custom_call.1} parent=1 // loop_pre_header
      _
    $region3: #{tpu_custom_call.1} parent=1 // loop_header
      %s30 = sphi 0, %s34
      %p31 = scmp.ge.s32.totalorder %s30, 4
      %s37 = sphi 0, %s49
      %s38 = sphi 0, %s45
      %s39 = sphi 0, %s37
      %s40 = sphi 0, %s38
      %s41 = sphi 0, %s39
      %s42 = sphi 0, %s40
      %s52 = sphi 0, %s54
      %s55 = sphi 0, %s52
      %s56 = sphi 0, %s55
      %s72 = sphi 0, %s56
      %s78 = sphi 0, %s80
      %s81 = sphi 0, %s78
      %s82 = sphi 0, %s81
      %s98 = sphi 0, %s82
      %s104 = sphi 0, %s106
      %s107 = sphi 0, %s104
      %s108 = sphi 0, %s107
      %s124 = sphi 0, %s108
      %s128 = sphi 0, %s128
      %s130 = sphi 0, %s128
      %s131 = sphi 0, %s130
      %s145 = sphi 0, %s131
      %s149 = sphi 0, %s149
      %s151 = sphi 0, %s149
      %s152 = sphi 0, %s151
      %s166 = sphi 0, %s152
      %s170 = sphi 0, %s170
      %s172 = sphi 0, %s170
      %s173 = sphi 0, %s172
      %s187 = sphi 0, %s173
      %s191 = sphi 0, %s191
      %s193 = sphi 0, %s191
      %s194 = sphi 0, %s193
      %s208 = sphi 0, %s194
      %s212 = sphi 0, %s212
      %s214 = sphi 0, %s212
      %s215 = sphi 0, %s214
      %s229 = sphi 0, %s215
      %s233 = sphi 0, %s233
      %s235 = sphi 0, %s233
      %s236 = sphi 0, %s235
      %s250 = sphi 0, %s236
      %s254 = sphi 0, %s254
      %s256 = sphi 0, %s254
      %s257 = sphi 0, %s256
      %s271 = sphi 0, %s257
      %s275 = sphi 0, %s275
      %s277 = sphi 0, %s275
      %s278 = sphi 0, %s277
      %s292 = sphi 0, %s278
      %s296 = sphi 0, %s296
      %s298 = sphi 0, %s296
      %s299 = sphi 0, %s298
      %s313 = sphi 0, %s299
      %s321 = sphi 0, %s323
      %s324 = sphi 0, %s321
      %s325 = sphi 0, %s324
      %s341 = sphi 0, %s325
    $region4: #{tpu_custom_call.1} parent=1 // loop_header_branch
      %33 = sbr.rel (%p31) target = $region8
    $region5: #{tpu_custom_call.1} parent=1 // loop_body
      %s35 = ssub.s32 %s30, 1
      %s36 = ssub.s32 %s30, 2
      %s43 = sadd.s32 1, %s38
      %p44 = scmp.ge.s32.totalorder %s43, 1
      %s45 = scalar_select %p44, 0, %s43
      %s46 = sadd.s32 1, %s37
      %s47 = scalar_select %p44, %s46, %s37
      %p48 = scmp.ge.s32.totalorder %s47, 2
      %s49 = scalar_select %p48, 0, %s47
      %s50 = ssub.s32 %s37, %s49
      %p51 = scmp.eq.s32.totalorder %s50, 0
      %s53 = sadd.s32 %s52, 1
      %s54 = scalar_select %p51, %s52, %s53
      %p57 = pneg %p51
      %p58 = scmp.eq.s32.totalorder %s30, 1
      %p59 = por %p57, %p58
      %p60 = scmp.ne.s32.totalorder %s52, %s55
      %p61 = scmp.eq.s32.totalorder %s30, 0
      %p62 = por %p60, %p61
      %p63 = scmp.ne.s32.totalorder %s52, %s55
      %p64 = scmp.eq.s32.totalorder %s35, 1
      %p65 = por %p63, %p64
      %p66 = scmp.ne.s32.totalorder %s55, %s56
      %p67 = scmp.eq.s32.totalorder %s35, 0
      %p68 = por %p66, %p67
      %p69 = scmp.ne.s32.totalorder %s55, %s56
      %p70 = scmp.eq.s32.totalorder %s36, 1
      %p71 = por %p69, %p70
      %p73 = scmp.ne.s32.totalorder %s56, %s72
      %p74 = scmp.eq.s32.totalorder %s36, 0
      %p75 = por %p73, %p74
      %s76 = ssub.s32 %s37, %s49
      %p77 = scmp.eq.s32.totalorder %s76, 0
      %s79 = sadd.s32 %s78, 1
      %s80 = scalar_select %p77, %s78, %s79
      %p83 = pneg %p77
      %p84 = scmp.eq.s32.totalorder %s30, 1
      %p85 = por %p83, %p84
      %p86 = scmp.ne.s32.totalorder %s78, %s81
      %p87 = scmp.eq.s32.totalorder %s30, 0
      %p88 = por %p86, %p87
      %p89 = scmp.ne.s32.totalorder %s78, %s81
      %p90 = scmp.eq.s32.totalorder %s35, 1
      %p91 = por %p89, %p90
      %p92 = scmp.ne.s32.totalorder %s81, %s82
      %p93 = scmp.eq.s32.totalorder %s35, 0
      %p94 = por %p92, %p93
      %p95 = scmp.ne.s32.totalorder %s81, %s82
      %p96 = scmp.eq.s32.totalorder %s36, 1
      %p97 = por %p95, %p96
      %p99 = scmp.ne.s32.totalorder %s82, %s98
      %p100 = scmp.eq.s32.totalorder %s36, 0
      %p101 = por %p99, %p100
      %s102 = ssub.s32 %s37, %s49
      %p103 = scmp.eq.s32.totalorder %s102, 0
      %s105 = sadd.s32 %s104, 1
      %s106 = scalar_select %p103, %s104, %s105
      %p109 = pneg %p103
      %p110 = scmp.eq.s32.totalorder %s30, 1
      %p111 = por %p109, %p110
      %p112 = scmp.ne.s32.totalorder %s104, %s107
      %p113 = scmp.eq.s32.totalorder %s30, 0
      %p114 = por %p112, %p113
      %p115 = scmp.ne.s32.totalorder %s104, %s107
      %p116 = scmp.eq.s32.totalorder %s35, 1
      %p117 = por %p115, %p116
      %p118 = scmp.ne.s32.totalorder %s107, %s108
      %p119 = scmp.eq.s32.totalorder %s35, 0
      %p120 = por %p118, %p119
      %p121 = scmp.ne.s32.totalorder %s107, %s108
      %p122 = scmp.eq.s32.totalorder %s36, 1
      %p123 = por %p121, %p122
      %p125 = scmp.ne.s32.totalorder %s108, %s124
      %p126 = scmp.eq.s32.totalorder %s36, 0
      %p127 = por %p125, %p126
      %s129 = sadd.s32 %s128, 1
      %p132 = scmp.eq.s32.totalorder %s30, 1
      %p133 = scmp.ne.s32.totalorder %s128, %s130
      %p134 = scmp.eq.s32.totalorder %s30, 0
      %p135 = por %p133, %p134
      %p136 = scmp.ne.s32.totalorder %s128, %s130
      %p137 = scmp.eq.s32.totalorder %s35, 1
      %p138 = por %p136, %p137
      %p139 = scmp.ne.s32.totalorder %s130, %s131
      %p140 = scmp.eq.s32.totalorder %s35, 0
      %p141 = por %p139, %p140
      %p142 = scmp.ne.s32.totalorder %s130, %s131
      %p143 = scmp.eq.s32.totalorder %s36, 1
      %p144 = por %p142, %p143
      %p146 = scmp.ne.s32.totalorder %s131, %s145
      %p147 = scmp.eq.s32.totalorder %s36, 0
      %p148 = por %p146, %p147
      %s150 = sadd.s32 %s149, 1
      %p153 = scmp.eq.s32.totalorder %s30, 1
      %p154 = scmp.ne.s32.totalorder %s149, %s151
      %p155 = scmp.eq.s32.totalorder %s30, 0
      %p156 = por %p154, %p155
      %p157 = scmp.ne.s32.totalorder %s149, %s151
      %p158 = scmp.eq.s32.totalorder %s35, 1
      %p159 = por %p157, %p158
      %p160 = scmp.ne.s32.totalorder %s151, %s152
      %p161 = scmp.eq.s32.totalorder %s35, 0
      %p162 = por %p160, %p161
      %p163 = scmp.ne.s32.totalorder %s151, %s152
      %p164 = scmp.eq.s32.totalorder %s36, 1
      %p165 = por %p163, %p164
      %p167 = scmp.ne.s32.totalorder %s152, %s166
      %p168 = scmp.eq.s32.totalorder %s36, 0
      %p169 = por %p167, %p168
      %s171 = sadd.s32 %s170, 1
      %p174 = scmp.eq.s32.totalorder %s30, 1
      %p175 = scmp.ne.s32.totalorder %s170, %s172
      %p176 = scmp.eq.s32.totalorder %s30, 0
      %p177 = por %p175, %p176
      %p178 = scmp.ne.s32.totalorder %s170, %s172
      %p179 = scmp.eq.s32.totalorder %s35, 1
      %p180 = por %p178, %p179
      %p181 = scmp.ne.s32.totalorder %s172, %s173
      %p182 = scmp.eq.s32.totalorder %s35, 0
      %p183 = por %p181, %p182
      %p184 = scmp.ne.s32.totalorder %s172, %s173
      %p185 = scmp.eq.s32.totalorder %s36, 1
      %p186 = por %p184, %p185
      %p188 = scmp.ne.s32.totalorder %s173, %s187
      %p189 = scmp.eq.s32.totalorder %s36, 0
      %p190 = por %p188, %p189
      %s192 = sadd.s32 %s191, 1
      %p195 = scmp.eq.s32.totalorder %s30, 1
      %p196 = scmp.ne.s32.totalorder %s191, %s193
      %p197 = scmp.eq.s32.totalorder %s30, 0
      %p198 = por %p196, %p197
      %p199 = scmp.ne.s32.totalorder %s191, %s193
      %p200 = scmp.eq.s32.totalorder %s35, 1
      %p201 = por %p199, %p200
      %p202 = scmp.ne.s32.totalorder %s193, %s194
      %p203 = scmp.eq.s32.totalorder %s35, 0
      %p204 = por %p202, %p203
      %p205 = scmp.ne.s32.totalorder %s193, %s194
      %p206 = scmp.eq.s32.totalorder %s36, 1
      %p207 = por %p205, %p206
      %p209 = scmp.ne.s32.totalorder %s194, %s208
      %p210 = scmp.eq.s32.totalorder %s36, 0
      %p211 = por %p209, %p210
      %s213 = sadd.s32 %s212, 1
      %p216 = scmp.eq.s32.totalorder %s30, 1
      %p217 = scmp.ne.s32.totalorder %s212, %s214
      %p218 = scmp.eq.s32.totalorder %s30, 0
      %p219 = por %p217, %p218
      %p220 = scmp.ne.s32.totalorder %s212, %s214
      %p221 = scmp.eq.s32.totalorder %s35, 1
      %p222 = por %p220, %p221
      %p223 = scmp.ne.s32.totalorder %s214, %s215
      %p224 = scmp.eq.s32.totalorder %s35, 0
      %p225 = por %p223, %p224
      %p226 = scmp.ne.s32.totalorder %s214, %s215
      %p227 = scmp.eq.s32.totalorder %s36, 1
      %p228 = por %p226, %p227
      %p230 = scmp.ne.s32.totalorder %s215, %s229
      %p231 = scmp.eq.s32.totalorder %s36, 0
      %p232 = por %p230, %p231
      %s234 = sadd.s32 %s233, 1
      %p237 = scmp.eq.s32.totalorder %s30, 1
      %p238 = scmp.ne.s32.totalorder %s233, %s235
      %p239 = scmp.eq.s32.totalorder %s30, 0
      %p240 = por %p238, %p239
      %p241 = scmp.ne.s32.totalorder %s233, %s235
      %p242 = scmp.eq.s32.totalorder %s35, 1
      %p243 = por %p241, %p242
      %p244 = scmp.ne.s32.totalorder %s235, %s236
      %p245 = scmp.eq.s32.totalorder %s35, 0
      %p246 = por %p244, %p245
      %p247 = scmp.ne.s32.totalorder %s235, %s236
      %p248 = scmp.eq.s32.totalorder %s36, 1
      %p249 = por %p247, %p248
      %p251 = scmp.ne.s32.totalorder %s236, %s250
      %p252 = scmp.eq.s32.totalorder %s36, 0
      %p253 = por %p251, %p252
      %s255 = sadd.s32 %s254, 1
      %p258 = scmp.eq.s32.totalorder %s30, 1
      %p259 = scmp.ne.s32.totalorder %s254, %s256
      %p260 = scmp.eq.s32.totalorder %s30, 0
      %p261 = por %p259, %p260
      %p262 = scmp.ne.s32.totalorder %s254, %s256
      %p263 = scmp.eq.s32.totalorder %s35, 1
      %p264 = por %p262, %p263
      %p265 = scmp.ne.s32.totalorder %s256, %s257
      %p266 = scmp.eq.s32.totalorder %s35, 0
      %p267 = por %p265, %p266
      %p268 = scmp.ne.s32.totalorder %s256, %s257
      %p269 = scmp.eq.s32.totalorder %s36, 1
      %p270 = por %p268, %p269
      %p272 = scmp.ne.s32.totalorder %s257, %s271
      %p273 = scmp.eq.s32.totalorder %s36, 0
      %p274 = por %p272, %p273
      %s276 = sadd.s32 %s275, 1
      %p279 = scmp.eq.s32.totalorder %s30, 1
      %p280 = scmp.ne.s32.totalorder %s275, %s277
      %p281 = scmp.eq.s32.totalorder %s30, 0
      %p282 = por %p280, %p281
      %p283 = scmp.ne.s32.totalorder %s275, %s277
      %p284 = scmp.eq.s32.totalorder %s35, 1
      %p285 = por %p283, %p284
      %p286 = scmp.ne.s32.totalorder %s277, %s278
      %p287 = scmp.eq.s32.totalorder %s35, 0
      %p288 = por %p286, %p287
      %p289 = scmp.ne.s32.totalorder %s277, %s278
      %p290 = scmp.eq.s32.totalorder %s36, 1
      %p291 = por %p289, %p290
      %p293 = scmp.ne.s32.totalorder %s278, %s292
      %p294 = scmp.eq.s32.totalorder %s36, 0
      %p295 = por %p293, %p294
      %s297 = sadd.s32 %s296, 1
      %p300 = scmp.eq.s32.totalorder %s30, 1
      %p301 = scmp.ne.s32.totalorder %s296, %s298
      %p302 = scmp.eq.s32.totalorder %s30, 0
      %p303 = por %p301, %p302
      %p304 = scmp.ne.s32.totalorder %s296, %s298
      %p305 = scmp.eq.s32.totalorder %s35, 1
      %p306 = por %p304, %p305
      %p307 = scmp.ne.s32.totalorder %s298, %s299
      %p308 = scmp.eq.s32.totalorder %s35, 0
      %p309 = por %p307, %p308
      %p310 = scmp.ne.s32.totalorder %s298, %s299
      %p311 = scmp.eq.s32.totalorder %s36, 1
      %p312 = por %p310, %p311
      %p314 = scmp.ne.s32.totalorder %s299, %s313
      %p315 = scmp.eq.s32.totalorder %s36, 0
      %p316 = por %p314, %p315
      %s317 = ssub.s32 %s37, %s49
      %s318 = ssub.s32 %s38, %s45
      %s319 = sor.u32 %s317, %s318
      %p320 = scmp.eq.s32.totalorder %s319, 0
      %s322 = sadd.s32 %s321, 1
      %s323 = scalar_select %p320, %s321, %s322
      %p326 = pneg %p320
      %p327 = scmp.eq.s32.totalorder %s30, 1
      %p328 = por %p326, %p327
      %p329 = scmp.ne.s32.totalorder %s321, %s324
      %p330 = scmp.eq.s32.totalorder %s30, 0
      %p331 = por %p329, %p330
      %p332 = scmp.ne.s32.totalorder %s321, %s324
      %p333 = scmp.eq.s32.totalorder %s35, 1
      %p334 = por %p332, %p333
      %p335 = scmp.ne.s32.totalorder %s324, %s325
      %p336 = scmp.eq.s32.totalorder %s35, 0
      %p337 = por %p335, %p336
      %p338 = scmp.ne.s32.totalorder %s324, %s325
      %p339 = scmp.eq.s32.totalorder %s36, 1
      %p340 = por %p338, %p339
      %p342 = scmp.ne.s32.totalorder %s325, %s341
      %p343 = scmp.eq.s32.totalorder %s36, 0
      %p344 = por %p342, %p343
      %p345 = scmp.le.s32.totalorder 1, %s30
      %p346 = scmp.lt.s32.totalorder %s30, 3
      %p347 = pnand %p345, %p346
      %p348 = pneg %p347
      // Predicated region
      $region9: #{tpu_custom_call.1} parent=5 // pred_check
        _
      $region10: #{tpu_custom_call.1} parent=5 // pred_check_branch
        %350 = sbr.rel (%p347) target = $region12
      $region11: #{tpu_custom_call.1} parent=5 // pred_region
        %s351 = ssub.s32 %s30, 1
        // Predicated region
        $region13: #{tpu_custom_call.1} parent=11 // pred_check
          %p352 = pneg %p141
        $region14: #{tpu_custom_call.1} parent=11 // pred_check_branch
          %354 = sbr.rel (%p352) target = $region16
        $region15: #{tpu_custom_call.1} parent=11 // pred_region
          %s356 = ssub.s32 1024, 1024
          %357 = vsyncadd [#allocation10], %s356
          %s358 = sshll.u32 [#allocation9], 4
          %s359 = int_to_ptr.vmem [resolvable:$true] %s358
          %364 = dma.hbm_to_vmem [thread:$0]  %s3, 1024, %s359, [#allocation10], 64, 64, 4
        $region16: #{tpu_custom_call.1} parent=11 // pred_fallthru
          _
        // Predicated region
        $region17: #{tpu_custom_call.1} parent=11 // pred_check
          %p365 = pneg %p162
        $region18: #{tpu_custom_call.1} parent=11 // pred_check_branch
          %367 = sbr.rel (%p365) target = $region20
        $region19: #{tpu_custom_call.1} parent=11 // pred_region
          _
        $region20: #{tpu_custom_call.1} parent=11 // pred_fallthru
          _
        // Predicated region
        $region21: #{tpu_custom_call.1} parent=11 // pred_check
          %p368 = pneg %p183
        $region22: #{tpu_custom_call.1} parent=11 // pred_check_branch
          %370 = sbr.rel (%p368) target = $region24
        $region23: #{tpu_custom_call.1} parent=11 // pred_region
          %s372 = ssub.s32 2048, 2048
          %373 = vsyncadd [#allocation10], %s372
          %s374 = sshll.u32 [#allocation11], 4
          %s375 = int_to_ptr.vmem [resolvable:$true] %s374
          %380 = dma.hbm_to_vmem [thread:$0]  %s5, 2048, %s375, [#allocation10], 128, 128, 8
        $region24: #{tpu_custom_call.1} parent=11 // pred_fallthru
          _
        // Predicated region
        $region25: #{tpu_custom_call.1} parent=11 // pred_check
          %p381 = pneg %p204
        $region26: #{tpu_custom_call.1} parent=11 // pred_check_branch
          %383 = sbr.rel (%p381) target = $region28
        $region27: #{tpu_custom_call.1} parent=11 // pred_region
          _
        $region28: #{tpu_custom_call.1} parent=11 // pred_fallthru
          _
        // Predicated region
        $region29: #{tpu_custom_call.1} parent=11 // pred_check
          %p384 = pneg %p225
        $region30: #{tpu_custom_call.1} parent=11 // pred_check_branch
          %386 = sbr.rel (%p384) target = $region32
        $region31: #{tpu_custom_call.1} parent=11 // pred_region
          %s388 = ssub.s32 1024, 1024
          %389 = vsyncadd [#allocation13], %s388
          %s390 = sshll.u32 [#allocation12], 4
          %s391 = int_to_ptr.vmem [resolvable:$true] %s390
          %396 = dma.hbm_to_vmem [thread:$0]  %s7, 1024, %s391, [#allocation13], 64, 64, 4
        $region32: #{tpu_custom_call.1} parent=11 // pred_fallthru
          _
        // Predicated region
        $region33: #{tpu_custom_call.1} parent=11 // pred_check
          %p397 = pneg %p246
        $region34: #{tpu_custom_call.1} parent=11 // pred_check_branch
          %399 = sbr.rel (%p397) target = $region36
        $region35: #{tpu_custom_call.1} parent=11 // pred_region
          %s401 = ssub.s32 1024, 1024
          %402 = vsyncadd [#allocation13], %s401
          %s403 = sshll.u32 [#allocation14], 4
          %s404 = int_to_ptr.vmem [resolvable:$true] %s403
          %409 = dma.hbm_to_vmem [thread:$0]  %s8, 1024, %s404, [#allocation13], 64, 64, 4
        $region36: #{tpu_custom_call.1} parent=11 // pred_fallthru
          _
        // Predicated region
        $region37: #{tpu_custom_call.1} parent=11 // pred_check
          %p410 = pneg %p267
        $region38: #{tpu_custom_call.1} parent=11 // pred_check_branch
          %412 = sbr.rel (%p410) target = $region40
        $region39: #{tpu_custom_call.1} parent=11 // pred_region
          _
        $region40: #{tpu_custom_call.1} parent=11 // pred_fallthru
          _
        // Predicated region
        $region41: #{tpu_custom_call.1} parent=11 // pred_check
          %p413 = pneg %p288
        $region42: #{tpu_custom_call.1} parent=11 // pred_check_branch
          %415 = sbr.rel (%p413) target = $region44
        $region43: #{tpu_custom_call.1} parent=11 // pred_region
          %s417 = ssub.s32 1024, 1024
          %418 = vsyncadd [#allocation16], %s417
          %s419 = sshll.u32 [#allocation15], 4
          %s420 = int_to_ptr.vmem [resolvable:$true] %s419
          %425 = dma.hbm_to_vmem [thread:$0]  %s10, 1024, %s420, [#allocation16], 64, 64, 4
        $region44: #{tpu_custom_call.1} parent=11 // pred_fallthru
          _
        // Predicated region
        $region45: #{tpu_custom_call.1} parent=11 // pred_check
          %p426 = pneg %p309
        $region46: #{tpu_custom_call.1} parent=11 // pred_check_branch
          %428 = sbr.rel (%p426) target = $region48
        $region47: #{tpu_custom_call.1} parent=11 // pred_region
          _
        $region48: #{tpu_custom_call.1} parent=11 // pred_fallthru
          _
      $region12: #{tpu_custom_call.1} parent=5 // pred_fallthru
        _
      %p429 = scmp.lt.s32.totalorder %s30, 2
      // Predicated region
      $region49: #{tpu_custom_call.1} parent=5 // pred_check
        %p430 = pneg %p429
      $region50: #{tpu_custom_call.1} parent=5 // pred_check_branch
        %432 = sbr.rel (%p430) target = $region52
      $region51: #{tpu_custom_call.1} parent=5 // pred_region
        // Predicated region
        $region53: #{tpu_custom_call.1} parent=51 // pred_check
          %p433 = pneg %p62
        $region54: #{tpu_custom_call.1} parent=51 // pred_check_branch
          %435 = sbr.rel (%p433) target = $region56
        $region55: #{tpu_custom_call.1} parent=51 // pred_region
          %s436 = sand.u32 %s52, 1
          %s437 = scalar_lea.sflag [#allocation4], %s436
          %s438 = sand.u32 %s52, 1
          %s439 = smul.addr %s438, 64
          %s440 = scalar_lea.vmem [#allocation3], %s439
          %s442 = ssub.s32 1024, 1024
          %443 = vsyncadd %s437, %s442
          %s444 = smul.addr %s37, 16
          %s445 = smul.addr %s444, 64
          %s446 = scalar_lea.hbm %s0, %s445
          %s447 = sshll.u32 %s440, 4
          %s448 = int_to_ptr.vmem [resolvable:$true] %s447
          %453 = dma.hbm_to_vmem [thread:$0]  %s446, 1024, %s448, %s437, 64, 64, 4
        $region56: #{tpu_custom_call.1} parent=51 // pred_fallthru
          _
        // Predicated region
        $region57: #{tpu_custom_call.1} parent=51 // pred_check
          %p454 = pneg %p88
        $region58: #{tpu_custom_call.1} parent=51 // pred_check_branch
          %456 = sbr.rel (%p454) target = $region60
        $region59: #{tpu_custom_call.1} parent=51 // pred_region
          %s457 = sand.u32 %s30, 1
          %s458 = scalar_lea.sflag [#allocation7], %s457
          %s459 = sand.u32 %s78, 1
          %s460 = smul.addr %s459, 64
          %s461 = scalar_lea.vmem [#allocation6], %s460
          %s463 = ssub.s32 1024, 1024
          %464 = vsyncadd %s458, %s463
          %s465 = smul.addr %s37, 16
          %s466 = smul.addr %s465, 64
          %s467 = scalar_lea.hbm %s1, %s466
          %s468 = sshll.u32 %s461, 4
          %s469 = int_to_ptr.vmem [resolvable:$true] %s468
          %474 = dma.hbm_to_vmem [thread:$0]  %s467, 1024, %s469, %s458, 64, 64, 4
        $region60: #{tpu_custom_call.1} parent=51 // pred_fallthru
          _
        // Predicated region
        $region61: #{tpu_custom_call.1} parent=51 // pred_check
          %p475 = pneg %p114
        $region62: #{tpu_custom_call.1} parent=51 // pred_check_branch
          %477 = sbr.rel (%p475) target = $region64
        $region63: #{tpu_custom_call.1} parent=51 // pred_region
          %s478 = sand.u32 %s30, 1
          %s479 = scalar_lea.sflag [#allocation7], %s478
          %s480 = sand.u32 %s104, 1
          %s481 = smul.addr %s480, 128
          %s482 = scalar_lea.vmem [#allocation8], %s481
          %s484 = ssub.s32 2048, 2048
          %485 = vsyncadd %s479, %s484
          %s486 = smul.addr %s37, 16
          %s487 = smul.addr %s486, 128
          %s488 = scalar_lea.hbm %s2, %s487
          %s489 = sshll.u32 %s482, 4
          %s490 = int_to_ptr.vmem [resolvable:$true] %s489
          %495 = dma.hbm_to_vmem [thread:$0]  %s488, 2048, %s490, %s479, 128, 128, 8
        $region64: #{tpu_custom_call.1} parent=51 // pred_fallthru
          _
      $region52: #{tpu_custom_call.1} parent=5 // pred_fallthru
        _
      %p496 = scmp.le.s32.totalorder 1, %s30
      %p497 = scmp.lt.s32.totalorder %s30, 3
      %p498 = pnand %p496, %p497
      %p499 = pneg %p498
      // Predicated region
      $region65: #{tpu_custom_call.1} parent=5 // pred_check
        _
      $region66: #{tpu_custom_call.1} parent=5 // pred_check_branch
        %501 = sbr.rel (%p498) target = $region68
      $region67: #{tpu_custom_call.1} parent=5 // pred_region
        %s502 = ssub.s32 %s30, 1
        %s503 = sand.u32 %s55, 1
        %s504 = scalar_lea.sflag [#allocation4], %s503
        %s505 = sand.u32 %s55, 1
        %s506 = smul.addr %s505, 64
        %s507 = scalar_lea.vmem [#allocation3], %s506
        // Predicated region
        $region69: #{tpu_custom_call.1} parent=67 // pred_check
          %p508 = pneg %p68
        $region70: #{tpu_custom_call.1} parent=67 // pred_check_branch
          %510 = sbr.rel (%p508) target = $region72
        $region71: #{tpu_custom_call.1} parent=67 // pred_region
          %511 = dma.done %s504, 1024
        $region72: #{tpu_custom_call.1} parent=67 // pred_fallthru
          _
        %s512 = sand.u32 %s35, 1
        %s513 = scalar_lea.sflag [#allocation7], %s512
        %s514 = sand.u32 %s81, 1
        %s515 = smul.addr %s514, 64
        %s516 = scalar_lea.vmem [#allocation6], %s515
        // Predicated region
        $region73: #{tpu_custom_call.1} parent=67 // pred_check
          %p517 = pneg %p94
        $region74: #{tpu_custom_call.1} parent=67 // pred_check_branch
          %519 = sbr.rel (%p517) target = $region76
        $region75: #{tpu_custom_call.1} parent=67 // pred_region
          %520 = dma.done %s513, 1024
        $region76: #{tpu_custom_call.1} parent=67 // pred_fallthru
          _
        %s521 = sand.u32 %s35, 1
        %s522 = scalar_lea.sflag [#allocation7], %s521
        %s523 = sand.u32 %s107, 1
        %s524 = smul.addr %s523, 128
        %s525 = scalar_lea.vmem [#allocation8], %s524
        // Predicated region
        $region77: #{tpu_custom_call.1} parent=67 // pred_check
          %p526 = pneg %p120
        $region78: #{tpu_custom_call.1} parent=67 // pred_check_branch
          %528 = sbr.rel (%p526) target = $region80
        $region79: #{tpu_custom_call.1} parent=67 // pred_region
          %529 = dma.done %s522, 2048
        $region80: #{tpu_custom_call.1} parent=67 // pred_fallthru
          _
        // Predicated region
        $region81: #{tpu_custom_call.1} parent=67 // pred_check
          %p530 = pneg %p141
        $region82: #{tpu_custom_call.1} parent=67 // pred_check_branch
          %532 = sbr.rel (%p530) target = $region84
        $region83: #{tpu_custom_call.1} parent=67 // pred_region
          %533 = dma.done [#allocation10], 1024
        $region84: #{tpu_custom_call.1} parent=67 // pred_fallthru
          _
        // Predicated region
        $region85: #{tpu_custom_call.1} parent=67 // pred_check
          %p534 = pneg %p183
        $region86: #{tpu_custom_call.1} parent=67 // pred_check_branch
          %536 = sbr.rel (%p534) target = $region88
        $region87: #{tpu_custom_call.1} parent=67 // pred_region
          %537 = dma.done [#allocation10], 2048
        $region88: #{tpu_custom_call.1} parent=67 // pred_fallthru
          _
        // Predicated region
        $region89: #{tpu_custom_call.1} parent=67 // pred_check
          %p538 = pneg %p225
        $region90: #{tpu_custom_call.1} parent=67 // pred_check_branch
          %540 = sbr.rel (%p538) target = $region92
        $region91: #{tpu_custom_call.1} parent=67 // pred_region
          %541 = dma.done [#allocation13], 1024
        $region92: #{tpu_custom_call.1} parent=67 // pred_fallthru
          _
        // Predicated region
        $region93: #{tpu_custom_call.1} parent=67 // pred_check
          %p542 = pneg %p246
        $region94: #{tpu_custom_call.1} parent=67 // pred_check_branch
          %544 = sbr.rel (%p542) target = $region96
        $region95: #{tpu_custom_call.1} parent=67 // pred_region
          %545 = dma.done [#allocation13], 1024
        $region96: #{tpu_custom_call.1} parent=67 // pred_fallthru
          _
        // Predicated region
        $region97: #{tpu_custom_call.1} parent=67 // pred_check
          %p546 = pneg %p288
        $region98: #{tpu_custom_call.1} parent=67 // pred_check_branch
          %548 = sbr.rel (%p546) target = $region100
        $region99: #{tpu_custom_call.1} parent=67 // pred_region
          %549 = dma.done [#allocation16], 1024
        $region100: #{tpu_custom_call.1} parent=67 // pred_fallthru
          _
        %s550 = sand.u32 %s55, 1
        %s551 = scalar_lea.sflag [#allocation4], %s550
        %s552 = sand.u32 %s55, 1
        %s553 = smul.addr %s552, 64
        %s554 = scalar_lea.vmem [#allocation3], %s553
        %p555 = pneg %p68
        %p556 = pneg %p65
        %s557 = sand.u32 %s35, 1
        %s558 = scalar_lea.sflag [#allocation7], %s557
        %s559 = sand.u32 %s81, 1
        %s560 = smul.addr %s559, 64
        %s561 = scalar_lea.vmem [#allocation6], %s560
        %p562 = pneg %p94
        %p563 = pneg %p91
        %s564 = sand.u32 %s35, 1
        %s565 = scalar_lea.sflag [#allocation7], %s564
        %s566 = sand.u32 %s107, 1
        %s567 = smul.addr %s566, 128
        %s568 = scalar_lea.vmem [#allocation8], %s567
        %p569 = pneg %p120
        %p570 = pneg %p117
        %p571 = pneg %p141
        %p572 = pneg %p138
        %p573 = pneg %p162
        %p574 = pneg %p159
        %p575 = pneg %p183
        %p576 = pneg %p180
        %p577 = pneg %p204
        %p578 = pneg %p201
        %p579 = pneg %p225
        %p580 = pneg %p222
        %p581 = pneg %p246
        %p582 = pneg %p243
        %p583 = pneg %p267
        %p584 = pneg %p264
        %p585 = pneg %p288
        %p586 = pneg %p285
        %p587 = pneg %p309
        %p588 = pneg %p306
        %p589 = pneg %p337
        %p590 = pneg %p334
        %s591 = sand.u32 %s324, 1
        %s592 = scalar_lea.sflag [#allocation5], %s591
        %s593 = sand.u32 %s324, 1
        %s594 = smul.addr %s593, 128
        %s595 = scalar_lea.vmem [#allocation17], %s594
        %s596 = smul.u32 16, %s40
        %p598 = scmp.eq.s32.totalorder %s40, 0
        // Predicated region
        $region101: #{tpu_custom_call.1} parent=67 // pred_check
          %p599 = pneg %p598
        $region102: #{tpu_custom_call.1} parent=67 // pred_check_branch
          %601 = sbr.rel (%p599) target = $region104
        $region103: #{tpu_custom_call.1} parent=67 // pred_region
          %v602 = vld [vmem:[%s507] sm:$0xf]
          %v603 = vld [vmem:[%s507 + $0x4] sm:$0xf]
          %v604 = vld [vmem:[%s507 + $0x8] sm:$0xf]
          %v605 = vld [vmem:[%s507 + $0xc] sm:$0xf]
          %v606 = vld [vmem:[%s507 + $0x10] sm:$0xf]
          %v607 = vld [vmem:[%s507 + $0x14] sm:$0xf]
          %v608 = vld [vmem:[%s507 + $0x18] sm:$0xf]
          %v609 = vld [vmem:[%s507 + $0x1c] sm:$0xf]
          %v610 = vld [vmem:[%s507 + $0x20] sm:$0xf]
          %v611 = vld [vmem:[%s507 + $0x24] sm:$0xf]
          %v612 = vld [vmem:[%s507 + $0x28] sm:$0xf]
          %v613 = vld [vmem:[%s507 + $0x2c] sm:$0xf]
          %v614 = vld [vmem:[%s507 + $0x30] sm:$0xf]
          %v615 = vld [vmem:[%s507 + $0x34] sm:$0xf]
          %v616 = vld [vmem:[%s507 + $0x38] sm:$0xf]
          %v617 = vld [vmem:[%s507 + $0x3c] sm:$0xf]
          %v618 = vld [vmem:[%s516] sm:$0xf]
          %v619 = vld [vmem:[%s516 + $0x4] sm:$0xf]
          %v620 = vld [vmem:[%s516 + $0x8] sm:$0xf]
          %v621 = vld [vmem:[%s516 + $0xc] sm:$0xf]
          %v622 = vld [vmem:[%s516 + $0x10] sm:$0xf]
          %v623 = vld [vmem:[%s516 + $0x14] sm:$0xf]
          %v624 = vld [vmem:[%s516 + $0x18] sm:$0xf]
          %v625 = vld [vmem:[%s516 + $0x1c] sm:$0xf]
          %v626 = vld [vmem:[%s516 + $0x20] sm:$0xf]
          %v627 = vld [vmem:[%s516 + $0x24] sm:$0xf]
          %v628 = vld [vmem:[%s516 + $0x28] sm:$0xf]
          %v629 = vld [vmem:[%s516 + $0x2c] sm:$0xf]
          %v630 = vld [vmem:[%s516 + $0x30] sm:$0xf]
          %v631 = vld [vmem:[%s516 + $0x34] sm:$0xf]
          %v632 = vld [vmem:[%s516 + $0x38] sm:$0xf]
          %v633 = vld [vmem:[%s516 + $0x3c] sm:$0xf]
          %v634 = vld [vmem:[%s525] sm:$0xff]
          %v635 = vld [vmem:[%s525 + $0x8] sm:$0xff]
          %v636 = vld [vmem:[%s525 + $0x10] sm:$0xff]
          %v637 = vld [vmem:[%s525 + $0x18] sm:$0xff]
          %v638 = vld [vmem:[%s525 + $0x20] sm:$0xff]
          %v639 = vld [vmem:[%s525 + $0x28] sm:$0xff]
          %v640 = vld [vmem:[%s525 + $0x30] sm:$0xff]
          %v641 = vld [vmem:[%s525 + $0x38] sm:$0xff]
          %v642 = vld [vmem:[%s525 + $0x40] sm:$0xff]
          %v643 = vld [vmem:[%s525 + $0x48] sm:$0xff]
          %v644 = vld [vmem:[%s525 + $0x50] sm:$0xff]
          %v645 = vld [vmem:[%s525 + $0x58] sm:$0xff]
          %v646 = vld [vmem:[%s525 + $0x60] sm:$0xff]
          %v647 = vld [vmem:[%s525 + $0x68] sm:$0xff]
          %v648 = vld [vmem:[%s525 + $0x70] sm:$0xff]
          %v649 = vld [vmem:[%s525 + $0x78] sm:$0xff]
          %v650 = vld [vmem:[#allocation9] sm:$0xf]
          %v651 = vld [vmem:[#allocation9 + $0x4] sm:$0xf]
          %v652 = vld [vmem:[#allocation9 + $0x8] sm:$0xf]
          %v653 = vld [vmem:[#allocation9 + $0xc] sm:$0xf]
          %v654 = vld [vmem:[#allocation9 + $0x10] sm:$0xf]
          %v655 = vld [vmem:[#allocation9 + $0x14] sm:$0xf]
          %v656 = vld [vmem:[#allocation9 + $0x18] sm:$0xf]
          %v657 = vld [vmem:[#allocation9 + $0x1c] sm:$0xf]
          %v658 = vld [vmem:[#allocation9 + $0x20] sm:$0xf]
          %v659 = vld [vmem:[#allocation9 + $0x24] sm:$0xf]
          %v660 = vld [vmem:[#allocation9 + $0x28] sm:$0xf]
          %v661 = vld [vmem:[#allocation9 + $0x2c] sm:$0xf]
          %v662 = vld [vmem:[#allocation9 + $0x30] sm:$0xf]
          %v663 = vld [vmem:[#allocation9 + $0x34] sm:$0xf]
          %v664 = vld [vmem:[#allocation9 + $0x38] sm:$0xf]
          %v665 = vld [vmem:[#allocation9 + $0x3c] sm:$0xf]
          %v682 = vunpack.c.l.b16 %v618
          %v683 = vunpack.c.l.b16 %v619
          %v684 = vunpack.c.l.b16 %v620
          %v685 = vunpack.c.l.b16 %v621
          %v686 = vunpack.c.l.b16 %v622
          %v687 = vunpack.c.l.b16 %v623
          %v688 = vunpack.c.l.b16 %v624
          %v689 = vunpack.c.l.b16 %v625
          %v690 = vunpack.c.l.b16 %v626
          %v691 = vunpack.c.l.b16 %v627
          %v692 = vunpack.c.l.b16 %v628
          %v693 = vunpack.c.l.b16 %v629
          %v694 = vunpack.c.l.b16 %v630
          %v695 = vunpack.c.l.b16 %v631
          %v696 = vunpack.c.l.b16 %v632
          %v697 = vunpack.c.l.b16 %v633
          %v698 = vpack.c.b16 %v683, %v682
          %v699 = vpack.c.b16 %v685, %v684
          %v700 = vpack.c.b16 %v687, %v686
          %v701 = vpack.c.b16 %v689, %v688
          %v702 = vpack.c.b16 %v691, %v690
          %v703 = vpack.c.b16 %v693, %v692
          %v704 = vpack.c.b16 %v695, %v694
          %v705 = vpack.c.b16 %v697, %v696
          %v730 = vunpack.c.l.b16 %v650
          %v731 = vunpack.c.l.b16 %v651
          %v732 = vunpack.c.l.b16 %v652
          %v733 = vunpack.c.l.b16 %v653
          %v734 = vunpack.c.l.b16 %v654
          %v735 = vunpack.c.l.b16 %v655
          %v736 = vunpack.c.l.b16 %v656
          %v737 = vunpack.c.l.b16 %v657
          %v738 = vunpack.c.l.b16 %v658
          %v739 = vunpack.c.l.b16 %v659
          %v740 = vunpack.c.l.b16 %v660
          %v741 = vunpack.c.l.b16 %v661
          %v742 = vunpack.c.l.b16 %v662
          %v743 = vunpack.c.l.b16 %v663
          %v744 = vunpack.c.l.b16 %v664
          %v745 = vunpack.c.l.b16 %v665
          %v746 = vpack.c.b16 %v731, %v730
          %v747 = vpack.c.b16 %v733, %v732
          %v748 = vpack.c.b16 %v735, %v734
          %v749 = vpack.c.b16 %v737, %v736
          %v750 = vpack.c.b16 %v739, %v738
          %v751 = vpack.c.b16 %v741, %v740
          %v752 = vpack.c.b16 %v743, %v742
          %v753 = vpack.c.b16 %v745, %v744
          %762 = vmatprep.subr.bf16.mxu0 0
          %763 = vmatpush1.bf16.msra.mxu0 %v753
          %764 = vmatprep.subr.bf16.mxu0 0
          %765 = vmatpush1.bf16.msra.mxu0 %v752
          %766 = vmatprep.subr.bf16.mxu0 0
          %767 = vmatpush1.bf16.msra.mxu0 %v751
          %768 = vmatprep.subr.bf16.mxu0 0
          %769 = vmatpush1.bf16.msra.mxu0 %v750
          %770 = vmatprep.subr.bf16.mxu0 0
          %771 = vmatpush1.bf16.msra.mxu0 %v749
          %772 = vmatprep.subr.bf16.mxu0 0
          %773 = vmatpush1.bf16.msra.mxu0 %v748
          %774 = vmatprep.subr.bf16.mxu0 0
          %775 = vmatpush1.bf16.msra.mxu0 %v747
          %776 = vmatprep.subr.bf16.mxu0 0
          %777 = vmatpush1.bf16.msra.mxu0 %v746
          %778 = vmatprep.subr.bf16.mxu0 0
          %779 = vmatpush2.bf16.msra.mxu0 0
          %780 = vmatprep.subr.bf16.mxu0 0
          %781 = vmatpush2.bf16.msra.mxu0 0
          %782 = vmatprep.subr.bf16.mxu0 0
          %783 = vmatpush2.bf16.msra.mxu0 0
          %784 = vmatprep.subr.bf16.mxu0 0
          %785 = vmatpush2.bf16.msra.mxu0 0
          %786 = vmatprep.subr.bf16.mxu0 0
          %787 = vmatpush2.bf16.msra.mxu0 0
          %788 = vmatprep.subr.bf16.mxu0 0
          %789 = vmatpush2.bf16.msra.mxu0 0
          %790 = vmatprep.subr.bf16.mxu0 0
          %791 = vmatpush2.bf16.msra.mxu0 0
          %792 = vmatprep.subr.bf16.mxu0 0
          %793 = vmatpush2.bf16.msra.mxu0 0
          %794 = vmatprep.mubr.bf16.mxu0 0
          %795 = vmatmul.mubr.bf16.gmra.mxu0 %v698
          %v796 = vpop.f32.mrf.mxu0
          %v797 = vadd.f32 0.0, %v796
          %v798 = vpop.f32.mrf.mxu0
          %v799 = vpop.f32.mrf.mxu0
          %v800 = vadd.f32 0.0, %v799
          %v801 = vpop.f32.mrf.mxu0
          %802 = vmatprep.mubr.bf16.mxu0 0
          %803 = vmatmul.mubr.bf16.gmra.mxu0 %v699
          %v804 = vpop.f32.mrf.mxu0
          %v805 = vadd.f32 0.0, %v804
          %v806 = vpop.f32.mrf.mxu0
          %v807 = vpop.f32.mrf.mxu0
          %v808 = vadd.f32 0.0, %v807
          %v809 = vpop.f32.mrf.mxu0
          %810 = vmatprep.mubr.bf16.mxu0 0
          %811 = vmatmul.mubr.bf16.gmra.mxu0 %v700
          %v812 = vpop.f32.mrf.mxu0
          %v813 = vadd.f32 0.0, %v812
          %v814 = vpop.f32.mrf.mxu0
          %v815 = vpop.f32.mrf.mxu0
          %v816 = vadd.f32 0.0, %v815
          %v817 = vpop.f32.mrf.mxu0
          %818 = vmatprep.mubr.bf16.mxu0 0
          %819 = vmatmul.mubr.bf16.gmra.mxu0 %v701
          %v820 = vpop.f32.mrf.mxu0
          %v821 = vadd.f32 0.0, %v820
          %v822 = vpop.f32.mrf.mxu0
          %v823 = vpop.f32.mrf.mxu0
          %v824 = vadd.f32 0.0, %v823
          %v825 = vpop.f32.mrf.mxu0
          %826 = vmatprep.mubr.bf16.mxu0 0
          %827 = vmatmul.mubr.bf16.gmra.mxu0 %v702
          %v828 = vpop.f32.mrf.mxu0
          %v829 = vadd.f32 0.0, %v828
          %v830 = vpop.f32.mrf.mxu0
          %v831 = vpop.f32.mrf.mxu0
          %v832 = vadd.f32 0.0, %v831
          %v833 = vpop.f32.mrf.mxu0
          %834 = vmatprep.mubr.bf16.mxu0 0
          %835 = vmatmul.mubr.bf16.gmra.mxu0 %v703
          %v836 = vpop.f32.mrf.mxu0
          %v837 = vadd.f32 0.0, %v836
          %v838 = vpop.f32.mrf.mxu0
          %v839 = vpop.f32.mrf.mxu0
          %v840 = vadd.f32 0.0, %v839
          %v841 = vpop.f32.mrf.mxu0
          %842 = vmatprep.mubr.bf16.mxu0 0
          %843 = vmatmul.mubr.bf16.gmra.mxu0 %v704
          %v844 = vpop.f32.mrf.mxu0
          %v845 = vadd.f32 0.0, %v844
          %v846 = vpop.f32.mrf.mxu0
          %v847 = vpop.f32.mrf.mxu0
          %v848 = vadd.f32 0.0, %v847
          %v849 = vpop.f32.mrf.mxu0
          %850 = vmatprep.mubr.bf16.mxu0 0
          %851 = vmatmul.mubr.bf16.gmra.mxu0 %v705
          %v852 = vpop.f32.mrf.mxu0
          %v853 = vadd.f32 0.0, %v852
          %v854 = vpop.f32.mrf.mxu0
          %v855 = vpop.f32.mrf.mxu0
          %v856 = vadd.f32 0.0, %v855
          %v857 = vpop.f32.mrf.mxu0
          %858 = vdwg.mxu0
          %v859 = vpack.c.bf16 %v800, %v797
          %v860 = vpack.c.bf16 %v808, %v805
          %v861 = vpack.c.bf16 %v816, %v813
          %v862 = vpack.c.bf16 %v824, %v821
          %v863 = vpack.c.bf16 %v832, %v829
          %v864 = vpack.c.bf16 %v840, %v837
          %v865 = vpack.c.bf16 %v848, %v845
          %v866 = vpack.c.bf16 %v856, %v853
          %v867 = vld [vmem:[%s4] sm:$0x1]
          %v869 = vlaneseq
          %v870 = vshrl.u32 %v869, 7
          %v871 = vsub.s32 0, %v870
          %v872 = vrot.slane %v867, %v871
          %v890 = vunpack.c.l.b16 %v602
          %v891 = vunpack.c.l.b16 %v603
          %v892 = vunpack.c.l.b16 %v604
          %v893 = vunpack.c.l.b16 %v605
          %v894 = vunpack.c.l.b16 %v606
          %v895 = vunpack.c.l.b16 %v607
          %v896 = vunpack.c.l.b16 %v608
          %v897 = vunpack.c.l.b16 %v609
          %v898 = vunpack.c.l.b16 %v610
          %v899 = vunpack.c.l.b16 %v611
          %v900 = vunpack.c.l.b16 %v612
          %v901 = vunpack.c.l.b16 %v613
          %v902 = vunpack.c.l.b16 %v614
          %v903 = vunpack.c.l.b16 %v615
          %v904 = vunpack.c.l.b16 %v616
          %v905 = vunpack.c.l.b16 %v617
          %v906 = vpack.c.b16 %v891, %v890
          %v907 = vpack.c.b16 %v893, %v892
          %v908 = vpack.c.b16 %v895, %v894
          %v909 = vpack.c.b16 %v897, %v896
          %v910 = vpack.c.b16 %v899, %v898
          %v911 = vpack.c.b16 %v901, %v900
          %v912 = vpack.c.b16 %v903, %v902
          %v913 = vpack.c.b16 %v905, %v904
          %922 = vmatprep.subr.bf16.mxu0 0
          %923 = vmatpush1.bf16.msra.mxu0 %v866
          %924 = vmatprep.subr.bf16.mxu0 0
          %925 = vmatpush1.bf16.msra.mxu0 %v865
          %926 = vmatprep.subr.bf16.mxu0 0
          %927 = vmatpush1.bf16.msra.mxu0 %v864
          %928 = vmatprep.subr.bf16.mxu0 0
          %929 = vmatpush1.bf16.msra.mxu0 %v863
          %930 = vmatprep.subr.bf16.mxu0 0
          %931 = vmatpush1.bf16.msra.mxu0 %v862
          %932 = vmatprep.subr.bf16.mxu0 0
          %933 = vmatpush1.bf16.msra.mxu0 %v861
          %934 = vmatprep.subr.bf16.mxu0 0
          %935 = vmatpush1.bf16.msra.mxu0 %v860
          %936 = vmatprep.subr.bf16.mxu0 0
          %937 = vmatpush1.bf16.msra.mxu0 %v859
          %938 = vmatprep.subr.bf16.mxu0 0
          %939 = vmatpush2.bf16.msra.mxu0 0
          %940 = vmatprep.subr.bf16.mxu0 0
          %941 = vmatpush2.bf16.msra.mxu0 0
          %942 = vmatprep.subr.bf16.mxu0 0
          %943 = vmatpush2.bf16.msra.mxu0 0
          %944 = vmatprep.subr.bf16.mxu0 0
          %945 = vmatpush2.bf16.msra.mxu0 0
          %946 = vmatprep.subr.bf16.mxu0 0
          %947 = vmatpush2.bf16.msra.mxu0 0
          %948 = vmatprep.subr.bf16.mxu0 0
          %949 = vmatpush2.bf16.msra.mxu0 0
          %950 = vmatprep.subr.bf16.mxu0 0
          %951 = vmatpush2.bf16.msra.mxu0 0
          %952 = vmatprep.subr.bf16.mxu0 0
          %953 = vmatpush2.bf16.msra.mxu0 0
          %954 = vmatprep.mubr.bf16.mxu0 0
          %955 = vmatmul.mubr.bf16.gmra.mxu0 %v906
          %v956 = vpop.f32.mrf.mxu0
          %v957 = vadd.f32 %v872, %v956
          %v958 = vpop.f32.mrf.mxu0
          %v959 = vpop.f32.mrf.mxu0
          %v960 = vadd.f32 %v872, %v959
          %v961 = vpop.f32.mrf.mxu0
          %962 = vmatprep.mubr.bf16.mxu0 0
          %963 = vmatmul.mubr.bf16.gmra.mxu0 %v907
          %v964 = vpop.f32.mrf.mxu0
          %v965 = vadd.f32 %v872, %v964
          %v966 = vpop.f32.mrf.mxu0
          %v967 = vpop.f32.mrf.mxu0
          %v968 = vadd.f32 %v872, %v967
          %v969 = vpop.f32.mrf.mxu0
          %970 = vmatprep.mubr.bf16.mxu0 0
          %971 = vmatmul.mubr.bf16.gmra.mxu0 %v908
          %v972 = vpop.f32.mrf.mxu0
          %v973 = vadd.f32 %v872, %v972
          %v974 = vpop.f32.mrf.mxu0
          %v975 = vpop.f32.mrf.mxu0
          %v976 = vadd.f32 %v872, %v975
          %v977 = vpop.f32.mrf.mxu0
          %978 = vmatprep.mubr.bf16.mxu0 0
          %979 = vmatmul.mubr.bf16.gmra.mxu0 %v909
          %v980 = vpop.f32.mrf.mxu0
          %v981 = vadd.f32 %v872, %v980
          %v982 = vpop.f32.mrf.mxu0
          %v983 = vpop.f32.mrf.mxu0
          %v984 = vadd.f32 %v872, %v983
          %v985 = vpop.f32.mrf.mxu0
          %986 = vmatprep.mubr.bf16.mxu0 0
          %987 = vmatmul.mubr.bf16.gmra.mxu0 %v910
          %v988 = vpop.f32.mrf.mxu0
          %v989 = vadd.f32 %v872, %v988
          %v990 = vpop.f32.mrf.mxu0
          %v991 = vpop.f32.mrf.mxu0
          %v992 = vadd.f32 %v872, %v991
          %v993 = vpop.f32.mrf.mxu0
          %994 = vmatprep.mubr.bf16.mxu0 0
          %995 = vmatmul.mubr.bf16.gmra.mxu0 %v911
          %v996 = vpop.f32.mrf.mxu0
          %v997 = vadd.f32 %v872, %v996
          %v998 = vpop.f32.mrf.mxu0
          %v999 = vpop.f32.mrf.mxu0
          %v1000 = vadd.f32 %v872, %v999
          %v1001 = vpop.f32.mrf.mxu0
          %1002 = vmatprep.mubr.bf16.mxu0 0
          %1003 = vmatmul.mubr.bf16.gmra.mxu0 %v912
          %v1004 = vpop.f32.mrf.mxu0
          %v1005 = vadd.f32 %v872, %v1004
          %v1006 = vpop.f32.mrf.mxu0
          %v1007 = vpop.f32.mrf.mxu0
          %v1008 = vadd.f32 %v872, %v1007
          %v1009 = vpop.f32.mrf.mxu0
          %1010 = vmatprep.mubr.bf16.mxu0 0
          %1011 = vmatmul.mubr.bf16.gmra.mxu0 %v913
          %v1012 = vpop.f32.mrf.mxu0
          %v1013 = vadd.f32 %v872, %v1012
          %v1014 = vpop.f32.mrf.mxu0
          %v1015 = vpop.f32.mrf.mxu0
          %v1016 = vadd.f32 %v872, %v1015
          %v1017 = vpop.f32.mrf.mxu0
          %1018 = vdwg.mxu0
          %v1019 = vmax.f32 %v957, 0.0
          %v1020 = vmax.f32 %v960, 0.0
          %v1021 = vmax.f32 %v965, 0.0
          %v1022 = vmax.f32 %v968, 0.0
          %v1023 = vmax.f32 %v973, 0.0
          %v1024 = vmax.f32 %v976, 0.0
          %v1025 = vmax.f32 %v981, 0.0
          %v1026 = vmax.f32 %v984, 0.0
          %v1027 = vmax.f32 %v989, 0.0
          %v1028 = vmax.f32 %v992, 0.0
          %v1029 = vmax.f32 %v997, 0.0
          %v1030 = vmax.f32 %v1000, 0.0
          %v1031 = vmax.f32 %v1005, 0.0
          %v1032 = vmax.f32 %v1008, 0.0
          %v1033 = vmax.f32 %v1013, 0.0
          %v1034 = vmax.f32 %v1016, 0.0
          %v1035 = vld [vmem:[#allocation11] sm:$0xff]
          %v1036 = vld [vmem:[#allocation11 + $0x8] sm:$0xff]
          %v1037 = vld [vmem:[#allocation11 + $0x10] sm:$0xff]
          %v1038 = vld [vmem:[#allocation11 + $0x18] sm:$0xff]
          %v1039 = vld [vmem:[#allocation11 + $0x20] sm:$0xff]
          %v1040 = vld [vmem:[#allocation11 + $0x28] sm:$0xff]
          %v1041 = vld [vmem:[#allocation11 + $0x30] sm:$0xff]
          %v1042 = vld [vmem:[#allocation11 + $0x38] sm:$0xff]
          %v1043 = vld [vmem:[#allocation11 + $0x40] sm:$0xff]
          %v1044 = vld [vmem:[#allocation11 + $0x48] sm:$0xff]
          %v1045 = vld [vmem:[#allocation11 + $0x50] sm:$0xff]
          %v1046 = vld [vmem:[#allocation11 + $0x58] sm:$0xff]
          %v1047 = vld [vmem:[#allocation11 + $0x60] sm:$0xff]
          %v1048 = vld [vmem:[#allocation11 + $0x68] sm:$0xff]
          %v1049 = vld [vmem:[#allocation11 + $0x70] sm:$0xff]
          %v1050 = vld [vmem:[#allocation11 + $0x78] sm:$0xff]
          %v1051 = vpack.c.bf16 %v1020, %v1019
          %v1052 = vpack.c.bf16 %v1022, %v1021
          %v1053 = vpack.c.bf16 %v1024, %v1023
          %v1054 = vpack.c.bf16 %v1026, %v1025
          %v1055 = vpack.c.bf16 %v1028, %v1027
          %v1056 = vpack.c.bf16 %v1030, %v1029
          %v1057 = vpack.c.bf16 %v1032, %v1031
          %v1058 = vpack.c.bf16 %v1034, %v1033
          %v1075 = vunpack.c.l.b16 %v1035
          %v1076 = vunpack.c.h.b16 %v1035
          %v1077 = vunpack.c.l.b16 %v1036
          %v1078 = vunpack.c.h.b16 %v1036
          %v1079 = vunpack.c.l.b16 %v1037
          %v1080 = vunpack.c.h.b16 %v1037
          %v1081 = vunpack.c.l.b16 %v1038
          %v1082 = vunpack.c.h.b16 %v1038
          %v1083 = vunpack.c.l.b16 %v1039
          %v1084 = vunpack.c.h.b16 %v1039
          %v1085 = vunpack.c.l.b16 %v1040
          %v1086 = vunpack.c.h.b16 %v1040
          %v1087 = vunpack.c.l.b16 %v1041
          %v1088 = vunpack.c.h.b16 %v1041
          %v1089 = vunpack.c.l.b16 %v1042
          %v1090 = vunpack.c.h.b16 %v1042
          %v1091 = vunpack.c.l.b16 %v1043
          %v1092 = vunpack.c.h.b16 %v1043
          %v1093 = vunpack.c.l.b16 %v1044
          %v1094 = vunpack.c.h.b16 %v1044
          %v1095 = vunpack.c.l.b16 %v1045
          %v1096 = vunpack.c.h.b16 %v1045
          %v1097 = vunpack.c.l.b16 %v1046
          %v1098 = vunpack.c.h.b16 %v1046
          %v1099 = vunpack.c.l.b16 %v1047
          %v1100 = vunpack.c.h.b16 %v1047
          %v1101 = vunpack.c.l.b16 %v1048
          %v1102 = vunpack.c.h.b16 %v1048
          %v1103 = vunpack.c.l.b16 %v1049
          %v1104 = vunpack.c.h.b16 %v1049
          %v1105 = vunpack.c.l.b16 %v1050
          %v1106 = vunpack.c.h.b16 %v1050
          %v1107 = vpack.c.b16 %v1077, %v1075
          %v1108 = vpack.c.b16 %v1078, %v1076
          %v1109 = vpack.c.b16 %v1081, %v1079
          %v1110 = vpack.c.b16 %v1082, %v1080
          %v1111 = vpack.c.b16 %v1085, %v1083
          %v1112 = vpack.c.b16 %v1086, %v1084
          %v1113 = vpack.c.b16 %v1089, %v1087
          %v1114 = vpack.c.b16 %v1090, %v1088
          %v1115 = vpack.c.b16 %v1093, %v1091
          %v1116 = vpack.c.b16 %v1094, %v1092
          %v1117 = vpack.c.b16 %v1097, %v1095
          %v1118 = vpack.c.b16 %v1098, %v1096
          %v1119 = vpack.c.b16 %v1101, %v1099
          %v1120 = vpack.c.b16 %v1102, %v1100
          %v1121 = vpack.c.b16 %v1105, %v1103
          %v1122 = vpack.c.b16 %v1106, %v1104
          %1139 = vmatprep.subr.bf16.mxu0 %v1122
          %1140 = vmatpush1.bf16.msra.mxu0 %v1121
          %1141 = vmatprep.subr.bf16.mxu0 %v1120
          %1142 = vmatpush1.bf16.msra.mxu0 %v1119
          %1143 = vmatprep.subr.bf16.mxu0 %v1118
          %1144 = vmatpush1.bf16.msra.mxu0 %v1117
          %1145 = vmatprep.subr.bf16.mxu0 %v1116
          %1146 = vmatpush1.bf16.msra.mxu0 %v1115
          %1147 = vmatprep.subr.bf16.mxu0 %v1114
          %1148 = vmatpush1.bf16.msra.mxu0 %v1113
          %1149 = vmatprep.subr.bf16.mxu0 %v1112
          %1150 = vmatpush1.bf16.msra.mxu0 %v1111
          %1151 = vmatprep.subr.bf16.mxu0 %v1110
          %1152 = vmatpush1.bf16.msra.mxu0 %v1109
          %1153 = vmatprep.subr.bf16.mxu0 %v1108
          %1154 = vmatpush1.bf16.msra.mxu0 %v1107
          %1155 = vmatprep.subr.bf16.mxu0 0
          %1156 = vmatpush2.bf16.msra.mxu0 0
          %1157 = vmatprep.subr.bf16.mxu0 0
          %1158 = vmatpush2.bf16.msra.mxu0 0
          %1159 = vmatprep.subr.bf16.mxu0 0
          %1160 = vmatpush2.bf16.msra.mxu0 0
          %1161 = vmatprep.subr.bf16.mxu0 0
          %1162 = vmatpush2.bf16.msra.mxu0 0
          %1163 = vmatprep.subr.bf16.mxu0 0
          %1164 = vmatpush2.bf16.msra.mxu0 0
          %1165 = vmatprep.subr.bf16.mxu0 0
          %1166 = vmatpush2.bf16.msra.mxu0 0
          %1167 = vmatprep.subr.bf16.mxu0 0
          %1168 = vmatpush2.bf16.msra.mxu0 0
          %1169 = vmatprep.subr.bf16.mxu0 0
          %1170 = vmatpush2.bf16.msra.mxu0 0
          %1171 = vmatprep.mubr.bf16.mxu0 0
          %1172 = vmatmul.mubr.bf16.gmra.mxu0 %v1051
          %v1173 = vpop.f32.mrf.mxu0
          %v1174 = vadd.f32 0.0, %v1173
          %v1175 = vpop.f32.mrf.mxu0
          %v1176 = vadd.f32 0.0, %v1175
          %v1177 = vpop.f32.mrf.mxu0
          %v1178 = vadd.f32 0.0, %v1177
          %v1179 = vpop.f32.mrf.mxu0
          %v1180 = vadd.f32 0.0, %v1179
          %1181 = vmatprep.mubr.bf16.mxu0 0
          %1182 = vmatmul.mubr.bf16.gmra.mxu0 %v1052
          %v1183 = vpop.f32.mrf.mxu0
          %v1184 = vadd.f32 0.0, %v1183
          %v1185 = vpop.f32.mrf.mxu0
          %v1186 = vadd.f32 0.0, %v1185
          %v1187 = vpop.f32.mrf.mxu0
          %v1188 = vadd.f32 0.0, %v1187
          %v1189 = vpop.f32.mrf.mxu0
          %v1190 = vadd.f32 0.0, %v1189
          %1191 = vmatprep.mubr.bf16.mxu0 0
          %1192 = vmatmul.mubr.bf16.gmra.mxu0 %v1053
          %v1193 = vpop.f32.mrf.mxu0
          %v1194 = vadd.f32 0.0, %v1193
          %v1195 = vpop.f32.mrf.mxu0
          %v1196 = vadd.f32 0.0, %v1195
          %v1197 = vpop.f32.mrf.mxu0
          %v1198 = vadd.f32 0.0, %v1197
          %v1199 = vpop.f32.mrf.mxu0
          %v1200 = vadd.f32 0.0, %v1199
          %1201 = vmatprep.mubr.bf16.mxu0 0
          %1202 = vmatmul.mubr.bf16.gmra.mxu0 %v1054
          %v1203 = vpop.f32.mrf.mxu0
          %v1204 = vadd.f32 0.0, %v1203
          %v1205 = vpop.f32.mrf.mxu0
          %v1206 = vadd.f32 0.0, %v1205
          %v1207 = vpop.f32.mrf.mxu0
          %v1208 = vadd.f32 0.0, %v1207
          %v1209 = vpop.f32.mrf.mxu0
          %v1210 = vadd.f32 0.0, %v1209
          %1211 = vmatprep.mubr.bf16.mxu0 0
          %1212 = vmatmul.mubr.bf16.gmra.mxu0 %v1055
          %v1213 = vpop.f32.mrf.mxu0
          %v1214 = vadd.f32 0.0, %v1213
          %v1215 = vpop.f32.mrf.mxu0
          %v1216 = vadd.f32 0.0, %v1215
          %v1217 = vpop.f32.mrf.mxu0
          %v1218 = vadd.f32 0.0, %v1217
          %v1219 = vpop.f32.mrf.mxu0
          %v1220 = vadd.f32 0.0, %v1219
          %1221 = vmatprep.mubr.bf16.mxu0 0
          %1222 = vmatmul.mubr.bf16.gmra.mxu0 %v1056
          %v1223 = vpop.f32.mrf.mxu0
          %v1224 = vadd.f32 0.0, %v1223
          %v1225 = vpop.f32.mrf.mxu0
          %v1226 = vadd.f32 0.0, %v1225
          %v1227 = vpop.f32.mrf.mxu0
          %v1228 = vadd.f32 0.0, %v1227
          %v1229 = vpop.f32.mrf.mxu0
          %v1230 = vadd.f32 0.0, %v1229
          %1231 = vmatprep.mubr.bf16.mxu0 0
          %1232 = vmatmul.mubr.bf16.gmra.mxu0 %v1057
          %v1233 = vpop.f32.mrf.mxu0
          %v1234 = vadd.f32 0.0, %v1233
          %v1235 = vpop.f32.mrf.mxu0
          %v1236 = vadd.f32 0.0, %v1235
          %v1237 = vpop.f32.mrf.mxu0
          %v1238 = vadd.f32 0.0, %v1237
          %v1239 = vpop.f32.mrf.mxu0
          %v1240 = vadd.f32 0.0, %v1239
          %1241 = vmatprep.mubr.bf16.mxu0 0
          %1242 = vmatmul.mubr.bf16.gmra.mxu0 %v1058
          %v1243 = vpop.f32.mrf.mxu0
          %v1244 = vadd.f32 0.0, %v1243
          %v1245 = vpop.f32.mrf.mxu0
          %v1246 = vadd.f32 0.0, %v1245
          %v1247 = vpop.f32.mrf.mxu0
          %v1248 = vadd.f32 0.0, %v1247
          %v1249 = vpop.f32.mrf.mxu0
          %v1250 = vadd.f32 0.0, %v1249
          %1251 = vdwg.mxu0
          %v1252 = vpack.c.bf16 %v1178, %v1174
          %v1253 = vpack.c.bf16 %v1180, %v1176
          %v1254 = vpack.c.bf16 %v1188, %v1184
          %v1255 = vpack.c.bf16 %v1190, %v1186
          %v1256 = vpack.c.bf16 %v1198, %v1194
          %v1257 = vpack.c.bf16 %v1200, %v1196
          %v1258 = vpack.c.bf16 %v1208, %v1204
          %v1259 = vpack.c.bf16 %v1210, %v1206
          %v1260 = vpack.c.bf16 %v1218, %v1214
          %v1261 = vpack.c.bf16 %v1220, %v1216
          %v1262 = vpack.c.bf16 %v1228, %v1224
          %v1263 = vpack.c.bf16 %v1230, %v1226
          %v1264 = vpack.c.bf16 %v1238, %v1234
          %v1265 = vpack.c.bf16 %v1240, %v1236
          %v1266 = vpack.c.bf16 %v1248, %v1244
          %v1267 = vpack.c.bf16 %v1250, %v1246
          %v1268 = vld [vmem:[%s6] sm:$0x3]
          %v1270 = vlaneseq
          %v1271 = vshrl.u32 %v1270, 7
          %v1272 = vsub.s32 0, %v1271
          %v1273 = vrot.slane %v1268, %v1272
          %v1274 = vlaneseq
          %v1275 = vshrl.u32 %v1274, 7
          %v1276 = vsub.s32 1, %v1275
          %v1277 = vrot.slane %v1268, %v1276
          %1280 = vmatprep.subr.bf16.mxu0 %v1267
          %1281 = vmatpush1.bf16.msra.mxu0 %v1266
          %1282 = vmatprep.subr.bf16.mxu0 %v1265
          %1283 = vmatpush1.bf16.msra.mxu0 %v1264
          %1284 = vmatprep.subr.bf16.mxu0 %v1263
          %1285 = vmatpush1.bf16.msra.mxu0 %v1262
          %1286 = vmatprep.subr.bf16.mxu0 %v1261
          %1287 = vmatpush1.bf16.msra.mxu0 %v1260
          %1288 = vmatprep.subr.bf16.mxu0 %v1259
          %1289 = vmatpush1.bf16.msra.mxu0 %v1258
          %1290 = vmatprep.subr.bf16.mxu0 %v1257
          %1291 = vmatpush1.bf16.msra.mxu0 %v1256
          %1292 = vmatprep.subr.bf16.mxu0 %v1255
          %1293 = vmatpush1.bf16.msra.mxu0 %v1254
          %1294 = vmatprep.subr.bf16.mxu0 %v1253
          %1295 = vmatpush1.bf16.msra.mxu0 %v1252
          %1296 = vmatprep.subr.bf16.mxu0 0
          %1297 = vmatpush2.bf16.msra.mxu0 0
          %1298 = vmatprep.subr.bf16.mxu0 0
          %1299 = vmatpush2.bf16.msra.mxu0 0
          %1300 = vmatprep.subr.bf16.mxu0 0
          %1301 = vmatpush2.bf16.msra.mxu0 0
          %1302 = vmatprep.subr.bf16.mxu0 0
          %1303 = vmatpush2.bf16.msra.mxu0 0
          %1304 = vmatprep.subr.bf16.mxu0 0
          %1305 = vmatpush2.bf16.msra.mxu0 0
          %1306 = vmatprep.subr.bf16.mxu0 0
          %1307 = vmatpush2.bf16.msra.mxu0 0
          %1308 = vmatprep.subr.bf16.mxu0 0
          %1309 = vmatpush2.bf16.msra.mxu0 0
          %1310 = vmatprep.subr.bf16.mxu0 0
          %1311 = vmatpush2.bf16.msra.mxu0 0
          %1312 = vmatprep.mubr.bf16.mxu0 0
          %1313 = vmatmul.mubr.bf16.gmra.mxu0 %v906
          %v1314 = vpop.f32.mrf.mxu0
          %v1315 = vadd.f32 %v1273, %v1314
          %v1316 = vpop.f32.mrf.mxu0
          %v1317 = vadd.f32 %v1277, %v1316
          %v1318 = vpop.f32.mrf.mxu0
          %v1319 = vadd.f32 %v1273, %v1318
          %v1320 = vpop.f32.mrf.mxu0
          %v1321 = vadd.f32 %v1277, %v1320
          %1322 = vmatprep.mubr.bf16.mxu0 0
          %1323 = vmatmul.mubr.bf16.gmra.mxu0 %v907
          %v1324 = vpop.f32.mrf.mxu0
          %v1325 = vadd.f32 %v1273, %v1324
          %v1326 = vpop.f32.mrf.mxu0
          %v1327 = vadd.f32 %v1277, %v1326
          %v1328 = vpop.f32.mrf.mxu0
          %v1329 = vadd.f32 %v1273, %v1328
          %v1330 = vpop.f32.mrf.mxu0
          %v1331 = vadd.f32 %v1277, %v1330
          %1332 = vmatprep.mubr.bf16.mxu0 0
          %1333 = vmatmul.mubr.bf16.gmra.mxu0 %v908
          %v1334 = vpop.f32.mrf.mxu0
          %v1335 = vadd.f32 %v1273, %v1334
          %v1336 = vpop.f32.mrf.mxu0
          %v1337 = vadd.f32 %v1277, %v1336
          %v1338 = vpop.f32.mrf.mxu0
          %v1339 = vadd.f32 %v1273, %v1338
          %v1340 = vpop.f32.mrf.mxu0
          %v1341 = vadd.f32 %v1277, %v1340
          %1342 = vmatprep.mubr.bf16.mxu0 0
          %1343 = vmatmul.mubr.bf16.gmra.mxu0 %v909
          %v1344 = vpop.f32.mrf.mxu0
          %v1345 = vadd.f32 %v1273, %v1344
          %v1346 = vpop.f32.mrf.mxu0
          %v1347 = vadd.f32 %v1277, %v1346
          %v1348 = vpop.f32.mrf.mxu0
          %v1349 = vadd.f32 %v1273, %v1348
          %v1350 = vpop.f32.mrf.mxu0
          %v1351 = vadd.f32 %v1277, %v1350
          %1352 = vmatprep.mubr.bf16.mxu0 0
          %1353 = vmatmul.mubr.bf16.gmra.mxu0 %v910
          %v1354 = vpop.f32.mrf.mxu0
          %v1355 = vadd.f32 %v1273, %v1354
          %v1356 = vpop.f32.mrf.mxu0
          %v1357 = vadd.f32 %v1277, %v1356
          %v1358 = vpop.f32.mrf.mxu0
          %v1359 = vadd.f32 %v1273, %v1358
          %v1360 = vpop.f32.mrf.mxu0
          %v1361 = vadd.f32 %v1277, %v1360
          %1362 = vmatprep.mubr.bf16.mxu0 0
          %1363 = vmatmul.mubr.bf16.gmra.mxu0 %v911
          %v1364 = vpop.f32.mrf.mxu0
          %v1365 = vadd.f32 %v1273, %v1364
          %v1366 = vpop.f32.mrf.mxu0
          %v1367 = vadd.f32 %v1277, %v1366
          %v1368 = vpop.f32.mrf.mxu0
          %v1369 = vadd.f32 %v1273, %v1368
          %v1370 = vpop.f32.mrf.mxu0
          %v1371 = vadd.f32 %v1277, %v1370
          %1372 = vmatprep.mubr.bf16.mxu0 0
          %1373 = vmatmul.mubr.bf16.gmra.mxu0 %v912
          %v1374 = vpop.f32.mrf.mxu0
          %v1375 = vadd.f32 %v1273, %v1374
          %v1376 = vpop.f32.mrf.mxu0
          %v1377 = vadd.f32 %v1277, %v1376
          %v1378 = vpop.f32.mrf.mxu0
          %v1379 = vadd.f32 %v1273, %v1378
          %v1380 = vpop.f32.mrf.mxu0
          %v1381 = vadd.f32 %v1277, %v1380
          %1382 = vmatprep.mubr.bf16.mxu0 0
          %1383 = vmatmul.mubr.bf16.gmra.mxu0 %v913
          %v1384 = vpop.f32.mrf.mxu0
          %v1385 = vadd.f32 %v1273, %v1384
          %v1386 = vpop.f32.mrf.mxu0
          %v1387 = vadd.f32 %v1277, %v1386
          %v1388 = vpop.f32.mrf.mxu0
          %v1389 = vadd.f32 %v1273, %v1388
          %v1390 = vpop.f32.mrf.mxu0
          %v1391 = vadd.f32 %v1277, %v1390
          %1392 = vdwg.mxu0
          %v1393 = vmax.f32 %v1315, 0.0
          %v1394 = vmax.f32 %v1317, 0.0
          %v1395 = vmax.f32 %v1319, 0.0
          %v1396 = vmax.f32 %v1321, 0.0
          %v1397 = vmax.f32 %v1325, 0.0
          %v1398 = vmax.f32 %v1327, 0.0
          %v1399 = vmax.f32 %v1329, 0.0
          %v1400 = vmax.f32 %v1331, 0.0
          %v1401 = vmax.f32 %v1335, 0.0
          %v1402 = vmax.f32 %v1337, 0.0
          %v1403 = vmax.f32 %v1339, 0.0
          %v1404 = vmax.f32 %v1341, 0.0
          %v1405 = vmax.f32 %v1345, 0.0
          %v1406 = vmax.f32 %v1347, 0.0
          %v1407 = vmax.f32 %v1349, 0.0
          %v1408 = vmax.f32 %v1351, 0.0
          %v1409 = vmax.f32 %v1355, 0.0
          %v1410 = vmax.f32 %v1357, 0.0
          %v1411 = vmax.f32 %v1359, 0.0
          %v1412 = vmax.f32 %v1361, 0.0
          %v1413 = vmax.f32 %v1365, 0.0
          %v1414 = vmax.f32 %v1367, 0.0
          %v1415 = vmax.f32 %v1369, 0.0
          %v1416 = vmax.f32 %v1371, 0.0
          %v1417 = vmax.f32 %v1375, 0.0
          %v1418 = vmax.f32 %v1377, 0.0
          %v1419 = vmax.f32 %v1379, 0.0
          %v1420 = vmax.f32 %v1381, 0.0
          %v1421 = vmax.f32 %v1385, 0.0
          %v1422 = vmax.f32 %v1387, 0.0
          %v1423 = vmax.f32 %v1389, 0.0
          %v1424 = vmax.f32 %v1391, 0.0
          %v1425 = vlaneseq
          %v1426 = vshrl.u32 %v1425, 7
          %v1427 = vadd.s32 %v1426, 8
          %v1428 = vadd.s32 %v1426, 16
          %v1429 = vadd.s32 %v1426, 24
          %v1430 = vadd.s32 %v1426, 32
          %v1431 = vadd.s32 %v1426, 40
          %v1432 = vadd.s32 %v1426, 48
          %v1433 = vadd.s32 %v1426, 56
          %v1434 = vadd.s32 %v1426, 64
          %v1435 = vadd.s32 %v1426, 72
          %v1436 = vadd.s32 %v1426, 80
          %v1437 = vadd.s32 %v1426, 88
          %v1438 = vadd.s32 %v1426, 96
          %v1439 = vadd.s32 %v1426, 104
          %v1440 = vadd.s32 %v1426, 112
          %v1441 = vadd.s32 %v1426, 120
          %vm1442 = vcmp.lt.s32.totalorder %v1426, 64
          %vm1443 = vcmp.lt.s32.totalorder %v1427, 64
          %vm1444 = vcmp.lt.s32.totalorder %v1428, 64
          %vm1445 = vcmp.lt.s32.totalorder %v1429, 64
          %vm1446 = vcmp.lt.s32.totalorder %v1430, 64
          %vm1447 = vcmp.lt.s32.totalorder %v1431, 64
          %vm1448 = vcmp.lt.s32.totalorder %v1432, 64
          %vm1449 = vcmp.lt.s32.totalorder %v1433, 64
          %vm1450 = vcmp.lt.s32.totalorder %v1434, 64
          %vm1451 = vcmp.lt.s32.totalorder %v1435, 64
          %vm1452 = vcmp.lt.s32.totalorder %v1436, 64
          %vm1453 = vcmp.lt.s32.totalorder %v1437, 64
          %vm1454 = vcmp.lt.s32.totalorder %v1438, 64
          %vm1455 = vcmp.lt.s32.totalorder %v1439, 64
          %vm1456 = vcmp.lt.s32.totalorder %v1440, 64
          %vm1457 = vcmp.lt.s32.totalorder %v1441, 64
          %v1458 = vsel %vm1442, 1, 0
          %v1459 = vsel %vm1443, 1, 0
          %v1460 = vsel %vm1444, 1, 0
          %v1461 = vsel %vm1445, 1, 0
          %v1462 = vsel %vm1446, 1, 0
          %v1463 = vsel %vm1447, 1, 0
          %v1464 = vsel %vm1448, 1, 0
          %v1465 = vsel %vm1449, 1, 0
          %v1466 = vsel %vm1450, 1, 0
          %v1467 = vsel %vm1451, 1, 0
          %v1468 = vsel %vm1452, 1, 0
          %v1469 = vsel %vm1453, 1, 0
          %v1470 = vsel %vm1454, 1, 0
          %v1471 = vsel %vm1455, 1, 0
          %v1472 = vsel %vm1456, 1, 0
          %v1473 = vsel %vm1457, 1, 0
          %v1474 = vcvt.s32.f32 %v1458
          %v1475 = vcvt.s32.f32 %v1459
          %v1476 = vcvt.s32.f32 %v1460
          %v1477 = vcvt.s32.f32 %v1461
          %v1478 = vcvt.s32.f32 %v1462
          %v1479 = vcvt.s32.f32 %v1463
          %v1480 = vcvt.s32.f32 %v1464
          %v1481 = vcvt.s32.f32 %v1465
          %v1482 = vcvt.s32.f32 %v1466
          %v1483 = vcvt.s32.f32 %v1467
          %v1484 = vcvt.s32.f32 %v1468
          %v1485 = vcvt.s32.f32 %v1469
          %v1486 = vcvt.s32.f32 %v1470
          %v1487 = vcvt.s32.f32 %v1471
          %v1488 = vcvt.s32.f32 %v1472
          %v1489 = vcvt.s32.f32 %v1473
          %v1490 = vmul.f32 %v1394, 1.442695
          %v1491 = vpow.pop %v1490
          %v1492 = vmul.f32 %v1396, 1.442695
          %v1493 = vpow.pop %v1492
          %v1494 = vmul.f32 %v1398, 1.442695
          %v1495 = vpow.pop %v1494
          %v1496 = vmul.f32 %v1400, 1.442695
          %v1497 = vpow.pop %v1496
          %v1498 = vmul.f32 %v1402, 1.442695
          %v1499 = vpow.pop %v1498
          %v1500 = vmul.f32 %v1404, 1.442695
          %v1501 = vpow.pop %v1500
          %v1502 = vmul.f32 %v1406, 1.442695
          %v1503 = vpow.pop %v1502
          %v1504 = vmul.f32 %v1408, 1.442695
          %v1505 = vpow.pop %v1504
          %v1506 = vmul.f32 %v1410, 1.442695
          %v1507 = vpow.pop %v1506
          %v1508 = vmul.f32 %v1412, 1.442695
          %v1509 = vpow.pop %v1508
          %v1510 = vmul.f32 %v1414, 1.442695
          %v1511 = vpow.pop %v1510
          %v1512 = vmul.f32 %v1416, 1.442695
          %v1513 = vpow.pop %v1512
          %v1514 = vmul.f32 %v1418, 1.442695
          %v1515 = vpow.pop %v1514
          %v1516 = vmul.f32 %v1420, 1.442695
          %v1517 = vpow.pop %v1516
          %v1518 = vmul.f32 %v1422, 1.442695
          %v1519 = vpow.pop %v1518
          %v1520 = vmul.f32 %v1424, 1.442695
          %v1521 = vpow.pop %v1520
          %v1522 = vmul.f32 %v634, %v1491
          %v1523 = vmul.f32 %v635, %v1493
          %v1524 = vmul.f32 %v636, %v1495
          %v1525 = vmul.f32 %v637, %v1497
          %v1526 = vmul.f32 %v638, %v1499
          %v1527 = vmul.f32 %v639, %v1501
          %v1528 = vmul.f32 %v640, %v1503
          %v1529 = vmul.f32 %v641, %v1505
          %v1530 = vmul.f32 %v642, %v1507
          %v1531 = vmul.f32 %v643, %v1509
          %v1532 = vmul.f32 %v644, %v1511
          %v1533 = vmul.f32 %v645, %v1513
          %v1534 = vmul.f32 %v646, %v1515
          %v1535 = vmul.f32 %v647, %v1517
          %v1536 = vmul.f32 %v648, %v1519
          %v1537 = vmul.f32 %v649, %v1521
          %v1538 = vadd.f32 %v1522, %v1393
          %v1539 = vadd.f32 %v1523, %v1395
          %v1540 = vadd.f32 %v1524, %v1397
          %v1541 = vadd.f32 %v1525, %v1399
          %v1542 = vadd.f32 %v1526, %v1401
          %v1543 = vadd.f32 %v1527, %v1403
          %v1544 = vadd.f32 %v1528, %v1405
          %v1545 = vadd.f32 %v1529, %v1407
          %v1546 = vadd.f32 %v1530, %v1409
          %v1547 = vadd.f32 %v1531, %v1411
          %v1548 = vadd.f32 %v1532, %v1413
          %v1549 = vadd.f32 %v1533, %v1415
          %v1550 = vadd.f32 %v1534, %v1417
          %v1551 = vadd.f32 %v1535, %v1419
          %v1552 = vadd.f32 %v1536, %v1421
          %v1553 = vadd.f32 %v1537, %v1423
          %v1554 = vmul.f32 %v1538, %v1474
          %v1555 = vmul.f32 %v1539, %v1475
          %v1556 = vmul.f32 %v1540, %v1476
          %v1557 = vmul.f32 %v1541, %v1477
          %v1558 = vmul.f32 %v1542, %v1478
          %v1559 = vmul.f32 %v1543, %v1479
          %v1560 = vmul.f32 %v1544, %v1480
          %v1561 = vmul.f32 %v1545, %v1481
          %v1562 = vmul.f32 %v1546, %v1482
          %v1563 = vmul.f32 %v1547, %v1483
          %v1564 = vmul.f32 %v1548, %v1484
          %v1565 = vmul.f32 %v1549, %v1485
          %v1566 = vmul.f32 %v1550, %v1486
          %v1567 = vmul.f32 %v1551, %v1487
          %v1568 = vmul.f32 %v1552, %v1488
          %v1569 = vmul.f32 %v1553, %v1489
          %v1570 = vmul.f32 %v1554, %v1554
          %v1571 = vmul.f32 %v1555, %v1555
          %v1572 = vmul.f32 %v1556, %v1556
          %v1573 = vmul.f32 %v1557, %v1557
          %v1574 = vmul.f32 %v1558, %v1558
          %v1575 = vmul.f32 %v1559, %v1559
          %v1576 = vmul.f32 %v1560, %v1560
          %v1577 = vmul.f32 %v1561, %v1561
          %v1578 = vmul.f32 %v1562, %v1562
          %v1579 = vmul.f32 %v1563, %v1563
          %v1580 = vmul.f32 %v1564, %v1564
          %v1581 = vmul.f32 %v1565, %v1565
          %v1582 = vmul.f32 %v1566, %v1566
          %v1583 = vmul.f32 %v1567, %v1567
          %v1584 = vmul.f32 %v1568, %v1568
          %v1585 = vmul.f32 %v1569, %v1569
          %1586 = vadd.xlane.f32.xlu0 %v1570
          %v1587 = vpop.xlane.xlu0 %1586
          %1588 = vadd.xlane.f32.xlu0 %v1571
          %v1589 = vpop.xlane.xlu0 %1588
          %1590 = vadd.xlane.f32.xlu0 %v1572
          %v1591 = vpop.xlane.xlu0 %1590
          %1592 = vadd.xlane.f32.xlu0 %v1573
          %v1593 = vpop.xlane.xlu0 %1592
          %1594 = vadd.xlane.f32.xlu0 %v1574
          %v1595 = vpop.xlane.xlu0 %1594
          %1596 = vadd.xlane.f32.xlu0 %v1575
          %v1597 = vpop.xlane.xlu0 %1596
          %1598 = vadd.xlane.f32.xlu0 %v1576
          %v1599 = vpop.xlane.xlu0 %1598
          %1600 = vadd.xlane.f32.xlu0 %v1577
          %v1601 = vpop.xlane.xlu0 %1600
          %1602 = vadd.xlane.f32.xlu0 %v1578
          %v1603 = vpop.xlane.xlu0 %1602
          %1604 = vadd.xlane.f32.xlu0 %v1579
          %v1605 = vpop.xlane.xlu0 %1604
          %1606 = vadd.xlane.f32.xlu0 %v1580
          %v1607 = vpop.xlane.xlu0 %1606
          %1608 = vadd.xlane.f32.xlu0 %v1581
          %v1609 = vpop.xlane.xlu0 %1608
          %1610 = vadd.xlane.f32.xlu0 %v1582
          %v1611 = vpop.xlane.xlu0 %1610
          %1612 = vadd.xlane.f32.xlu0 %v1583
          %v1613 = vpop.xlane.xlu0 %1612
          %1614 = vadd.xlane.f32.xlu0 %v1584
          %v1615 = vpop.xlane.xlu0 %1614
          %1616 = vadd.xlane.f32.xlu0 %v1585
          %v1617 = vpop.xlane.xlu0 %1616
          %v1618 = vrsqrt.pop %v1587
          %v1619 = vmul.f32 %v1587, %v1618
          %vm1620 = vcmp.eq.f32.partialorder %v1587, inf
          %v1621 = vsel %vm1620, %v1587, %v1619
          %vm1622 = vcmp.eq.f32.partialorder %v1587, 0.0
          %v1623 = vand.u32 %v1587, 2147483648
          %v1624 = vsel %vm1622, %v1623, %v1621
          %v1625 = vrsqrt.pop %v1589
          %v1626 = vmul.f32 %v1589, %v1625
          %vm1627 = vcmp.eq.f32.partialorder %v1589, inf
          %v1628 = vsel %vm1627, %v1589, %v1626
          %vm1629 = vcmp.eq.f32.partialorder %v1589, 0.0
          %v1630 = vand.u32 %v1589, 2147483648
          %v1631 = vsel %vm1629, %v1630, %v1628
          %v1632 = vrsqrt.pop %v1591
          %v1633 = vmul.f32 %v1591, %v1632
          %vm1634 = vcmp.eq.f32.partialorder %v1591, inf
          %v1635 = vsel %vm1634, %v1591, %v1633
          %vm1636 = vcmp.eq.f32.partialorder %v1591, 0.0
          %v1637 = vand.u32 %v1591, 2147483648
          %v1638 = vsel %vm1636, %v1637, %v1635
          %v1639 = vrsqrt.pop %v1593
          %v1640 = vmul.f32 %v1593, %v1639
          %vm1641 = vcmp.eq.f32.partialorder %v1593, inf
          %v1642 = vsel %vm1641, %v1593, %v1640
          %vm1643 = vcmp.eq.f32.partialorder %v1593, 0.0
          %v1644 = vand.u32 %v1593, 2147483648
          %v1645 = vsel %vm1643, %v1644, %v1642
          %v1646 = vrsqrt.pop %v1595
          %v1647 = vmul.f32 %v1595, %v1646
          %vm1648 = vcmp.eq.f32.partialorder %v1595, inf
          %v1649 = vsel %vm1648, %v1595, %v1647
          %vm1650 = vcmp.eq.f32.partialorder %v1595, 0.0
          %v1651 = vand.u32 %v1595, 2147483648
          %v1652 = vsel %vm1650, %v1651, %v1649
          %v1653 = vrsqrt.pop %v1597
          %v1654 = vmul.f32 %v1597, %v1653
          %vm1655 = vcmp.eq.f32.partialorder %v1597, inf
          %v1656 = vsel %vm1655, %v1597, %v1654
          %vm1657 = vcmp.eq.f32.partialorder %v1597, 0.0
          %v1658 = vand.u32 %v1597, 2147483648
          %v1659 = vsel %vm1657, %v1658, %v1656
          %v1660 = vrsqrt.pop %v1599
          %v1661 = vmul.f32 %v1599, %v1660
          %vm1662 = vcmp.eq.f32.partialorder %v1599, inf
          %v1663 = vsel %vm1662, %v1599, %v1661
          %vm1664 = vcmp.eq.f32.partialorder %v1599, 0.0
          %v1665 = vand.u32 %v1599, 2147483648
          %v1666 = vsel %vm1664, %v1665, %v1663
          %v1667 = vrsqrt.pop %v1601
          %v1668 = vmul.f32 %v1601, %v1667
          %vm1669 = vcmp.eq.f32.partialorder %v1601, inf
          %v1670 = vsel %vm1669, %v1601, %v1668
          %vm1671 = vcmp.eq.f32.partialorder %v1601, 0.0
          %v1672 = vand.u32 %v1601, 2147483648
          %v1673 = vsel %vm1671, %v1672, %v1670
          %v1674 = vrsqrt.pop %v1603
          %v1675 = vmul.f32 %v1603, %v1674
          %vm1676 = vcmp.eq.f32.partialorder %v1603, inf
          %v1677 = vsel %vm1676, %v1603, %v1675
          %vm1678 = vcmp.eq.f32.partialorder %v1603, 0.0
          %v1679 = vand.u32 %v1603, 2147483648
          %v1680 = vsel %vm1678, %v1679, %v1677
          %v1681 = vrsqrt.pop %v1605
          %v1682 = vmul.f32 %v1605, %v1681
          %vm1683 = vcmp.eq.f32.partialorder %v1605, inf
          %v1684 = vsel %vm1683, %v1605, %v1682
          %vm1685 = vcmp.eq.f32.partialorder %v1605, 0.0
          %v1686 = vand.u32 %v1605, 2147483648
          %v1687 = vsel %vm1685, %v1686, %v1684
          %v1688 = vrsqrt.pop %v1607
          %v1689 = vmul.f32 %v1607, %v1688
          %vm1690 = vcmp.eq.f32.partialorder %v1607, inf
          %v1691 = vsel %vm1690, %v1607, %v1689
          %vm1692 = vcmp.eq.f32.partialorder %v1607, 0.0
          %v1693 = vand.u32 %v1607, 2147483648
          %v1694 = vsel %vm1692, %v1693, %v1691
          %v1695 = vrsqrt.pop %v1609
          %v1696 = vmul.f32 %v1609, %v1695
          %vm1697 = vcmp.eq.f32.partialorder %v1609, inf
          %v1698 = vsel %vm1697, %v1609, %v1696
          %vm1699 = vcmp.eq.f32.partialorder %v1609, 0.0
          %v1700 = vand.u32 %v1609, 2147483648
          %v1701 = vsel %vm1699, %v1700, %v1698
          %v1702 = vrsqrt.pop %v1611
          %v1703 = vmul.f32 %v1611, %v1702
          %vm1704 = vcmp.eq.f32.partialorder %v1611, inf
          %v1705 = vsel %vm1704, %v1611, %v1703
          %vm1706 = vcmp.eq.f32.partialorder %v1611, 0.0
          %v1707 = vand.u32 %v1611, 2147483648
          %v1708 = vsel %vm1706, %v1707, %v1705
          %v1709 = vrsqrt.pop %v1613
          %v1710 = vmul.f32 %v1613, %v1709
          %vm1711 = vcmp.eq.f32.partialorder %v1613, inf
          %v1712 = vsel %vm1711, %v1613, %v1710
          %vm1713 = vcmp.eq.f32.partialorder %v1613, 0.0
          %v1714 = vand.u32 %v1613, 2147483648
          %v1715 = vsel %vm1713, %v1714, %v1712
          %v1716 = vrsqrt.pop %v1615
          %v1717 = vmul.f32 %v1615, %v1716
          %vm1718 = vcmp.eq.f32.partialorder %v1615, inf
          %v1719 = vsel %vm1718, %v1615, %v1717
          %vm1720 = vcmp.eq.f32.partialorder %v1615, 0.0
          %v1721 = vand.u32 %v1615, 2147483648
          %v1722 = vsel %vm1720, %v1721, %v1719
          %v1723 = vrsqrt.pop %v1617
          %v1724 = vmul.f32 %v1617, %v1723
          %vm1725 = vcmp.eq.f32.partialorder %v1617, inf
          %v1726 = vsel %vm1725, %v1617, %v1724
          %vm1727 = vcmp.eq.f32.partialorder %v1617, 0.0
          %v1728 = vand.u32 %v1617, 2147483648
          %v1729 = vsel %vm1727, %v1728, %v1726
          %v1730 = vmax.f32 %v1624, 1e-12
          %v1731 = vmax.f32 %v1631, 1e-12
          %v1732 = vmax.f32 %v1638, 1e-12
          %v1733 = vmax.f32 %v1645, 1e-12
          %v1734 = vmax.f32 %v1652, 1e-12
          %v1735 = vmax.f32 %v1659, 1e-12
          %v1736 = vmax.f32 %v1666, 1e-12
          %v1737 = vmax.f32 %v1673, 1e-12
          %v1738 = vmax.f32 %v1680, 1e-12
          %v1739 = vmax.f32 %v1687, 1e-12
          %v1740 = vmax.f32 %v1694, 1e-12
          %v1741 = vmax.f32 %v1701, 1e-12
          %v1742 = vmax.f32 %v1708, 1e-12
          %v1743 = vmax.f32 %v1715, 1e-12
          %v1744 = vmax.f32 %v1722, 1e-12
          %v1745 = vmax.f32 %v1729, 1e-12
          %v1746 = vrcp.pop %v1730
          %v1747 = vmul.f32 %v1554, %v1746
          %v1748 = vrcp.pop %v1731
          %v1749 = vmul.f32 %v1555, %v1748
          %v1750 = vrcp.pop %v1732
          %v1751 = vmul.f32 %v1556, %v1750
          %v1752 = vrcp.pop %v1733
          %v1753 = vmul.f32 %v1557, %v1752
          %v1754 = vrcp.pop %v1734
          %v1755 = vmul.f32 %v1558, %v1754
          %v1756 = vrcp.pop %v1735
          %v1757 = vmul.f32 %v1559, %v1756
          %v1758 = vrcp.pop %v1736
          %v1759 = vmul.f32 %v1560, %v1758
          %v1760 = vrcp.pop %v1737
          %v1761 = vmul.f32 %v1561, %v1760
          %v1762 = vrcp.pop %v1738
          %v1763 = vmul.f32 %v1562, %v1762
          %v1764 = vrcp.pop %v1739
          %v1765 = vmul.f32 %v1563, %v1764
          %v1766 = vrcp.pop %v1740
          %v1767 = vmul.f32 %v1564, %v1766
          %v1768 = vrcp.pop %v1741
          %v1769 = vmul.f32 %v1565, %v1768
          %v1770 = vrcp.pop %v1742
          %v1771 = vmul.f32 %v1566, %v1770
          %v1772 = vrcp.pop %v1743
          %v1773 = vmul.f32 %v1567, %v1772
          %v1774 = vrcp.pop %v1744
          %v1775 = vmul.f32 %v1568, %v1774
          %v1776 = vrcp.pop %v1745
          %v1777 = vmul.f32 %v1569, %v1776
          %v1778 = vadd.f32 %v1747, %v1749
          %v1779 = vadd.f32 %v1778, %v1751
          %v1780 = vadd.f32 %v1779, %v1753
          %v1781 = vadd.f32 %v1780, %v1755
          %v1782 = vadd.f32 %v1781, %v1757
          %v1783 = vadd.f32 %v1782, %v1759
          %v1784 = vadd.f32 %v1783, %v1761
          %v1785 = vadd.f32 %v1784, %v1763
          %v1786 = vadd.f32 %v1785, %v1765
          %v1787 = vadd.f32 %v1786, %v1767
          %v1788 = vadd.f32 %v1787, %v1769
          %v1789 = vadd.f32 %v1788, %v1771
          %v1790 = vadd.f32 %v1789, %v1773
          %v1791 = vadd.f32 %v1790, %v1775
          %v1792 = vadd.f32 %v1791, %v1777
          %v1793 = vrot.slane %v1792, 4
          %v1794 = vadd.f32 %v1792, %v1793
          %v1795 = vrot.slane %v1794, 2
          %v1796 = vadd.f32 %v1794, %v1795
          %v1797 = vrot.slane %v1796, 1
          %v1798 = vadd.f32 %v1796, %v1797
          %v1799 = vmul.f32 %v1747, %v1798
          %v1800 = vmul.f32 %v1749, %v1798
          %v1801 = vmul.f32 %v1751, %v1798
          %v1802 = vmul.f32 %v1753, %v1798
          %v1803 = vmul.f32 %v1755, %v1798
          %v1804 = vmul.f32 %v1757, %v1798
          %v1805 = vmul.f32 %v1759, %v1798
          %v1806 = vmul.f32 %v1761, %v1798
          %v1807 = vmul.f32 %v1763, %v1798
          %v1808 = vmul.f32 %v1765, %v1798
          %v1809 = vmul.f32 %v1767, %v1798
          %v1810 = vmul.f32 %v1769, %v1798
          %v1811 = vmul.f32 %v1771, %v1798
          %v1812 = vmul.f32 %v1773, %v1798
          %v1813 = vmul.f32 %v1775, %v1798
          %v1814 = vmul.f32 %v1777, %v1798
          %1815 = vadd.xlane.f32.xlu0 %v1799
          %v1816 = vpop.xlane.xlu0 %1815
          %1817 = vadd.xlane.f32.xlu0 %v1800
          %v1818 = vpop.xlane.xlu0 %1817
          %1819 = vadd.xlane.f32.xlu0 %v1801
          %v1820 = vpop.xlane.xlu0 %1819
          %1821 = vadd.xlane.f32.xlu0 %v1802
          %v1822 = vpop.xlane.xlu0 %1821
          %1823 = vadd.xlane.f32.xlu0 %v1803
          %v1824 = vpop.xlane.xlu0 %1823
          %1825 = vadd.xlane.f32.xlu0 %v1804
          %v1826 = vpop.xlane.xlu0 %1825
          %1827 = vadd.xlane.f32.xlu0 %v1805
          %v1828 = vpop.xlane.xlu0 %1827
          %1829 = vadd.xlane.f32.xlu0 %v1806
          %v1830 = vpop.xlane.xlu0 %1829
          %1831 = vadd.xlane.f32.xlu0 %v1807
          %v1832 = vpop.xlane.xlu0 %1831
          %1833 = vadd.xlane.f32.xlu0 %v1808
          %v1834 = vpop.xlane.xlu0 %1833
          %1835 = vadd.xlane.f32.xlu0 %v1809
          %v1836 = vpop.xlane.xlu0 %1835
          %1837 = vadd.xlane.f32.xlu0 %v1810
          %v1838 = vpop.xlane.xlu0 %1837
          %1839 = vadd.xlane.f32.xlu0 %v1811
          %v1840 = vpop.xlane.xlu0 %1839
          %1841 = vadd.xlane.f32.xlu0 %v1812
          %v1842 = vpop.xlane.xlu0 %1841
          %1843 = vadd.xlane.f32.xlu0 %v1813
          %v1844 = vpop.xlane.xlu0 %1843
          %1845 = vadd.xlane.f32.xlu0 %v1814
          %v1846 = vpop.xlane.xlu0 %1845
          %v1847 = vadd.f32 %v1816, 64.0
          %v1848 = vadd.f32 %v1818, 64.0
          %v1849 = vadd.f32 %v1820, 64.0
          %v1850 = vadd.f32 %v1822, 64.0
          %v1851 = vadd.f32 %v1824, 64.0
          %v1852 = vadd.f32 %v1826, 64.0
          %v1853 = vadd.f32 %v1828, 64.0
          %v1854 = vadd.f32 %v1830, 64.0
          %v1855 = vadd.f32 %v1832, 64.0
          %v1856 = vadd.f32 %v1834, 64.0
          %v1857 = vadd.f32 %v1836, 64.0
          %v1858 = vadd.f32 %v1838, 64.0
          %v1859 = vadd.f32 %v1840, 64.0
          %v1860 = vadd.f32 %v1842, 64.0
          %v1861 = vadd.f32 %v1844, 64.0
          %v1862 = vadd.f32 %v1846, 64.0
          %v1863 = vrsqrt.pop %v1847
          %v1864 = vrsqrt.pop %v1848
          %v1865 = vrsqrt.pop %v1849
          %v1866 = vrsqrt.pop %v1850
          %v1867 = vrsqrt.pop %v1851
          %v1868 = vrsqrt.pop %v1852
          %v1869 = vrsqrt.pop %v1853
          %v1870 = vrsqrt.pop %v1854
          %v1871 = vrsqrt.pop %v1855
          %v1872 = vrsqrt.pop %v1856
          %v1873 = vrsqrt.pop %v1857
          %v1874 = vrsqrt.pop %v1858
          %v1875 = vrsqrt.pop %v1859
          %v1876 = vrsqrt.pop %v1860
          %v1877 = vrsqrt.pop %v1861
          %v1878 = vrsqrt.pop %v1862
          %v1879 = vmul.f32 %v1747, %v1863
          %v1880 = vmul.f32 %v1749, %v1864
          %v1881 = vmul.f32 %v1751, %v1865
          %v1882 = vmul.f32 %v1753, %v1866
          %v1883 = vmul.f32 %v1755, %v1867
          %v1884 = vmul.f32 %v1757, %v1868
          %v1885 = vmul.f32 %v1759, %v1869
          %v1886 = vmul.f32 %v1761, %v1870
          %v1887 = vmul.f32 %v1763, %v1871
          %v1888 = vmul.f32 %v1765, %v1872
          %v1889 = vmul.f32 %v1767, %v1873
          %v1890 = vmul.f32 %v1769, %v1874
          %v1891 = vmul.f32 %v1771, %v1875
          %v1892 = vmul.f32 %v1773, %v1876
          %v1893 = vmul.f32 %v1775, %v1877
          %v1894 = vmul.f32 %v1777, %v1878
          %v1895 = vmul.f32 %v1863, %v1474
          %v1896 = vmul.f32 %v1864, %v1475
          %v1897 = vmul.f32 %v1865, %v1476
          %v1898 = vmul.f32 %v1866, %v1477
          %v1899 = vmul.f32 %v1867, %v1478
          %v1900 = vmul.f32 %v1868, %v1479
          %v1901 = vmul.f32 %v1869, %v1480
          %v1902 = vmul.f32 %v1870, %v1481
          %v1903 = vmul.f32 %v1871, %v1482
          %v1904 = vmul.f32 %v1872, %v1483
          %v1905 = vmul.f32 %v1873, %v1484
          %v1906 = vmul.f32 %v1874, %v1485
          %v1907 = vmul.f32 %v1875, %v1486
          %v1908 = vmul.f32 %v1876, %v1487
          %v1909 = vmul.f32 %v1877, %v1488
          %v1910 = vmul.f32 %v1878, %v1489
          %v1911 = vpack.c.bf16 %v1880, %v1879
          %v1912 = vpack.c.bf16 %v1882, %v1881
          %v1913 = vpack.c.bf16 %v1884, %v1883
          %v1914 = vpack.c.bf16 %v1886, %v1885
          %v1915 = vpack.c.bf16 %v1888, %v1887
          %v1916 = vpack.c.bf16 %v1890, %v1889
          %v1917 = vpack.c.bf16 %v1892, %v1891
          %v1918 = vpack.c.bf16 %v1894, %v1893
          %1919 = vxpose.xlu0.c.b16.start [1/8] %v1911, 128
          %1920 = vxpose.xlu0.c.b16.cont [2/8] %v1912, 128
          %1921 = vxpose.xlu0.c.b16.cont [3/8] %v1913, 128
          %1922 = vxpose.xlu0.c.b16.cont [4/8] %v1914, 128
          %1923 = vxpose.xlu0.c.b16.cont [5/8] %v1915, 128
          %1924 = vxpose.xlu0.c.b16.cont [6/8] %v1916, 128
          %1925 = vxpose.xlu0.c.b16.cont [7/8] %v1917, 128
          %1926 = vxpose.xlu0.c.b16.end [8/8] %v1918, 128
          %v1927 = vpop.trf.xlu0
          %v1928 = vpop.trf.xlu0
          %v1929 = vpop.trf.xlu0
          %v1930 = vpop.trf.xlu0
          %v1931 = vpop.trf.xlu0
          %v1932 = vpop.trf.xlu0
          %v1933 = vpop.trf.xlu0
          %v1934 = vpop.trf.xlu0
          %v1935 = vld [vmem:[#allocation12] sm:$0xf]
          %v1936 = vld [vmem:[#allocation12 + $0x4] sm:$0xf]
          %v1937 = vld [vmem:[#allocation12 + $0x8] sm:$0xf]
          %v1938 = vld [vmem:[#allocation12 + $0xc] sm:$0xf]
          %v1939 = vld [vmem:[#allocation12 + $0x10] sm:$0xf]
          %v1940 = vld [vmem:[#allocation12 + $0x14] sm:$0xf]
          %v1941 = vld [vmem:[#allocation12 + $0x18] sm:$0xf]
          %v1942 = vld [vmem:[#allocation12 + $0x1c] sm:$0xf]
          %v1943 = vld [vmem:[#allocation12 + $0x20] sm:$0xf]
          %v1944 = vld [vmem:[#allocation12 + $0x24] sm:$0xf]
          %v1945 = vld [vmem:[#allocation12 + $0x28] sm:$0xf]
          %v1946 = vld [vmem:[#allocation12 + $0x2c] sm:$0xf]
          %v1947 = vld [vmem:[#allocation12 + $0x30] sm:$0xf]
          %v1948 = vld [vmem:[#allocation12 + $0x34] sm:$0xf]
          %v1949 = vld [vmem:[#allocation12 + $0x38] sm:$0xf]
          %v1950 = vld [vmem:[#allocation12 + $0x3c] sm:$0xf]
          %v1951 = vpack.c.bf16 %v1555, %v1554
          %v1952 = vpack.c.bf16 %v1557, %v1556
          %v1953 = vpack.c.bf16 %v1559, %v1558
          %v1954 = vpack.c.bf16 %v1561, %v1560
          %v1955 = vpack.c.bf16 %v1563, %v1562
          %v1956 = vpack.c.bf16 %v1565, %v1564
          %v1957 = vpack.c.bf16 %v1567, %v1566
          %v1958 = vpack.c.bf16 %v1569, %v1568
          %v1975 = vunpack.c.l.b16 %v1935
          %v1976 = vunpack.c.l.b16 %v1936
          %v1977 = vunpack.c.l.b16 %v1937
          %v1978 = vunpack.c.l.b16 %v1938
          %v1979 = vunpack.c.l.b16 %v1939
          %v1980 = vunpack.c.l.b16 %v1940
          %v1981 = vunpack.c.l.b16 %v1941
          %v1982 = vunpack.c.l.b16 %v1942
          %v1983 = vunpack.c.l.b16 %v1943
          %v1984 = vunpack.c.l.b16 %v1944
          %v1985 = vunpack.c.l.b16 %v1945
          %v1986 = vunpack.c.l.b16 %v1946
          %v1987 = vunpack.c.l.b16 %v1947
          %v1988 = vunpack.c.l.b16 %v1948
          %v1989 = vunpack.c.l.b16 %v1949
          %v1990 = vunpack.c.l.b16 %v1950
          %v1991 = vpack.c.b16 %v1976, %v1975
          %v1992 = vpack.c.b16 %v1978, %v1977
          %v1993 = vpack.c.b16 %v1980, %v1979
          %v1994 = vpack.c.b16 %v1982, %v1981
          %v1995 = vpack.c.b16 %v1984, %v1983
          %v1996 = vpack.c.b16 %v1986, %v1985
          %v1997 = vpack.c.b16 %v1988, %v1987
          %v1998 = vpack.c.b16 %v1990, %v1989
          %2007 = vmatprep.subr.bf16.mxu0 0
          %2008 = vmatpush1.bf16.msra.mxu0 %v1998
          %2009 = vmatprep.subr.bf16.mxu0 0
          %2010 = vmatpush1.bf16.msra.mxu0 %v1997
          %2011 = vmatprep.subr.bf16.mxu0 0
          %2012 = vmatpush1.bf16.msra.mxu0 %v1996
          %2013 = vmatprep.subr.bf16.mxu0 0
          %2014 = vmatpush1.bf16.msra.mxu0 %v1995
          %2015 = vmatprep.subr.bf16.mxu0 0
          %2016 = vmatpush1.bf16.msra.mxu0 %v1994
          %2017 = vmatprep.subr.bf16.mxu0 0
          %2018 = vmatpush1.bf16.msra.mxu0 %v1993
          %2019 = vmatprep.subr.bf16.mxu0 0
          %2020 = vmatpush1.bf16.msra.mxu0 %v1992
          %2021 = vmatprep.subr.bf16.mxu0 0
          %2022 = vmatpush1.bf16.msra.mxu0 %v1991
          %2023 = vmatprep.subr.bf16.mxu0 0
          %2024 = vmatpush2.bf16.msra.mxu0 0
          %2025 = vmatprep.subr.bf16.mxu0 0
          %2026 = vmatpush2.bf16.msra.mxu0 0
          %2027 = vmatprep.subr.bf16.mxu0 0
          %2028 = vmatpush2.bf16.msra.mxu0 0
          %2029 = vmatprep.subr.bf16.mxu0 0
          %2030 = vmatpush2.bf16.msra.mxu0 0
          %2031 = vmatprep.subr.bf16.mxu0 0
          %2032 = vmatpush2.bf16.msra.mxu0 0
          %2033 = vmatprep.subr.bf16.mxu0 0
          %2034 = vmatpush2.bf16.msra.mxu0 0
          %2035 = vmatprep.subr.bf16.mxu0 0
          %2036 = vmatpush2.bf16.msra.mxu0 0
          %2037 = vmatprep.subr.bf16.mxu0 0
          %2038 = vmatpush2.bf16.msra.mxu0 0
          %2039 = vmatprep.mubr.bf16.mxu0 0
          %2040 = vmatmul.mubr.bf16.gmra.mxu0 %v1951
          %v2041 = vpop.f32.mrf.mxu0
          %v2042 = vadd.f32 0.0, %v2041
          %v2043 = vpop.f32.mrf.mxu0
          %v2044 = vpop.f32.mrf.mxu0
          %v2045 = vadd.f32 0.0, %v2044
          %v2046 = vpop.f32.mrf.mxu0
          %2047 = vmatprep.mubr.bf16.mxu0 0
          %2048 = vmatmul.mubr.bf16.gmra.mxu0 %v1952
          %v2049 = vpop.f32.mrf.mxu0
          %v2050 = vadd.f32 0.0, %v2049
          %v2051 = vpop.f32.mrf.mxu0
          %v2052 = vpop.f32.mrf.mxu0
          %v2053 = vadd.f32 0.0, %v2052
          %v2054 = vpop.f32.mrf.mxu0
          %2055 = vmatprep.mubr.bf16.mxu0 0
          %2056 = vmatmul.mubr.bf16.gmra.mxu0 %v1953
          %v2057 = vpop.f32.mrf.mxu0
          %v2058 = vadd.f32 0.0, %v2057
          %v2059 = vpop.f32.mrf.mxu0
          %v2060 = vpop.f32.mrf.mxu0
          %v2061 = vadd.f32 0.0, %v2060
          %v2062 = vpop.f32.mrf.mxu0
          %2063 = vmatprep.mubr.bf16.mxu0 0
          %2064 = vmatmul.mubr.bf16.gmra.mxu0 %v1954
          %v2065 = vpop.f32.mrf.mxu0
          %v2066 = vadd.f32 0.0, %v2065
          %v2067 = vpop.f32.mrf.mxu0
          %v2068 = vpop.f32.mrf.mxu0
          %v2069 = vadd.f32 0.0, %v2068
          %v2070 = vpop.f32.mrf.mxu0
          %2071 = vmatprep.mubr.bf16.mxu0 0
          %2072 = vmatmul.mubr.bf16.gmra.mxu0 %v1955
          %v2073 = vpop.f32.mrf.mxu0
          %v2074 = vadd.f32 0.0, %v2073
          %v2075 = vpop.f32.mrf.mxu0
          %v2076 = vpop.f32.mrf.mxu0
          %v2077 = vadd.f32 0.0, %v2076
          %v2078 = vpop.f32.mrf.mxu0
          %2079 = vmatprep.mubr.bf16.mxu0 0
          %2080 = vmatmul.mubr.bf16.gmra.mxu0 %v1956
          %v2081 = vpop.f32.mrf.mxu0
          %v2082 = vadd.f32 0.0, %v2081
          %v2083 = vpop.f32.mrf.mxu0
          %v2084 = vpop.f32.mrf.mxu0
          %v2085 = vadd.f32 0.0, %v2084
          %v2086 = vpop.f32.mrf.mxu0
          %2087 = vmatprep.mubr.bf16.mxu0 0
          %2088 = vmatmul.mubr.bf16.gmra.mxu0 %v1957
          %v2089 = vpop.f32.mrf.mxu0
          %v2090 = vadd.f32 0.0, %v2089
          %v2091 = vpop.f32.mrf.mxu0
          %v2092 = vpop.f32.mrf.mxu0
          %v2093 = vadd.f32 0.0, %v2092
          %v2094 = vpop.f32.mrf.mxu0
          %2095 = vmatprep.mubr.bf16.mxu0 0
          %2096 = vmatmul.mubr.bf16.gmra.mxu0 %v1958
          %v2097 = vpop.f32.mrf.mxu0
          %v2098 = vadd.f32 0.0, %v2097
          %v2099 = vpop.f32.mrf.mxu0
          %v2100 = vpop.f32.mrf.mxu0
          %v2101 = vadd.f32 0.0, %v2100
          %v2102 = vpop.f32.mrf.mxu0
          %2103 = vdwg.mxu0
          %v2104 = vld [vmem:[#allocation14] sm:$0xf]
          %v2105 = vld [vmem:[#allocation14 + $0x4] sm:$0xf]
          %v2106 = vld [vmem:[#allocation14 + $0x8] sm:$0xf]
          %v2107 = vld [vmem:[#allocation14 + $0xc] sm:$0xf]
          %v2108 = vld [vmem:[#allocation14 + $0x10] sm:$0xf]
          %v2109 = vld [vmem:[#allocation14 + $0x14] sm:$0xf]
          %v2110 = vld [vmem:[#allocation14 + $0x18] sm:$0xf]
          %v2111 = vld [vmem:[#allocation14 + $0x1c] sm:$0xf]
          %v2112 = vld [vmem:[#allocation14 + $0x20] sm:$0xf]
          %v2113 = vld [vmem:[#allocation14 + $0x24] sm:$0xf]
          %v2114 = vld [vmem:[#allocation14 + $0x28] sm:$0xf]
          %v2115 = vld [vmem:[#allocation14 + $0x2c] sm:$0xf]
          %v2116 = vld [vmem:[#allocation14 + $0x30] sm:$0xf]
          %v2117 = vld [vmem:[#allocation14 + $0x34] sm:$0xf]
          %v2118 = vld [vmem:[#allocation14 + $0x38] sm:$0xf]
          %v2119 = vld [vmem:[#allocation14 + $0x3c] sm:$0xf]
          %v2136 = vunpack.c.l.b16 %v2104
          %v2137 = vunpack.c.l.b16 %v2105
          %v2138 = vunpack.c.l.b16 %v2106
          %v2139 = vunpack.c.l.b16 %v2107
          %v2140 = vunpack.c.l.b16 %v2108
          %v2141 = vunpack.c.l.b16 %v2109
          %v2142 = vunpack.c.l.b16 %v2110
          %v2143 = vunpack.c.l.b16 %v2111
          %v2144 = vunpack.c.l.b16 %v2112
          %v2145 = vunpack.c.l.b16 %v2113
          %v2146 = vunpack.c.l.b16 %v2114
          %v2147 = vunpack.c.l.b16 %v2115
          %v2148 = vunpack.c.l.b16 %v2116
          %v2149 = vunpack.c.l.b16 %v2117
          %v2150 = vunpack.c.l.b16 %v2118
          %v2151 = vunpack.c.l.b16 %v2119
          %v2152 = vpack.c.b16 %v2137, %v2136
          %v2153 = vpack.c.b16 %v2139, %v2138
          %v2154 = vpack.c.b16 %v2141, %v2140
          %v2155 = vpack.c.b16 %v2143, %v2142
          %v2156 = vpack.c.b16 %v2145, %v2144
          %v2157 = vpack.c.b16 %v2147, %v2146
          %v2158 = vpack.c.b16 %v2149, %v2148
          %v2159 = vpack.c.b16 %v2151, %v2150
          %2168 = vmatprep.subr.bf16.mxu0 0
          %2169 = vmatpush1.bf16.msra.mxu0 %v2159
          %2170 = vmatprep.subr.bf16.mxu0 0
          %2171 = vmatpush1.bf16.msra.mxu0 %v2158
          %2172 = vmatprep.subr.bf16.mxu0 0
          %2173 = vmatpush1.bf16.msra.mxu0 %v2157
          %2174 = vmatprep.subr.bf16.mxu0 0
          %2175 = vmatpush1.bf16.msra.mxu0 %v2156
          %2176 = vmatprep.subr.bf16.mxu0 0
          %2177 = vmatpush1.bf16.msra.mxu0 %v2155
          %2178 = vmatprep.subr.bf16.mxu0 0
          %2179 = vmatpush1.bf16.msra.mxu0 %v2154
          %2180 = vmatprep.subr.bf16.mxu0 0
          %2181 = vmatpush1.bf16.msra.mxu0 %v2153
          %2182 = vmatprep.subr.bf16.mxu0 0
          %2183 = vmatpush1.bf16.msra.mxu0 %v2152
          %2184 = vmatprep.subr.bf16.mxu0 0
          %2185 = vmatpush2.bf16.msra.mxu0 0
          %2186 = vmatprep.subr.bf16.mxu0 0
          %2187 = vmatpush2.bf16.msra.mxu0 0
          %2188 = vmatprep.subr.bf16.mxu0 0
          %2189 = vmatpush2.bf16.msra.mxu0 0
          %2190 = vmatprep.subr.bf16.mxu0 0
          %2191 = vmatpush2.bf16.msra.mxu0 0
          %2192 = vmatprep.subr.bf16.mxu0 0
          %2193 = vmatpush2.bf16.msra.mxu0 0
          %2194 = vmatprep.subr.bf16.mxu0 0
          %2195 = vmatpush2.bf16.msra.mxu0 0
          %2196 = vmatprep.subr.bf16.mxu0 0
          %2197 = vmatpush2.bf16.msra.mxu0 0
          %2198 = vmatprep.subr.bf16.mxu0 0
          %2199 = vmatpush2.bf16.msra.mxu0 0
          %2200 = vmatprep.mubr.bf16.mxu0 0
          %2201 = vmatmul.mubr.bf16.gmra.mxu0 %v698
          %v2202 = vpop.f32.mrf.mxu0
          %v2203 = vadd.f32 0.0, %v2202
          %v2204 = vpop.f32.mrf.mxu0
          %v2205 = vpop.f32.mrf.mxu0
          %v2206 = vadd.f32 0.0, %v2205
          %v2207 = vpop.f32.mrf.mxu0
          %2208 = vmatprep.mubr.bf16.mxu0 0
          %2209 = vmatmul.mubr.bf16.gmra.mxu0 %v699
          %v2210 = vpop.f32.mrf.mxu0
          %v2211 = vadd.f32 0.0, %v2210
          %v2212 = vpop.f32.mrf.mxu0
          %v2213 = vpop.f32.mrf.mxu0
          %v2214 = vadd.f32 0.0, %v2213
          %v2215 = vpop.f32.mrf.mxu0
          %2216 = vmatprep.mubr.bf16.mxu0 0
          %2217 = vmatmul.mubr.bf16.gmra.mxu0 %v700
          %v2218 = vpop.f32.mrf.mxu0
          %v2219 = vadd.f32 0.0, %v2218
          %v2220 = vpop.f32.mrf.mxu0
          %v2221 = vpop.f32.mrf.mxu0
          %v2222 = vadd.f32 0.0, %v2221
          %v2223 = vpop.f32.mrf.mxu0
          %2224 = vmatprep.mubr.bf16.mxu0 0
          %2225 = vmatmul.mubr.bf16.gmra.mxu0 %v701
          %v2226 = vpop.f32.mrf.mxu0
          %v2227 = vadd.f32 0.0, %v2226
          %v2228 = vpop.f32.mrf.mxu0
          %v2229 = vpop.f32.mrf.mxu0
          %v2230 = vadd.f32 0.0, %v2229
          %v2231 = vpop.f32.mrf.mxu0
          %2232 = vmatprep.mubr.bf16.mxu0 0
          %2233 = vmatmul.mubr.bf16.gmra.mxu0 %v702
          %v2234 = vpop.f32.mrf.mxu0
          %v2235 = vadd.f32 0.0, %v2234
          %v2236 = vpop.f32.mrf.mxu0
          %v2237 = vpop.f32.mrf.mxu0
          %v2238 = vadd.f32 0.0, %v2237
          %v2239 = vpop.f32.mrf.mxu0
          %2240 = vmatprep.mubr.bf16.mxu0 0
          %2241 = vmatmul.mubr.bf16.gmra.mxu0 %v703
          %v2242 = vpop.f32.mrf.mxu0
          %v2243 = vadd.f32 0.0, %v2242
          %v2244 = vpop.f32.mrf.mxu0
          %v2245 = vpop.f32.mrf.mxu0
          %v2246 = vadd.f32 0.0, %v2245
          %v2247 = vpop.f32.mrf.mxu0
          %2248 = vmatprep.mubr.bf16.mxu0 0
          %2249 = vmatmul.mubr.bf16.gmra.mxu0 %v704
          %v2250 = vpop.f32.mrf.mxu0
          %v2251 = vadd.f32 0.0, %v2250
          %v2252 = vpop.f32.mrf.mxu0
          %v2253 = vpop.f32.mrf.mxu0
          %v2254 = vadd.f32 0.0, %v2253
          %v2255 = vpop.f32.mrf.mxu0
          %2256 = vmatprep.mubr.bf16.mxu0 0
          %2257 = vmatmul.mubr.bf16.gmra.mxu0 %v705
          %v2258 = vpop.f32.mrf.mxu0
          %v2259 = vadd.f32 0.0, %v2258
          %v2260 = vpop.f32.mrf.mxu0
          %v2261 = vpop.f32.mrf.mxu0
          %v2262 = vadd.f32 0.0, %v2261
          %v2263 = vpop.f32.mrf.mxu0
          %2264 = vdwg.mxu0
          %v2265 = vld [vmem:[%s9] sm:$0x3]
          %v2267 = vlaneseq
          %v2268 = vshrl.u32 %v2267, 7
          %v2269 = vsub.s32 0, %v2268
          %v2270 = vrot.slane %v2265, %v2269
          %v2271 = vlaneseq
          %v2272 = vshrl.u32 %v2271, 7
          %v2273 = vsub.s32 1, %v2272
          %v2274 = vrot.slane %v2265, %v2273
          %v2277 = vadd.f32 %v2042, %v2270
          %v2278 = vadd.f32 %v2203, %v2274
          %v2279 = vadd.f32 %v2045, %v2270
          %v2280 = vadd.f32 %v2206, %v2274
          %v2281 = vadd.f32 %v2050, %v2270
          %v2282 = vadd.f32 %v2211, %v2274
          %v2283 = vadd.f32 %v2053, %v2270
          %v2284 = vadd.f32 %v2214, %v2274
          %v2285 = vadd.f32 %v2058, %v2270
          %v2286 = vadd.f32 %v2219, %v2274
          %v2287 = vadd.f32 %v2061, %v2270
          %v2288 = vadd.f32 %v2222, %v2274
          %v2289 = vadd.f32 %v2066, %v2270
          %v2290 = vadd.f32 %v2227, %v2274
          %v2291 = vadd.f32 %v2069, %v2270
          %v2292 = vadd.f32 %v2230, %v2274
          %v2293 = vadd.f32 %v2074, %v2270
          %v2294 = vadd.f32 %v2235, %v2274
          %v2295 = vadd.f32 %v2077, %v2270
          %v2296 = vadd.f32 %v2238, %v2274
          %v2297 = vadd.f32 %v2082, %v2270
          %v2298 = vadd.f32 %v2243, %v2274
          %v2299 = vadd.f32 %v2085, %v2270
          %v2300 = vadd.f32 %v2246, %v2274
          %v2301 = vadd.f32 %v2090, %v2270
          %v2302 = vadd.f32 %v2251, %v2274
          %v2303 = vadd.f32 %v2093, %v2270
          %v2304 = vadd.f32 %v2254, %v2274
          %v2305 = vadd.f32 %v2098, %v2270
          %v2306 = vadd.f32 %v2259, %v2274
          %v2307 = vadd.f32 %v2101, %v2270
          %v2308 = vadd.f32 %v2262, %v2274
          %v2309 = vpack.c.bf16 %v2279, %v2277
          %v2310 = vpack.c.bf16 %v2280, %v2278
          %v2311 = vpack.c.bf16 %v2283, %v2281
          %v2312 = vpack.c.bf16 %v2284, %v2282
          %v2313 = vpack.c.bf16 %v2287, %v2285
          %v2314 = vpack.c.bf16 %v2288, %v2286
          %v2315 = vpack.c.bf16 %v2291, %v2289
          %v2316 = vpack.c.bf16 %v2292, %v2290
          %v2317 = vpack.c.bf16 %v2295, %v2293
          %v2318 = vpack.c.bf16 %v2296, %v2294
          %v2319 = vpack.c.bf16 %v2299, %v2297
          %v2320 = vpack.c.bf16 %v2300, %v2298
          %v2321 = vpack.c.bf16 %v2303, %v2301
          %v2322 = vpack.c.bf16 %v2304, %v2302
          %v2323 = vpack.c.bf16 %v2307, %v2305
          %v2324 = vpack.c.bf16 %v2308, %v2306
          %2325 = vmatprep.subr.bf16.mxu0 %v2324
          %2326 = vmatpush1.bf16.msra.mxu0 %v2323
          %2327 = vmatprep.subr.bf16.mxu0 %v2322
          %2328 = vmatpush1.bf16.msra.mxu0 %v2321
          %2329 = vmatprep.subr.bf16.mxu0 %v2320
          %2330 = vmatpush1.bf16.msra.mxu0 %v2319
          %2331 = vmatprep.subr.bf16.mxu0 %v2318
          %2332 = vmatpush1.bf16.msra.mxu0 %v2317
          %2333 = vmatprep.subr.bf16.mxu0 %v2316
          %2334 = vmatpush1.bf16.msra.mxu0 %v2315
          %2335 = vmatprep.subr.bf16.mxu0 %v2314
          %2336 = vmatpush1.bf16.msra.mxu0 %v2313
          %2337 = vmatprep.subr.bf16.mxu0 %v2312
          %2338 = vmatpush1.bf16.msra.mxu0 %v2311
          %2339 = vmatprep.subr.bf16.mxu0 %v2310
          %2340 = vmatpush1.bf16.msra.mxu0 %v2309
          %2341 = vmatprep.subr.bf16.mxu0 0
          %2342 = vmatpush2.bf16.msra.mxu0 0
          %2343 = vmatprep.subr.bf16.mxu0 0
          %2344 = vmatpush2.bf16.msra.mxu0 0
          %2345 = vmatprep.subr.bf16.mxu0 0
          %2346 = vmatpush2.bf16.msra.mxu0 0
          %2347 = vmatprep.subr.bf16.mxu0 0
          %2348 = vmatpush2.bf16.msra.mxu0 0
          %2349 = vmatprep.subr.bf16.mxu0 0
          %2350 = vmatpush2.bf16.msra.mxu0 0
          %2351 = vmatprep.subr.bf16.mxu0 0
          %2352 = vmatpush2.bf16.msra.mxu0 0
          %2353 = vmatprep.subr.bf16.mxu0 0
          %2354 = vmatpush2.bf16.msra.mxu0 0
          %2355 = vmatprep.subr.bf16.mxu0 0
          %2356 = vmatpush2.bf16.msra.mxu0 0
          %2357 = vmatprep.mubr.bf16.mxu0 0
          %2358 = vmatmul.mubr.bf16.gmra.mxu0 %v1927
          %v2359 = vpop.f32.mrf.mxu0
          %v2360 = vadd.f32 0.0, %v2359
          %v2361 = vpop.f32.mrf.mxu0
          %v2362 = vadd.f32 0.0, %v2361
          %v2363 = vpop.f32.mrf.mxu0
          %v2364 = vadd.f32 0.0, %v2363
          %v2365 = vpop.f32.mrf.mxu0
          %v2366 = vadd.f32 0.0, %v2365
          %2367 = vmatprep.mubr.bf16.mxu0 0
          %2368 = vmatmul.mubr.bf16.gmra.mxu0 %v1928
          %v2369 = vpop.f32.mrf.mxu0
          %v2370 = vadd.f32 0.0, %v2369
          %v2371 = vpop.f32.mrf.mxu0
          %v2372 = vadd.f32 0.0, %v2371
          %v2373 = vpop.f32.mrf.mxu0
          %v2374 = vadd.f32 0.0, %v2373
          %v2375 = vpop.f32.mrf.mxu0
          %v2376 = vadd.f32 0.0, %v2375
          %2377 = vmatprep.mubr.bf16.mxu0 0
          %2378 = vmatmul.mubr.bf16.gmra.mxu0 %v1929
          %v2379 = vpop.f32.mrf.mxu0
          %v2380 = vadd.f32 0.0, %v2379
          %v2381 = vpop.f32.mrf.mxu0
          %v2382 = vadd.f32 0.0, %v2381
          %v2383 = vpop.f32.mrf.mxu0
          %v2384 = vadd.f32 0.0, %v2383
          %v2385 = vpop.f32.mrf.mxu0
          %v2386 = vadd.f32 0.0, %v2385
          %2387 = vmatprep.mubr.bf16.mxu0 0
          %2388 = vmatmul.mubr.bf16.gmra.mxu0 %v1930
          %v2389 = vpop.f32.mrf.mxu0
          %v2390 = vadd.f32 0.0, %v2389
          %v2391 = vpop.f32.mrf.mxu0
          %v2392 = vadd.f32 0.0, %v2391
          %v2393 = vpop.f32.mrf.mxu0
          %v2394 = vadd.f32 0.0, %v2393
          %v2395 = vpop.f32.mrf.mxu0
          %v2396 = vadd.f32 0.0, %v2395
          %2397 = vmatprep.mubr.bf16.mxu0 0
          %2398 = vmatmul.mubr.bf16.gmra.mxu0 %v1931
          %v2399 = vpop.f32.mrf.mxu0
          %v2400 = vadd.f32 0.0, %v2399
          %v2401 = vpop.f32.mrf.mxu0
          %v2402 = vadd.f32 0.0, %v2401
          %v2403 = vpop.f32.mrf.mxu0
          %v2404 = vadd.f32 0.0, %v2403
          %v2405 = vpop.f32.mrf.mxu0
          %v2406 = vadd.f32 0.0, %v2405
          %2407 = vmatprep.mubr.bf16.mxu0 0
          %2408 = vmatmul.mubr.bf16.gmra.mxu0 %v1932
          %v2409 = vpop.f32.mrf.mxu0
          %v2410 = vadd.f32 0.0, %v2409
          %v2411 = vpop.f32.mrf.mxu0
          %v2412 = vadd.f32 0.0, %v2411
          %v2413 = vpop.f32.mrf.mxu0
          %v2414 = vadd.f32 0.0, %v2413
          %v2415 = vpop.f32.mrf.mxu0
          %v2416 = vadd.f32 0.0, %v2415
          %2417 = vmatprep.mubr.bf16.mxu0 0
          %2418 = vmatmul.mubr.bf16.gmra.mxu0 %v1933
          %v2419 = vpop.f32.mrf.mxu0
          %v2420 = vadd.f32 0.0, %v2419
          %v2421 = vpop.f32.mrf.mxu0
          %v2422 = vadd.f32 0.0, %v2421
          %v2423 = vpop.f32.mrf.mxu0
          %v2424 = vadd.f32 0.0, %v2423
          %v2425 = vpop.f32.mrf.mxu0
          %v2426 = vadd.f32 0.0, %v2425
          %2427 = vmatprep.mubr.bf16.mxu0 0
          %2428 = vmatmul.mubr.bf16.gmra.mxu0 %v1934
          %v2429 = vpop.f32.mrf.mxu0
          %v2430 = vadd.f32 0.0, %v2429
          %v2431 = vpop.f32.mrf.mxu0
          %v2432 = vadd.f32 0.0, %v2431
          %v2433 = vpop.f32.mrf.mxu0
          %v2434 = vadd.f32 0.0, %v2433
          %v2435 = vpop.f32.mrf.mxu0
          %v2436 = vadd.f32 0.0, %v2435
          %2437 = vdwg.mxu0
          %v2438 = vpack.c.bf16 %v2364, %v2360
          %v2439 = vpack.c.bf16 %v2366, %v2362
          %v2440 = vpack.c.bf16 %v2374, %v2370
          %v2441 = vpack.c.bf16 %v2376, %v2372
          %v2442 = vpack.c.bf16 %v2384, %v2380
          %v2443 = vpack.c.bf16 %v2386, %v2382
          %v2444 = vpack.c.bf16 %v2394, %v2390
          %v2445 = vpack.c.bf16 %v2396, %v2392
          %v2446 = vpack.c.bf16 %v2404, %v2400
          %v2447 = vpack.c.bf16 %v2406, %v2402
          %v2448 = vpack.c.bf16 %v2414, %v2410
          %v2449 = vpack.c.bf16 %v2416, %v2412
          %v2450 = vpack.c.bf16 %v2424, %v2420
          %v2451 = vpack.c.bf16 %v2426, %v2422
          %v2452 = vpack.c.bf16 %v2434, %v2430
          %v2453 = vpack.c.bf16 %v2436, %v2432
          %v2454 = vmul.f32 %v1895, %v2277
          %v2455 = vmul.f32 %v1895, %v2278
          %v2456 = vmul.f32 %v1896, %v2279
          %v2457 = vmul.f32 %v1896, %v2280
          %v2458 = vmul.f32 %v1897, %v2281
          %v2459 = vmul.f32 %v1897, %v2282
          %v2460 = vmul.f32 %v1898, %v2283
          %v2461 = vmul.f32 %v1898, %v2284
          %v2462 = vmul.f32 %v1899, %v2285
          %v2463 = vmul.f32 %v1899, %v2286
          %v2464 = vmul.f32 %v1900, %v2287
          %v2465 = vmul.f32 %v1900, %v2288
          %v2466 = vmul.f32 %v1901, %v2289
          %v2467 = vmul.f32 %v1901, %v2290
          %v2468 = vmul.f32 %v1902, %v2291
          %v2469 = vmul.f32 %v1902, %v2292
          %v2470 = vmul.f32 %v1903, %v2293
          %v2471 = vmul.f32 %v1903, %v2294
          %v2472 = vmul.f32 %v1904, %v2295
          %v2473 = vmul.f32 %v1904, %v2296
          %v2474 = vmul.f32 %v1905, %v2297
          %v2475 = vmul.f32 %v1905, %v2298
          %v2476 = vmul.f32 %v1906, %v2299
          %v2477 = vmul.f32 %v1906, %v2300
          %v2478 = vmul.f32 %v1907, %v2301
          %v2479 = vmul.f32 %v1907, %v2302
          %v2480 = vmul.f32 %v1908, %v2303
          %v2481 = vmul.f32 %v1908, %v2304
          %v2482 = vmul.f32 %v1909, %v2305
          %v2483 = vmul.f32 %v1909, %v2306
          %v2484 = vmul.f32 %v1910, %v2307
          %v2485 = vmul.f32 %v1910, %v2308
          %v2486 = vadd.f32 %v2454, %v2456
          %v2487 = vadd.f32 %v2486, %v2458
          %v2488 = vadd.f32 %v2487, %v2460
          %v2489 = vadd.f32 %v2488, %v2462
          %v2490 = vadd.f32 %v2489, %v2464
          %v2491 = vadd.f32 %v2490, %v2466
          %v2492 = vadd.f32 %v2491, %v2468
          %v2493 = vadd.f32 %v2492, %v2470
          %v2494 = vadd.f32 %v2493, %v2472
          %v2495 = vadd.f32 %v2494, %v2474
          %v2496 = vadd.f32 %v2495, %v2476
          %v2497 = vadd.f32 %v2496, %v2478
          %v2498 = vadd.f32 %v2497, %v2480
          %v2499 = vadd.f32 %v2498, %v2482
          %v2500 = vadd.f32 %v2499, %v2484
          %v2501 = vrot.slane %v2500, 4
          %v2502 = vadd.f32 %v2500, %v2501
          %v2503 = vrot.slane %v2502, 2
          %v2504 = vadd.f32 %v2502, %v2503
          %v2505 = vrot.slane %v2504, 1
          %v2506 = vadd.f32 %v2504, %v2505
          %v2507 = vadd.f32 %v2455, %v2457
          %v2508 = vadd.f32 %v2507, %v2459
          %v2509 = vadd.f32 %v2508, %v2461
          %v2510 = vadd.f32 %v2509, %v2463
          %v2511 = vadd.f32 %v2510, %v2465
          %v2512 = vadd.f32 %v2511, %v2467
          %v2513 = vadd.f32 %v2512, %v2469
          %v2514 = vadd.f32 %v2513, %v2471
          %v2515 = vadd.f32 %v2514, %v2473
          %v2516 = vadd.f32 %v2515, %v2475
          %v2517 = vadd.f32 %v2516, %v2477
          %v2518 = vadd.f32 %v2517, %v2479
          %v2519 = vadd.f32 %v2518, %v2481
          %v2520 = vadd.f32 %v2519, %v2483
          %v2521 = vadd.f32 %v2520, %v2485
          %v2522 = vrot.slane %v2521, 4
          %v2523 = vadd.f32 %v2521, %v2522
          %v2524 = vrot.slane %v2523, 2
          %v2525 = vadd.f32 %v2523, %v2524
          %v2526 = vrot.slane %v2525, 1
          %v2527 = vadd.f32 %v2525, %v2526
          %v2528 = vmul.f32 %v1895, %v2506
          %v2529 = vmul.f32 %v1895, %v2527
          %v2530 = vmul.f32 %v1896, %v2506
          %v2531 = vmul.f32 %v1896, %v2527
          %v2532 = vmul.f32 %v1897, %v2506
          %v2533 = vmul.f32 %v1897, %v2527
          %v2534 = vmul.f32 %v1898, %v2506
          %v2535 = vmul.f32 %v1898, %v2527
          %v2536 = vmul.f32 %v1899, %v2506
          %v2537 = vmul.f32 %v1899, %v2527
          %v2538 = vmul.f32 %v1900, %v2506
          %v2539 = vmul.f32 %v1900, %v2527
          %v2540 = vmul.f32 %v1901, %v2506
          %v2541 = vmul.f32 %v1901, %v2527
          %v2542 = vmul.f32 %v1902, %v2506
          %v2543 = vmul.f32 %v1902, %v2527
          %v2544 = vmul.f32 %v1903, %v2506
          %v2545 = vmul.f32 %v1903, %v2527
          %v2546 = vmul.f32 %v1904, %v2506
          %v2547 = vmul.f32 %v1904, %v2527
          %v2548 = vmul.f32 %v1905, %v2506
          %v2549 = vmul.f32 %v1905, %v2527
          %v2550 = vmul.f32 %v1906, %v2506
          %v2551 = vmul.f32 %v1906, %v2527
          %v2552 = vmul.f32 %v1907, %v2506
          %v2553 = vmul.f32 %v1907, %v2527
          %v2554 = vmul.f32 %v1908, %v2506
          %v2555 = vmul.f32 %v1908, %v2527
          %v2556 = vmul.f32 %v1909, %v2506
          %v2557 = vmul.f32 %v1909, %v2527
          %v2558 = vmul.f32 %v1910, %v2506
          %v2559 = vmul.f32 %v1910, %v2527
          %2560 = vmatprep.subr.bf16.mxu0 %v2453
          %2561 = vmatpush1.bf16.msra.mxu0 %v2452
          %2562 = vmatprep.subr.bf16.mxu0 %v2451
          %2563 = vmatpush1.bf16.msra.mxu0 %v2450
          %2564 = vmatprep.subr.bf16.mxu0 %v2449
          %2565 = vmatpush1.bf16.msra.mxu0 %v2448
          %2566 = vmatprep.subr.bf16.mxu0 %v2447
          %2567 = vmatpush1.bf16.msra.mxu0 %v2446
          %2568 = vmatprep.subr.bf16.mxu0 %v2445
          %2569 = vmatpush1.bf16.msra.mxu0 %v2444
          %2570 = vmatprep.subr.bf16.mxu0 %v2443
          %2571 = vmatpush1.bf16.msra.mxu0 %v2442
          %2572 = vmatprep.subr.bf16.mxu0 %v2441
          %2573 = vmatpush1.bf16.msra.mxu0 %v2440
          %2574 = vmatprep.subr.bf16.mxu0 %v2439
          %2575 = vmatpush1.bf16.msra.mxu0 %v2438
          %2576 = vmatprep.subr.bf16.mxu0 0
          %2577 = vmatpush2.bf16.msra.mxu0 0
          %2578 = vmatprep.subr.bf16.mxu0 0
          %2579 = vmatpush2.bf16.msra.mxu0 0
          %2580 = vmatprep.subr.bf16.mxu0 0
          %2581 = vmatpush2.bf16.msra.mxu0 0
          %2582 = vmatprep.subr.bf16.mxu0 0
          %2583 = vmatpush2.bf16.msra.mxu0 0
          %2584 = vmatprep.subr.bf16.mxu0 0
          %2585 = vmatpush2.bf16.msra.mxu0 0
          %2586 = vmatprep.subr.bf16.mxu0 0
          %2587 = vmatpush2.bf16.msra.mxu0 0
          %2588 = vmatprep.subr.bf16.mxu0 0
          %2589 = vmatpush2.bf16.msra.mxu0 0
          %2590 = vmatprep.subr.bf16.mxu0 0
          %2591 = vmatpush2.bf16.msra.mxu0 0
          %2592 = vmatprep.mubr.bf16.mxu0 0
          %2593 = vmatmul.mubr.bf16.gmra.mxu0 %v1911
          %v2594 = vpop.f32.mrf.mxu0
          %v2595 = vadd.f32 %v2528, %v2594
          %v2596 = vpop.f32.mrf.mxu0
          %v2597 = vadd.f32 %v2529, %v2596
          %v2598 = vpop.f32.mrf.mxu0
          %v2599 = vadd.f32 %v2530, %v2598
          %v2600 = vpop.f32.mrf.mxu0
          %v2601 = vadd.f32 %v2531, %v2600
          %2602 = vmatprep.mubr.bf16.mxu0 0
          %2603 = vmatmul.mubr.bf16.gmra.mxu0 %v1912
          %v2604 = vpop.f32.mrf.mxu0
          %v2605 = vadd.f32 %v2532, %v2604
          %v2606 = vpop.f32.mrf.mxu0
          %v2607 = vadd.f32 %v2533, %v2606
          %v2608 = vpop.f32.mrf.mxu0
          %v2609 = vadd.f32 %v2534, %v2608
          %v2610 = vpop.f32.mrf.mxu0
          %v2611 = vadd.f32 %v2535, %v2610
          %2612 = vmatprep.mubr.bf16.mxu0 0
          %2613 = vmatmul.mubr.bf16.gmra.mxu0 %v1913
          %v2614 = vpop.f32.mrf.mxu0
          %v2615 = vadd.f32 %v2536, %v2614
          %v2616 = vpop.f32.mrf.mxu0
          %v2617 = vadd.f32 %v2537, %v2616
          %v2618 = vpop.f32.mrf.mxu0
          %v2619 = vadd.f32 %v2538, %v2618
          %v2620 = vpop.f32.mrf.mxu0
          %v2621 = vadd.f32 %v2539, %v2620
          %2622 = vmatprep.mubr.bf16.mxu0 0
          %2623 = vmatmul.mubr.bf16.gmra.mxu0 %v1914
          %v2624 = vpop.f32.mrf.mxu0
          %v2625 = vadd.f32 %v2540, %v2624
          %v2626 = vpop.f32.mrf.mxu0
          %v2627 = vadd.f32 %v2541, %v2626
          %v2628 = vpop.f32.mrf.mxu0
          %v2629 = vadd.f32 %v2542, %v2628
          %v2630 = vpop.f32.mrf.mxu0
          %v2631 = vadd.f32 %v2543, %v2630
          %2632 = vmatprep.mubr.bf16.mxu0 0
          %2633 = vmatmul.mubr.bf16.gmra.mxu0 %v1915
          %v2634 = vpop.f32.mrf.mxu0
          %v2635 = vadd.f32 %v2544, %v2634
          %v2636 = vpop.f32.mrf.mxu0
          %v2637 = vadd.f32 %v2545, %v2636
          %v2638 = vpop.f32.mrf.mxu0
          %v2639 = vadd.f32 %v2546, %v2638
          %v2640 = vpop.f32.mrf.mxu0
          %v2641 = vadd.f32 %v2547, %v2640
          %2642 = vmatprep.mubr.bf16.mxu0 0
          %2643 = vmatmul.mubr.bf16.gmra.mxu0 %v1916
          %v2644 = vpop.f32.mrf.mxu0
          %v2645 = vadd.f32 %v2548, %v2644
          %v2646 = vpop.f32.mrf.mxu0
          %v2647 = vadd.f32 %v2549, %v2646
          %v2648 = vpop.f32.mrf.mxu0
          %v2649 = vadd.f32 %v2550, %v2648
          %v2650 = vpop.f32.mrf.mxu0
          %v2651 = vadd.f32 %v2551, %v2650
          %2652 = vmatprep.mubr.bf16.mxu0 0
          %2653 = vmatmul.mubr.bf16.gmra.mxu0 %v1917
          %v2654 = vpop.f32.mrf.mxu0
          %v2655 = vadd.f32 %v2552, %v2654
          %v2656 = vpop.f32.mrf.mxu0
          %v2657 = vadd.f32 %v2553, %v2656
          %v2658 = vpop.f32.mrf.mxu0
          %v2659 = vadd.f32 %v2554, %v2658
          %v2660 = vpop.f32.mrf.mxu0
          %v2661 = vadd.f32 %v2555, %v2660
          %2662 = vmatprep.mubr.bf16.mxu0 0
          %2663 = vmatmul.mubr.bf16.gmra.mxu0 %v1918
          %v2664 = vpop.f32.mrf.mxu0
          %v2665 = vadd.f32 %v2556, %v2664
          %v2666 = vpop.f32.mrf.mxu0
          %v2667 = vadd.f32 %v2557, %v2666
          %v2668 = vpop.f32.mrf.mxu0
          %v2669 = vadd.f32 %v2558, %v2668
          %v2670 = vpop.f32.mrf.mxu0
          %v2671 = vadd.f32 %v2559, %v2670
          %2672 = vdwg.mxu0
          %v2673 = vmax.f32 %v2595, 0.0
          %v2674 = vmax.f32 %v2597, 0.0
          %v2675 = vmax.f32 %v2599, 0.0
          %v2676 = vmax.f32 %v2601, 0.0
          %v2677 = vmax.f32 %v2605, 0.0
          %v2678 = vmax.f32 %v2607, 0.0
          %v2679 = vmax.f32 %v2609, 0.0
          %v2680 = vmax.f32 %v2611, 0.0
          %v2681 = vmax.f32 %v2615, 0.0
          %v2682 = vmax.f32 %v2617, 0.0
          %v2683 = vmax.f32 %v2619, 0.0
          %v2684 = vmax.f32 %v2621, 0.0
          %v2685 = vmax.f32 %v2625, 0.0
          %v2686 = vmax.f32 %v2627, 0.0
          %v2687 = vmax.f32 %v2629, 0.0
          %v2688 = vmax.f32 %v2631, 0.0
          %v2689 = vmax.f32 %v2635, 0.0
          %v2690 = vmax.f32 %v2637, 0.0
          %v2691 = vmax.f32 %v2639, 0.0
          %v2692 = vmax.f32 %v2641, 0.0
          %v2693 = vmax.f32 %v2645, 0.0
          %v2694 = vmax.f32 %v2647, 0.0
          %v2695 = vmax.f32 %v2649, 0.0
          %v2696 = vmax.f32 %v2651, 0.0
          %v2697 = vmax.f32 %v2655, 0.0
          %v2698 = vmax.f32 %v2657, 0.0
          %v2699 = vmax.f32 %v2659, 0.0
          %v2700 = vmax.f32 %v2661, 0.0
          %v2701 = vmax.f32 %v2665, 0.0
          %v2702 = vmax.f32 %v2667, 0.0
          %v2703 = vmax.f32 %v2669, 0.0
          %v2704 = vmax.f32 %v2671, 0.0
          %v2705 = vadd.f32 %v2673, %v2674
          %v2706 = vadd.f32 %v2675, %v2676
          %v2707 = vadd.f32 %v2677, %v2678
          %v2708 = vadd.f32 %v2679, %v2680
          %v2709 = vadd.f32 %v2681, %v2682
          %v2710 = vadd.f32 %v2683, %v2684
          %v2711 = vadd.f32 %v2685, %v2686
          %v2712 = vadd.f32 %v2687, %v2688
          %v2713 = vadd.f32 %v2689, %v2690
          %v2714 = vadd.f32 %v2691, %v2692
          %v2715 = vadd.f32 %v2693, %v2694
          %v2716 = vadd.f32 %v2695, %v2696
          %v2717 = vadd.f32 %v2697, %v2698
          %v2718 = vadd.f32 %v2699, %v2700
          %v2719 = vadd.f32 %v2701, %v2702
          %v2720 = vadd.f32 %v2703, %v2704
          %v2721 = vld [vmem:[#allocation15] sm:$0xf]
          %v2722 = vld [vmem:[#allocation15 + $0x4] sm:$0xf]
          %v2723 = vld [vmem:[#allocation15 + $0x8] sm:$0xf]
          %v2724 = vld [vmem:[#allocation15 + $0xc] sm:$0xf]
          %v2725 = vld [vmem:[#allocation15 + $0x10] sm:$0xf]
          %v2726 = vld [vmem:[#allocation15 + $0x14] sm:$0xf]
          %v2727 = vld [vmem:[#allocation15 + $0x18] sm:$0xf]
          %v2728 = vld [vmem:[#allocation15 + $0x1c] sm:$0xf]
          %v2729 = vld [vmem:[#allocation15 + $0x20] sm:$0xf]
          %v2730 = vld [vmem:[#allocation15 + $0x24] sm:$0xf]
          %v2731 = vld [vmem:[#allocation15 + $0x28] sm:$0xf]
          %v2732 = vld [vmem:[#allocation15 + $0x2c] sm:$0xf]
          %v2733 = vld [vmem:[#allocation15 + $0x30] sm:$0xf]
          %v2734 = vld [vmem:[#allocation15 + $0x34] sm:$0xf]
          %v2735 = vld [vmem:[#allocation15 + $0x38] sm:$0xf]
          %v2736 = vld [vmem:[#allocation15 + $0x3c] sm:$0xf]
          %v2737 = vpack.c.bf16 %v2706, %v2705
          %v2738 = vpack.c.bf16 %v2708, %v2707
          %v2739 = vpack.c.bf16 %v2710, %v2709
          %v2740 = vpack.c.bf16 %v2712, %v2711
          %v2741 = vpack.c.bf16 %v2714, %v2713
          %v2742 = vpack.c.bf16 %v2716, %v2715
          %v2743 = vpack.c.bf16 %v2718, %v2717
          %v2744 = vpack.c.bf16 %v2720, %v2719
          %v2745 = vld [vmem:[%s11] sm:$0x1]
          %v2747 = vlaneseq
          %v2748 = vshrl.u32 %v2747, 7
          %v2749 = vsub.s32 0, %v2748
          %v2750 = vrot.slane %v2745, %v2749
          %v2768 = vunpack.c.l.b16 %v2721
          %v2769 = vunpack.c.l.b16 %v2722
          %v2770 = vunpack.c.l.b16 %v2723
          %v2771 = vunpack.c.l.b16 %v2724
          %v2772 = vunpack.c.l.b16 %v2725
          %v2773 = vunpack.c.l.b16 %v2726
          %v2774 = vunpack.c.l.b16 %v2727
          %v2775 = vunpack.c.l.b16 %v2728
          %v2776 = vunpack.c.l.b16 %v2729
          %v2777 = vunpack.c.l.b16 %v2730
          %v2778 = vunpack.c.l.b16 %v2731
          %v2779 = vunpack.c.l.b16 %v2732
          %v2780 = vunpack.c.l.b16 %v2733
          %v2781 = vunpack.c.l.b16 %v2734
          %v2782 = vunpack.c.l.b16 %v2735
          %v2783 = vunpack.c.l.b16 %v2736
          %v2784 = vpack.c.b16 %v2769, %v2768
          %v2785 = vpack.c.b16 %v2771, %v2770
          %v2786 = vpack.c.b16 %v2773, %v2772
          %v2787 = vpack.c.b16 %v2775, %v2774
          %v2788 = vpack.c.b16 %v2777, %v2776
          %v2789 = vpack.c.b16 %v2779, %v2778
          %v2790 = vpack.c.b16 %v2781, %v2780
          %v2791 = vpack.c.b16 %v2783, %v2782
          %2800 = vmatprep.subr.bf16.mxu0 0
          %2801 = vmatpush1.bf16.msra.mxu0 %v2791
          %2802 = vmatprep.subr.bf16.mxu0 0
          %2803 = vmatpush1.bf16.msra.mxu0 %v2790
          %2804 = vmatprep.subr.bf16.mxu0 0
          %2805 = vmatpush1.bf16.msra.mxu0 %v2789
          %2806 = vmatprep.subr.bf16.mxu0 0
          %2807 = vmatpush1.bf16.msra.mxu0 %v2788
          %2808 = vmatprep.subr.bf16.mxu0 0
          %2809 = vmatpush1.bf16.msra.mxu0 %v2787
          %2810 = vmatprep.subr.bf16.mxu0 0
          %2811 = vmatpush1.bf16.msra.mxu0 %v2786
          %2812 = vmatprep.subr.bf16.mxu0 0
          %2813 = vmatpush1.bf16.msra.mxu0 %v2785
          %2814 = vmatprep.subr.bf16.mxu0 0
          %2815 = vmatpush1.bf16.msra.mxu0 %v2784
          %2816 = vmatprep.subr.bf16.mxu0 0
          %2817 = vmatpush2.bf16.msra.mxu0 0
          %2818 = vmatprep.subr.bf16.mxu0 0
          %2819 = vmatpush2.bf16.msra.mxu0 0
          %2820 = vmatprep.subr.bf16.mxu0 0
          %2821 = vmatpush2.bf16.msra.mxu0 0
          %2822 = vmatprep.subr.bf16.mxu0 0
          %2823 = vmatpush2.bf16.msra.mxu0 0
          %2824 = vmatprep.subr.bf16.mxu0 0
          %2825 = vmatpush2.bf16.msra.mxu0 0
          %2826 = vmatprep.subr.bf16.mxu0 0
          %2827 = vmatpush2.bf16.msra.mxu0 0
          %2828 = vmatprep.subr.bf16.mxu0 0
          %2829 = vmatpush2.bf16.msra.mxu0 0
          %2830 = vmatprep.subr.bf16.mxu0 0
          %2831 = vmatpush2.bf16.msra.mxu0 0
          %2832 = vmatprep.mubr.bf16.mxu0 0
          %2833 = vmatmul.mubr.bf16.gmra.mxu0 %v2737
          %v2834 = vpop.f32.mrf.mxu0
          %v2835 = vadd.f32 %v2750, %v2834
          %v2836 = vpop.f32.mrf.mxu0
          %v2837 = vpop.f32.mrf.mxu0
          %v2838 = vadd.f32 %v2750, %v2837
          %v2839 = vpop.f32.mrf.mxu0
          %2840 = vmatprep.mubr.bf16.mxu0 0
          %2841 = vmatmul.mubr.bf16.gmra.mxu0 %v2738
          %v2842 = vpop.f32.mrf.mxu0
          %v2843 = vadd.f32 %v2750, %v2842
          %v2844 = vpop.f32.mrf.mxu0
          %v2845 = vpop.f32.mrf.mxu0
          %v2846 = vadd.f32 %v2750, %v2845
          %v2847 = vpop.f32.mrf.mxu0
          %2848 = vmatprep.mubr.bf16.mxu0 0
          %2849 = vmatmul.mubr.bf16.gmra.mxu0 %v2739
          %v2850 = vpop.f32.mrf.mxu0
          %v2851 = vadd.f32 %v2750, %v2850
          %v2852 = vpop.f32.mrf.mxu0
          %v2853 = vpop.f32.mrf.mxu0
          %v2854 = vadd.f32 %v2750, %v2853
          %v2855 = vpop.f32.mrf.mxu0
          %2856 = vmatprep.mubr.bf16.mxu0 0
          %2857 = vmatmul.mubr.bf16.gmra.mxu0 %v2740
          %v2858 = vpop.f32.mrf.mxu0
          %v2859 = vadd.f32 %v2750, %v2858
          %v2860 = vpop.f32.mrf.mxu0
          %v2861 = vpop.f32.mrf.mxu0
          %v2862 = vadd.f32 %v2750, %v2861
          %v2863 = vpop.f32.mrf.mxu0
          %2864 = vmatprep.mubr.bf16.mxu0 0
          %2865 = vmatmul.mubr.bf16.gmra.mxu0 %v2741
          %v2866 = vpop.f32.mrf.mxu0
          %v2867 = vadd.f32 %v2750, %v2866
          %v2868 = vpop.f32.mrf.mxu0
          %v2869 = vpop.f32.mrf.mxu0
          %v2870 = vadd.f32 %v2750, %v2869
          %v2871 = vpop.f32.mrf.mxu0
          %2872 = vmatprep.mubr.bf16.mxu0 0
          %2873 = vmatmul.mubr.bf16.gmra.mxu0 %v2742
          %v2874 = vpop.f32.mrf.mxu0
          %v2875 = vadd.f32 %v2750, %v2874
          %v2876 = vpop.f32.mrf.mxu0
          %v2877 = vpop.f32.mrf.mxu0
          %v2878 = vadd.f32 %v2750, %v2877
          %v2879 = vpop.f32.mrf.mxu0
          %2880 = vmatprep.mubr.bf16.mxu0 0
          %2881 = vmatmul.mubr.bf16.gmra.mxu0 %v2743
          %v2882 = vpop.f32.mrf.mxu0
          %v2883 = vadd.f32 %v2750, %v2882
          %v2884 = vpop.f32.mrf.mxu0
          %v2885 = vpop.f32.mrf.mxu0
          %v2886 = vadd.f32 %v2750, %v2885
          %v2887 = vpop.f32.mrf.mxu0
          %2888 = vmatprep.mubr.bf16.mxu0 0
          %2889 = vmatmul.mubr.bf16.gmra.mxu0 %v2744
          %v2890 = vpop.f32.mrf.mxu0
          %v2891 = vadd.f32 %v2750, %v2890
          %v2892 = vpop.f32.mrf.mxu0
          %v2893 = vpop.f32.mrf.mxu0
          %v2894 = vadd.f32 %v2750, %v2893
          %v2895 = vpop.f32.mrf.mxu0
          %2896 = vdwg.mxu0
          %v2897 = vmul.f32 %v1554, 0.5
          %v2898 = vmul.f32 %v1555, 0.5
          %v2899 = vmul.f32 %v1556, 0.5
          %v2900 = vmul.f32 %v1557, 0.5
          %v2901 = vmul.f32 %v1558, 0.5
          %v2902 = vmul.f32 %v1559, 0.5
          %v2903 = vmul.f32 %v1560, 0.5
          %v2904 = vmul.f32 %v1561, 0.5
          %v2905 = vmul.f32 %v1562, 0.5
          %v2906 = vmul.f32 %v1563, 0.5
          %v2907 = vmul.f32 %v1564, 0.5
          %v2908 = vmul.f32 %v1565, 0.5
          %v2909 = vmul.f32 %v1566, 0.5
          %v2910 = vmul.f32 %v1567, 0.5
          %v2911 = vmul.f32 %v1568, 0.5
          %v2912 = vmul.f32 %v1569, 0.5
          %v2913 = vpack.c.bf16 %v2838, %v2835
          %v2914 = vpack.c.bf16 %v2846, %v2843
          %v2915 = vpack.c.bf16 %v2854, %v2851
          %v2916 = vpack.c.bf16 %v2862, %v2859
          %v2917 = vpack.c.bf16 %v2870, %v2867
          %v2918 = vpack.c.bf16 %v2878, %v2875
          %v2919 = vpack.c.bf16 %v2886, %v2883
          %v2920 = vpack.c.bf16 %v2894, %v2891
          %2921 = vmatprep.subr.bf16.mxu0 0
          %2922 = vmatpush1.bf16.msra.mxu0 %v2920
          %2923 = vmatprep.subr.bf16.mxu0 0
          %2924 = vmatpush1.bf16.msra.mxu0 %v2919
          %2925 = vmatprep.subr.bf16.mxu0 0
          %2926 = vmatpush1.bf16.msra.mxu0 %v2918
          %2927 = vmatprep.subr.bf16.mxu0 0
          %2928 = vmatpush1.bf16.msra.mxu0 %v2917
          %2929 = vmatprep.subr.bf16.mxu0 0
          %2930 = vmatpush1.bf16.msra.mxu0 %v2916
          %2931 = vmatprep.subr.bf16.mxu0 0
          %2932 = vmatpush1.bf16.msra.mxu0 %v2915
          %2933 = vmatprep.subr.bf16.mxu0 0
          %2934 = vmatpush1.bf16.msra.mxu0 %v2914
          %2935 = vmatprep.subr.bf16.mxu0 0
          %2936 = vmatpush1.bf16.msra.mxu0 %v2913
          %2937 = vmatprep.subr.bf16.mxu0 0
          %2938 = vmatpush2.bf16.msra.mxu0 0
          %2939 = vmatprep.subr.bf16.mxu0 0
          %2940 = vmatpush2.bf16.msra.mxu0 0
          %2941 = vmatprep.subr.bf16.mxu0 0
          %2942 = vmatpush2.bf16.msra.mxu0 0
          %2943 = vmatprep.subr.bf16.mxu0 0
          %2944 = vmatpush2.bf16.msra.mxu0 0
          %2945 = vmatprep.subr.bf16.mxu0 0
          %2946 = vmatpush2.bf16.msra.mxu0 0
          %2947 = vmatprep.subr.bf16.mxu0 0
          %2948 = vmatpush2.bf16.msra.mxu0 0
          %2949 = vmatprep.subr.bf16.mxu0 0
          %2950 = vmatpush2.bf16.msra.mxu0 0
          %2951 = vmatprep.subr.bf16.mxu0 0
          %2952 = vmatpush2.bf16.msra.mxu0 0
          %2953 = vmatprep.mubr.bf16.mxu0 0
          %2954 = vmatmul.mubr.bf16.gmra.mxu0 %v1927
          %v2955 = vpop.f32.mrf.mxu0
          %v2956 = vadd.f32 0.0, %v2955
          %v2957 = vpop.f32.mrf.mxu0
          %v2958 = vpop.f32.mrf.mxu0
          %v2959 = vadd.f32 0.0, %v2958
          %v2960 = vpop.f32.mrf.mxu0
          %2961 = vmatprep.mubr.bf16.mxu0 0
          %2962 = vmatmul.mubr.bf16.gmra.mxu0 %v1928
          %v2963 = vpop.f32.mrf.mxu0
          %v2964 = vadd.f32 0.0, %v2963
          %v2965 = vpop.f32.mrf.mxu0
          %v2966 = vpop.f32.mrf.mxu0
          %v2967 = vadd.f32 0.0, %v2966
          %v2968 = vpop.f32.mrf.mxu0
          %2969 = vmatprep.mubr.bf16.mxu0 0
          %2970 = vmatmul.mubr.bf16.gmra.mxu0 %v1929
          %v2971 = vpop.f32.mrf.mxu0
          %v2972 = vadd.f32 0.0, %v2971
          %v2973 = vpop.f32.mrf.mxu0
          %v2974 = vpop.f32.mrf.mxu0
          %v2975 = vadd.f32 0.0, %v2974
          %v2976 = vpop.f32.mrf.mxu0
          %2977 = vmatprep.mubr.bf16.mxu0 0
          %2978 = vmatmul.mubr.bf16.gmra.mxu0 %v1930
          %v2979 = vpop.f32.mrf.mxu0
          %v2980 = vadd.f32 0.0, %v2979
          %v2981 = vpop.f32.mrf.mxu0
          %v2982 = vpop.f32.mrf.mxu0
          %v2983 = vadd.f32 0.0, %v2982
          %v2984 = vpop.f32.mrf.mxu0
          %2985 = vmatprep.mubr.bf16.mxu0 0
          %2986 = vmatmul.mubr.bf16.gmra.mxu0 %v1931
          %v2987 = vpop.f32.mrf.mxu0
          %v2988 = vadd.f32 0.0, %v2987
          %v2989 = vpop.f32.mrf.mxu0
          %v2990 = vpop.f32.mrf.mxu0
          %v2991 = vadd.f32 0.0, %v2990
          %v2992 = vpop.f32.mrf.mxu0
          %2993 = vmatprep.mubr.bf16.mxu0 0
          %2994 = vmatmul.mubr.bf16.gmra.mxu0 %v1932
          %v2995 = vpop.f32.mrf.mxu0
          %v2996 = vadd.f32 0.0, %v2995
          %v2997 = vpop.f32.mrf.mxu0
          %v2998 = vpop.f32.mrf.mxu0
          %v2999 = vadd.f32 0.0, %v2998
          %v3000 = vpop.f32.mrf.mxu0
          %3001 = vmatprep.mubr.bf16.mxu0 0
          %3002 = vmatmul.mubr.bf16.gmra.mxu0 %v1933
          %v3003 = vpop.f32.mrf.mxu0
          %v3004 = vadd.f32 0.0, %v3003
          %v3005 = vpop.f32.mrf.mxu0
          %v3006 = vpop.f32.mrf.mxu0
          %v3007 = vadd.f32 0.0, %v3006
          %v3008 = vpop.f32.mrf.mxu0
          %3009 = vmatprep.mubr.bf16.mxu0 0
          %3010 = vmatmul.mubr.bf16.gmra.mxu0 %v1934
          %v3011 = vpop.f32.mrf.mxu0
          %v3012 = vadd.f32 0.0, %v3011
          %v3013 = vpop.f32.mrf.mxu0
          %v3014 = vpop.f32.mrf.mxu0
          %v3015 = vadd.f32 0.0, %v3014
          %v3016 = vpop.f32.mrf.mxu0
          %3017 = vdwg.mxu0
          %v3018 = vpack.c.bf16 %v2959, %v2956
          %v3019 = vpack.c.bf16 %v2967, %v2964
          %v3020 = vpack.c.bf16 %v2975, %v2972
          %v3021 = vpack.c.bf16 %v2983, %v2980
          %v3022 = vpack.c.bf16 %v2991, %v2988
          %v3023 = vpack.c.bf16 %v2999, %v2996
          %v3024 = vpack.c.bf16 %v3007, %v3004
          %v3025 = vpack.c.bf16 %v3015, %v3012
          %v3026 = vmul.f32 %v1895, %v2835
          %v3027 = vmul.f32 %v1896, %v2838
          %v3028 = vmul.f32 %v1897, %v2843
          %v3029 = vmul.f32 %v1898, %v2846
          %v3030 = vmul.f32 %v1899, %v2851
          %v3031 = vmul.f32 %v1900, %v2854
          %v3032 = vmul.f32 %v1901, %v2859
          %v3033 = vmul.f32 %v1902, %v2862
          %v3034 = vmul.f32 %v1903, %v2867
          %v3035 = vmul.f32 %v1904, %v2870
          %v3036 = vmul.f32 %v1905, %v2875
          %v3037 = vmul.f32 %v1906, %v2878
          %v3038 = vmul.f32 %v1907, %v2883
          %v3039 = vmul.f32 %v1908, %v2886
          %v3040 = vmul.f32 %v1909, %v2891
          %v3041 = vmul.f32 %v1910, %v2894
          %v3042 = vadd.f32 %v3026, %v3027
          %v3043 = vadd.f32 %v3042, %v3028
          %v3044 = vadd.f32 %v3043, %v3029
          %v3045 = vadd.f32 %v3044, %v3030
          %v3046 = vadd.f32 %v3045, %v3031
          %v3047 = vadd.f32 %v3046, %v3032
          %v3048 = vadd.f32 %v3047, %v3033
          %v3049 = vadd.f32 %v3048, %v3034
          %v3050 = vadd.f32 %v3049, %v3035
          %v3051 = vadd.f32 %v3050, %v3036
          %v3052 = vadd.f32 %v3051, %v3037
          %v3053 = vadd.f32 %v3052, %v3038
          %v3054 = vadd.f32 %v3053, %v3039
          %v3055 = vadd.f32 %v3054, %v3040
          %v3056 = vadd.f32 %v3055, %v3041
          %v3057 = vrot.slane %v3056, 4
          %v3058 = vadd.f32 %v3056, %v3057
          %v3059 = vrot.slane %v3058, 2
          %v3060 = vadd.f32 %v3058, %v3059
          %v3061 = vrot.slane %v3060, 1
          %v3062 = vadd.f32 %v3060, %v3061
          %v3063 = vmul.f32 %v1895, %v3062
          %v3064 = vmul.f32 %v1896, %v3062
          %v3065 = vmul.f32 %v1897, %v3062
          %v3066 = vmul.f32 %v1898, %v3062
          %v3067 = vmul.f32 %v1899, %v3062
          %v3068 = vmul.f32 %v1900, %v3062
          %v3069 = vmul.f32 %v1901, %v3062
          %v3070 = vmul.f32 %v1902, %v3062
          %v3071 = vmul.f32 %v1903, %v3062
          %v3072 = vmul.f32 %v1904, %v3062
          %v3073 = vmul.f32 %v1905, %v3062
          %v3074 = vmul.f32 %v1906, %v3062
          %v3075 = vmul.f32 %v1907, %v3062
          %v3076 = vmul.f32 %v1908, %v3062
          %v3077 = vmul.f32 %v1909, %v3062
          %v3078 = vmul.f32 %v1910, %v3062
          %3079 = vmatprep.subr.bf16.mxu0 0
          %3080 = vmatpush1.bf16.msra.mxu0 %v3025
          %3081 = vmatprep.subr.bf16.mxu0 0
          %3082 = vmatpush1.bf16.msra.mxu0 %v3024
          %3083 = vmatprep.subr.bf16.mxu0 0
          %3084 = vmatpush1.bf16.msra.mxu0 %v3023
          %3085 = vmatprep.subr.bf16.mxu0 0
          %3086 = vmatpush1.bf16.msra.mxu0 %v3022
          %3087 = vmatprep.subr.bf16.mxu0 0
          %3088 = vmatpush1.bf16.msra.mxu0 %v3021
          %3089 = vmatprep.subr.bf16.mxu0 0
          %3090 = vmatpush1.bf16.msra.mxu0 %v3020
          %3091 = vmatprep.subr.bf16.mxu0 0
          %3092 = vmatpush1.bf16.msra.mxu0 %v3019
          %3093 = vmatprep.subr.bf16.mxu0 0
          %3094 = vmatpush1.bf16.msra.mxu0 %v3018
          %3095 = vmatprep.subr.bf16.mxu0 0
          %3096 = vmatpush2.bf16.msra.mxu0 0
          %3097 = vmatprep.subr.bf16.mxu0 0
          %3098 = vmatpush2.bf16.msra.mxu0 0
          %3099 = vmatprep.subr.bf16.mxu0 0
          %3100 = vmatpush2.bf16.msra.mxu0 0
          %3101 = vmatprep.subr.bf16.mxu0 0
          %3102 = vmatpush2.bf16.msra.mxu0 0
          %3103 = vmatprep.subr.bf16.mxu0 0
          %3104 = vmatpush2.bf16.msra.mxu0 0
          %3105 = vmatprep.subr.bf16.mxu0 0
          %3106 = vmatpush2.bf16.msra.mxu0 0
          %3107 = vmatprep.subr.bf16.mxu0 0
          %3108 = vmatpush2.bf16.msra.mxu0 0
          %3109 = vmatprep.subr.bf16.mxu0 0
          %3110 = vmatpush2.bf16.msra.mxu0 0
          %3111 = vmatprep.mubr.bf16.mxu0 0
          %3112 = vmatmul.mubr.bf16.gmra.mxu0 %v1911
          %v3113 = vpop.f32.mrf.mxu0
          %v3114 = vadd.f32 %v3063, %v3113
          %v3115 = vpop.f32.mrf.mxu0
          %v3116 = vpop.f32.mrf.mxu0
          %v3117 = vadd.f32 %v3064, %v3116
          %v3118 = vpop.f32.mrf.mxu0
          %3119 = vmatprep.mubr.bf16.mxu0 0
          %3120 = vmatmul.mubr.bf16.gmra.mxu0 %v1912
          %v3121 = vpop.f32.mrf.mxu0
          %v3122 = vadd.f32 %v3065, %v3121
          %v3123 = vpop.f32.mrf.mxu0
          %v3124 = vpop.f32.mrf.mxu0
          %v3125 = vadd.f32 %v3066, %v3124
          %v3126 = vpop.f32.mrf.mxu0
          %3127 = vmatprep.mubr.bf16.mxu0 0
          %3128 = vmatmul.mubr.bf16.gmra.mxu0 %v1913
          %v3129 = vpop.f32.mrf.mxu0
          %v3130 = vadd.f32 %v3067, %v3129
          %v3131 = vpop.f32.mrf.mxu0
          %v3132 = vpop.f32.mrf.mxu0
          %v3133 = vadd.f32 %v3068, %v3132
          %v3134 = vpop.f32.mrf.mxu0
          %3135 = vmatprep.mubr.bf16.mxu0 0
          %3136 = vmatmul.mubr.bf16.gmra.mxu0 %v1914
          %v3137 = vpop.f32.mrf.mxu0
          %v3138 = vadd.f32 %v3069, %v3137
          %v3139 = vpop.f32.mrf.mxu0
          %v3140 = vpop.f32.mrf.mxu0
          %v3141 = vadd.f32 %v3070, %v3140
          %v3142 = vpop.f32.mrf.mxu0
          %3143 = vmatprep.mubr.bf16.mxu0 0
          %3144 = vmatmul.mubr.bf16.gmra.mxu0 %v1915
          %v3145 = vpop.f32.mrf.mxu0
          %v3146 = vadd.f32 %v3071, %v3145
          %v3147 = vpop.f32.mrf.mxu0
          %v3148 = vpop.f32.mrf.mxu0
          %v3149 = vadd.f32 %v3072, %v3148
          %v3150 = vpop.f32.mrf.mxu0
          %3151 = vmatprep.mubr.bf16.mxu0 0
          %3152 = vmatmul.mubr.bf16.gmra.mxu0 %v1916
          %v3153 = vpop.f32.mrf.mxu0
          %v3154 = vadd.f32 %v3073, %v3153
          %v3155 = vpop.f32.mrf.mxu0
          %v3156 = vpop.f32.mrf.mxu0
          %v3157 = vadd.f32 %v3074, %v3156
          %v3158 = vpop.f32.mrf.mxu0
          %3159 = vmatprep.mubr.bf16.mxu0 0
          %3160 = vmatmul.mubr.bf16.gmra.mxu0 %v1917
          %v3161 = vpop.f32.mrf.mxu0
          %v3162 = vadd.f32 %v3075, %v3161
          %v3163 = vpop.f32.mrf.mxu0
          %v3164 = vpop.f32.mrf.mxu0
          %v3165 = vadd.f32 %v3076, %v3164
          %v3166 = vpop.f32.mrf.mxu0
          %3167 = vmatprep.mubr.bf16.mxu0 0
          %3168 = vmatmul.mubr.bf16.gmra.mxu0 %v1918
          %v3169 = vpop.f32.mrf.mxu0
          %v3170 = vadd.f32 %v3077, %v3169
          %v3171 = vpop.f32.mrf.mxu0
          %v3172 = vpop.f32.mrf.mxu0
          %v3173 = vadd.f32 %v3078, %v3172
          %v3174 = vpop.f32.mrf.mxu0
          %3175 = vdwg.mxu0
          %v3176 = vmul.f32 %v3114, 0.5
          %v3177 = vmul.f32 %v3117, 0.5
          %v3178 = vmul.f32 %v3122, 0.5
          %v3179 = vmul.f32 %v3125, 0.5
          %v3180 = vmul.f32 %v3130, 0.5
          %v3181 = vmul.f32 %v3133, 0.5
          %v3182 = vmul.f32 %v3138, 0.5
          %v3183 = vmul.f32 %v3141, 0.5
          %v3184 = vmul.f32 %v3146, 0.5
          %v3185 = vmul.f32 %v3149, 0.5
          %v3186 = vmul.f32 %v3154, 0.5
          %v3187 = vmul.f32 %v3157, 0.5
          %v3188 = vmul.f32 %v3162, 0.5
          %v3189 = vmul.f32 %v3165, 0.5
          %v3190 = vmul.f32 %v3170, 0.5
          %v3191 = vmul.f32 %v3173, 0.5
          %v3192 = vadd.f32 %v2897, %v3176
          %v3193 = vadd.f32 %v2898, %v3177
          %v3194 = vadd.f32 %v2899, %v3178
          %v3195 = vadd.f32 %v2900, %v3179
          %v3196 = vadd.f32 %v2901, %v3180
          %v3197 = vadd.f32 %v2902, %v3181
          %v3198 = vadd.f32 %v2903, %v3182
          %v3199 = vadd.f32 %v2904, %v3183
          %v3200 = vadd.f32 %v2905, %v3184
          %v3201 = vadd.f32 %v2906, %v3185
          %v3202 = vadd.f32 %v2907, %v3186
          %v3203 = vadd.f32 %v2908, %v3187
          %v3204 = vadd.f32 %v2909, %v3188
          %v3205 = vadd.f32 %v2910, %v3189
          %v3206 = vadd.f32 %v2911, %v3190
          %v3207 = vadd.f32 %v2912, %v3191
          %v3208 = vpack.c.bf16 %v3193, %v3192
          %v3209 = vpack.c.bf16 %v3195, %v3194
          %v3210 = vpack.c.bf16 %v3197, %v3196
          %v3211 = vpack.c.bf16 %v3199, %v3198
          %v3212 = vpack.c.bf16 %v3201, %v3200
          %v3213 = vpack.c.bf16 %v3203, %v3202
          %v3214 = vpack.c.bf16 %v3205, %v3204
          %v3215 = vpack.c.bf16 %v3207, %v3206
          %v3224 = vunpack.c.l.b16 %v3208
          %v3225 = vunpack.c.h.b16 %v3208
          %v3226 = vunpack.c.l.b16 %v3209
          %v3227 = vunpack.c.h.b16 %v3209
          %v3228 = vunpack.c.l.b16 %v3210
          %v3229 = vunpack.c.h.b16 %v3210
          %v3230 = vunpack.c.l.b16 %v3211
          %v3231 = vunpack.c.h.b16 %v3211
          %v3232 = vunpack.c.l.b16 %v3212
          %v3233 = vunpack.c.h.b16 %v3212
          %v3234 = vunpack.c.l.b16 %v3213
          %v3235 = vunpack.c.h.b16 %v3213
          %v3236 = vunpack.c.l.b16 %v3214
          %v3237 = vunpack.c.h.b16 %v3214
          %v3238 = vunpack.c.l.b16 %v3215
          %v3239 = vunpack.c.h.b16 %v3215
          %v3240 = vpack.c.b16 %v3224, %v3224
          %v3241 = vpack.c.b16 %v3225, %v3225
          %v3242 = vpack.c.b16 %v3226, %v3226
          %v3243 = vpack.c.b16 %v3227, %v3227
          %v3244 = vpack.c.b16 %v3228, %v3228
          %v3245 = vpack.c.b16 %v3229, %v3229
          %v3246 = vpack.c.b16 %v3230, %v3230
          %v3247 = vpack.c.b16 %v3231, %v3231
          %v3248 = vpack.c.b16 %v3232, %v3232
          %v3249 = vpack.c.b16 %v3233, %v3233
          %v3250 = vpack.c.b16 %v3234, %v3234
          %v3251 = vpack.c.b16 %v3235, %v3235
          %v3252 = vpack.c.b16 %v3236, %v3236
          %v3253 = vpack.c.b16 %v3237, %v3237
          %v3254 = vpack.c.b16 %v3238, %v3238
          %v3255 = vpack.c.b16 %v3239, %v3239
          %3272 = vst [vmem:[#allocation2] sm:$0xf] %v3240
          %3273 = vst [vmem:[#allocation2 + $0x4] sm:$0xf] %v3241
          %3274 = vst [vmem:[#allocation2 + $0x8] sm:$0xf] %v3242
          %3275 = vst [vmem:[#allocation2 + $0xc] sm:$0xf] %v3243
          %3276 = vst [vmem:[#allocation2 + $0x10] sm:$0xf] %v3244
          %3277 = vst [vmem:[#allocation2 + $0x14] sm:$0xf] %v3245
          %3278 = vst [vmem:[#allocation2 + $0x18] sm:$0xf] %v3246
          %3279 = vst [vmem:[#allocation2 + $0x1c] sm:$0xf] %v3247
          %3280 = vst [vmem:[#allocation2 + $0x20] sm:$0xf] %v3248
          %3281 = vst [vmem:[#allocation2 + $0x24] sm:$0xf] %v3249
          %3282 = vst [vmem:[#allocation2 + $0x28] sm:$0xf] %v3250
          %3283 = vst [vmem:[#allocation2 + $0x2c] sm:$0xf] %v3251
          %3284 = vst [vmem:[#allocation2 + $0x30] sm:$0xf] %v3252
          %3285 = vst [vmem:[#allocation2 + $0x34] sm:$0xf] %v3253
          %3286 = vst [vmem:[#allocation2 + $0x38] sm:$0xf] %v3254
          %3287 = vst [vmem:[#allocation2 + $0x3c] sm:$0xf] %v3255
        $region104: #{tpu_custom_call.1} parent=67 // pred_fallthru
          _
        %s3288 = smul.u32 %s40, 128
        %s3289 = sshra.s32 %s3288, 3
        %s3290 = sand.u32 %s3288, 7
        %s3291 = smul.addr %s3289, 4
        %s3292 = scalar_lea.vmem [#allocation2], %s3291
        %v3293 = vld [vmem:[%s3292] sm:$0xf]
        %v3294 = vld [vmem:[%s3292 + $0x4] sm:$0xf]
        %v3295 = vld [vmem:[%s3292 + $0x8] sm:$0xf]
        %v3296 = vld [vmem:[%s3292 + $0xc] sm:$0xf]
        %v3297 = vld [vmem:[%s3292 + $0x10] sm:$0xf]
        %v3298 = vld [vmem:[%s3292 + $0x14] sm:$0xf]
        %v3299 = vld [vmem:[%s3292 + $0x18] sm:$0xf]
        %v3300 = vld [vmem:[%s3292 + $0x1c] sm:$0xf]
        %v3301 = vld [vmem:[%s3292 + $0x20] sm:$0xf]
        %v3302 = vld [vmem:[%s3292 + $0x24] sm:$0xf]
        %v3303 = vld [vmem:[%s3292 + $0x28] sm:$0xf]
        %v3304 = vld [vmem:[%s3292 + $0x2c] sm:$0xf]
        %v3305 = vld [vmem:[%s3292 + $0x30] sm:$0xf]
        %v3306 = vld [vmem:[%s3292 + $0x34] sm:$0xf]
        %v3307 = vld [vmem:[%s3292 + $0x38] sm:$0xf]
        %v3308 = vld [vmem:[%s3292 + $0x3c] sm:$0xf]
        %v3309 = vld [vmem:[#allocation2] sm:$0xf]
        %v3310 = vld [vmem:[#allocation2 + $0x4] sm:$0xf]
        %v3311 = vld [vmem:[#allocation2 + $0x8] sm:$0xf]
        %v3312 = vld [vmem:[#allocation2 + $0xc] sm:$0xf]
        %v3313 = vld [vmem:[#allocation2 + $0x10] sm:$0xf]
        %v3314 = vld [vmem:[#allocation2 + $0x14] sm:$0xf]
        %v3315 = vld [vmem:[#allocation2 + $0x18] sm:$0xf]
        %v3316 = vld [vmem:[#allocation2 + $0x1c] sm:$0xf]
        %v3317 = vld [vmem:[#allocation2 + $0x20] sm:$0xf]
        %v3318 = vld [vmem:[#allocation2 + $0x24] sm:$0xf]
        %v3319 = vld [vmem:[#allocation2 + $0x28] sm:$0xf]
        %v3320 = vld [vmem:[#allocation2 + $0x2c] sm:$0xf]
        %v3321 = vld [vmem:[#allocation2 + $0x30] sm:$0xf]
        %v3322 = vld [vmem:[#allocation2 + $0x34] sm:$0xf]
        %v3323 = vld [vmem:[#allocation2 + $0x38] sm:$0xf]
        %v3324 = vld [vmem:[#allocation2 + $0x3c] sm:$0xf]
        %v3341 = vunpack.c.l.b16 %v3293
        %v3342 = vunpack.c.l.b16 %v3294
        %v3343 = vunpack.c.l.b16 %v3295
        %v3344 = vunpack.c.l.b16 %v3296
        %v3345 = vunpack.c.l.b16 %v3297
        %v3346 = vunpack.c.l.b16 %v3298
        %v3347 = vunpack.c.l.b16 %v3299
        %v3348 = vunpack.c.l.b16 %v3300
        %v3349 = vunpack.c.l.b16 %v3301
        %v3350 = vunpack.c.l.b16 %v3302
        %v3351 = vunpack.c.l.b16 %v3303
        %v3352 = vunpack.c.l.b16 %v3304
        %v3353 = vunpack.c.l.b16 %v3305
        %v3354 = vunpack.c.l.b16 %v3306
        %v3355 = vunpack.c.l.b16 %v3307
        %v3356 = vunpack.c.l.b16 %v3308
        %v3357 = vpack.c.b16 %v3342, %v3341
        %v3358 = vpack.c.b16 %v3344, %v3343
        %v3359 = vpack.c.b16 %v3346, %v3345
        %v3360 = vpack.c.b16 %v3348, %v3347
        %v3361 = vpack.c.b16 %v3350, %v3349
        %v3362 = vpack.c.b16 %v3352, %v3351
        %v3363 = vpack.c.b16 %v3354, %v3353
        %v3364 = vpack.c.b16 %v3356, %v3355
        %v3389 = vunpack.c.l.b16 %v3309
        %v3390 = vunpack.c.l.b16 %v3310
        %v3391 = vunpack.c.l.b16 %v3311
        %v3392 = vunpack.c.l.b16 %v3312
        %v3393 = vunpack.c.l.b16 %v3313
        %v3394 = vunpack.c.l.b16 %v3314
        %v3395 = vunpack.c.l.b16 %v3315
        %v3396 = vunpack.c.l.b16 %v3316
        %v3397 = vunpack.c.l.b16 %v3317
        %v3398 = vunpack.c.l.b16 %v3318
        %v3399 = vunpack.c.l.b16 %v3319
        %v3400 = vunpack.c.l.b16 %v3320
        %v3401 = vunpack.c.l.b16 %v3321
        %v3402 = vunpack.c.l.b16 %v3322
        %v3403 = vunpack.c.l.b16 %v3323
        %v3404 = vunpack.c.l.b16 %v3324
        %v3405 = vpack.c.b16 %v3390, %v3389
        %v3406 = vpack.c.b16 %v3392, %v3391
        %v3407 = vpack.c.b16 %v3394, %v3393
        %v3408 = vpack.c.b16 %v3396, %v3395
        %v3409 = vpack.c.b16 %v3398, %v3397
        %v3410 = vpack.c.b16 %v3400, %v3399
        %v3411 = vpack.c.b16 %v3402, %v3401
        %v3412 = vpack.c.b16 %v3404, %v3403
        %3421 = vmatprep.subr.bf16.mxu0 0
        %3422 = vmatpush1.bf16.xpose.msra.mxu0 %v3412
        %3423 = vmatprep.subr.bf16.mxu0 0
        %3424 = vmatpush1.bf16.xpose.msra.mxu0 %v3411
        %3425 = vmatprep.subr.bf16.mxu0 0
        %3426 = vmatpush1.bf16.xpose.msra.mxu0 %v3410
        %3427 = vmatprep.subr.bf16.mxu0 0
        %3428 = vmatpush1.bf16.xpose.msra.mxu0 %v3409
        %3429 = vmatprep.subr.bf16.mxu0 0
        %3430 = vmatpush1.bf16.xpose.msra.mxu0 %v3408
        %3431 = vmatprep.subr.bf16.mxu0 0
        %3432 = vmatpush1.bf16.xpose.msra.mxu0 %v3407
        %3433 = vmatprep.subr.bf16.mxu0 0
        %3434 = vmatpush1.bf16.xpose.msra.mxu0 %v3406
        %3435 = vmatprep.subr.bf16.mxu0 0
        %3436 = vmatpush1.bf16.xpose.msra.mxu0 %v3405
        %3437 = vmatprep.subr.bf16.mxu0 0
        %3438 = vmatpush2.bf16.xpose.msra.mxu0 0
        %3439 = vmatprep.subr.bf16.mxu0 0
        %3440 = vmatpush2.bf16.xpose.msra.mxu0 0
        %3441 = vmatprep.subr.bf16.mxu0 0
        %3442 = vmatpush2.bf16.xpose.msra.mxu0 0
        %3443 = vmatprep.subr.bf16.mxu0 0
        %3444 = vmatpush2.bf16.xpose.msra.mxu0 0
        %3445 = vmatprep.subr.bf16.mxu0 0
        %3446 = vmatpush2.bf16.xpose.msra.mxu0 0
        %3447 = vmatprep.subr.bf16.mxu0 0
        %3448 = vmatpush2.bf16.xpose.msra.mxu0 0
        %3449 = vmatprep.subr.bf16.mxu0 0
        %3450 = vmatpush2.bf16.xpose.msra.mxu0 0
        %3451 = vmatprep.subr.bf16.mxu0 0
        %3452 = vmatpush2.bf16.xpose.msra.mxu0 0
        %3453 = vmatprep.mubr.bf16.mxu0 0
        %3454 = vmatmul.mubr.bf16.gmra.mxu0 %v3357
        %v3455 = vpop.f32.mrf.mxu0
        %v3456 = vadd.f32 0.0, %v3455
        %v3457 = vpop.f32.mrf.mxu0
        %v3458 = vpop.f32.mrf.mxu0
        %v3459 = vadd.f32 0.0, %v3458
        %v3460 = vpop.f32.mrf.mxu0
        %3461 = vmatprep.mubr.bf16.mxu0 0
        %3462 = vmatmul.mubr.bf16.gmra.mxu0 %v3358
        %v3463 = vpop.f32.mrf.mxu0
        %v3464 = vadd.f32 0.0, %v3463
        %v3465 = vpop.f32.mrf.mxu0
        %v3466 = vpop.f32.mrf.mxu0
        %v3467 = vadd.f32 0.0, %v3466
        %v3468 = vpop.f32.mrf.mxu0
        %3469 = vmatprep.mubr.bf16.mxu0 0
        %3470 = vmatmul.mubr.bf16.gmra.mxu0 %v3359
        %v3471 = vpop.f32.mrf.mxu0
        %v3472 = vadd.f32 0.0, %v3471
        %v3473 = vpop.f32.mrf.mxu0
        %v3474 = vpop.f32.mrf.mxu0
        %v3475 = vadd.f32 0.0, %v3474
        %v3476 = vpop.f32.mrf.mxu0
        %3477 = vmatprep.mubr.bf16.mxu0 0
        %3478 = vmatmul.mubr.bf16.gmra.mxu0 %v3360
        %v3479 = vpop.f32.mrf.mxu0
        %v3480 = vadd.f32 0.0, %v3479
        %v3481 = vpop.f32.mrf.mxu0
        %v3482 = vpop.f32.mrf.mxu0
        %v3483 = vadd.f32 0.0, %v3482
        %v3484 = vpop.f32.mrf.mxu0
        %3485 = vmatprep.mubr.bf16.mxu0 0
        %3486 = vmatmul.mubr.bf16.gmra.mxu0 %v3361
        %v3487 = vpop.f32.mrf.mxu0
        %v3488 = vadd.f32 0.0, %v3487
        %v3489 = vpop.f32.mrf.mxu0
        %v3490 = vpop.f32.mrf.mxu0
        %v3491 = vadd.f32 0.0, %v3490
        %v3492 = vpop.f32.mrf.mxu0
        %3493 = vmatprep.mubr.bf16.mxu0 0
        %3494 = vmatmul.mubr.bf16.gmra.mxu0 %v3362
        %v3495 = vpop.f32.mrf.mxu0
        %v3496 = vadd.f32 0.0, %v3495
        %v3497 = vpop.f32.mrf.mxu0
        %v3498 = vpop.f32.mrf.mxu0
        %v3499 = vadd.f32 0.0, %v3498
        %v3500 = vpop.f32.mrf.mxu0
        %3501 = vmatprep.mubr.bf16.mxu0 0
        %3502 = vmatmul.mubr.bf16.gmra.mxu0 %v3363
        %v3503 = vpop.f32.mrf.mxu0
        %v3504 = vadd.f32 0.0, %v3503
        %v3505 = vpop.f32.mrf.mxu0
        %v3506 = vpop.f32.mrf.mxu0
        %v3507 = vadd.f32 0.0, %v3506
        %v3508 = vpop.f32.mrf.mxu0
        %3509 = vmatprep.mubr.bf16.mxu0 0
        %3510 = vmatmul.mubr.bf16.gmra.mxu0 %v3364
        %v3511 = vpop.f32.mrf.mxu0
        %v3512 = vadd.f32 0.0, %v3511
        %v3513 = vpop.f32.mrf.mxu0
        %v3514 = vpop.f32.mrf.mxu0
        %v3515 = vadd.f32 0.0, %v3514
        %v3516 = vpop.f32.mrf.mxu0
        %3517 = vdwg.mxu0
        %3518 = vst [vmem:[%s595] sm:$0xff] %v3456
        %3519 = vst [vmem:[%s595 + $0x8] sm:$0xff] %v3459
        %3520 = vst [vmem:[%s595 + $0x10] sm:$0xff] %v3464
        %3521 = vst [vmem:[%s595 + $0x18] sm:$0xff] %v3467
        %3522 = vst [vmem:[%s595 + $0x20] sm:$0xff] %v3472
        %3523 = vst [vmem:[%s595 + $0x28] sm:$0xff] %v3475
        %3524 = vst [vmem:[%s595 + $0x30] sm:$0xff] %v3480
        %3525 = vst [vmem:[%s595 + $0x38] sm:$0xff] %v3483
        %3526 = vst [vmem:[%s595 + $0x40] sm:$0xff] %v3488
        %3527 = vst [vmem:[%s595 + $0x48] sm:$0xff] %v3491
        %3528 = vst [vmem:[%s595 + $0x50] sm:$0xff] %v3496
        %3529 = vst [vmem:[%s595 + $0x58] sm:$0xff] %v3499
        %3530 = vst [vmem:[%s595 + $0x60] sm:$0xff] %v3504
        %3531 = vst [vmem:[%s595 + $0x68] sm:$0xff] %v3507
        %3532 = vst [vmem:[%s595 + $0x70] sm:$0xff] %v3512
        %3533 = vst [vmem:[%s595 + $0x78] sm:$0xff] %v3515
        %s3534 = sand.u32 %s324, 1
        %s3535 = scalar_lea.sflag [#allocation5], %s3534
        %s3536 = sand.u32 %s324, 1
        %s3537 = smul.addr %s3536, 128
        %s3538 = scalar_lea.vmem [#allocation17], %s3537
        // Predicated region
        $region105: #{tpu_custom_call.1} parent=67 // pred_check
          %p3539 = pneg %p334
        $region106: #{tpu_custom_call.1} parent=67 // pred_check_branch
          %3541 = sbr.rel (%p3539) target = $region108
        $region107: #{tpu_custom_call.1} parent=67 // pred_region
          %s3542 = smul.u32 16, %s40
          %s3544 = ssub.s32 2048, 2048
          %3545 = vsyncadd %s3535, %s3544
          %s3546 = smul.addr %s39, 16
          %s3547 = sadd.s32 %s3542, %s3546
          %s3548 = smul.addr %s3547, 128
          %s3549 = scalar_lea.hbm %s12, %s3548
          %s3550 = sshll.u32 %s3538, 4
          %s3551 = int_to_ptr.vmem [resolvable:$true] %s3550
          %3556 = dma.vmem_to_hbm [thread:$0]  %s3551, 2048, %s3549, %s3535, 128, 128, 8
        $region108: #{tpu_custom_call.1} parent=67 // pred_fallthru
          _
      $region68: #{tpu_custom_call.1} parent=5 // pred_fallthru
        _
      %p3557 = scmp.le.s32.totalorder 2, %s30
      // Predicated region
      $region109: #{tpu_custom_call.1} parent=5 // pred_check
        %p3558 = pneg %p3557
      $region110: #{tpu_custom_call.1} parent=5 // pred_check_branch
        %3560 = sbr.rel (%p3558) target = $region112
      $region111: #{tpu_custom_call.1} parent=5 // pred_region
        %s3561 = ssub.s32 %s30, 2
        // Predicated region
        $region113: #{tpu_custom_call.1} parent=111 // pred_check
          %p3562 = pneg %p340
        $region114: #{tpu_custom_call.1} parent=111 // pred_check_branch
          %3564 = sbr.rel (%p3562) target = $region116
        $region115: #{tpu_custom_call.1} parent=111 // pred_region
          %s3565 = sand.u32 %s325, 1
          %s3566 = scalar_lea.sflag [#allocation5], %s3565
          %s3567 = sand.u32 %s325, 1
          %s3568 = smul.addr %s3567, 128
          %s3569 = scalar_lea.vmem [#allocation17], %s3568
          %3570 = dma.done %s3566, 2048
        $region116: #{tpu_custom_call.1} parent=111 // pred_fallthru
          _
      $region112: #{tpu_custom_call.1} parent=5 // pred_fallthru
        _
    $region6: #{tpu_custom_call.1} parent=1 // loop_footer
      %s34 = sadd.s32 1, %s30
    $region7: #{tpu_custom_call.1} parent=1 // loop_footer_branch
      %29 = sbr.rel target = $region3
    $region8: #{tpu_custom_call.1} parent=1 // loop_exit
      _
    %3571 = vsyncpa [#allocation4], 1
    %s3572 = scalar_lea.sflag [#allocation4], 1
    %3573 = vsyncpa %s3572, 1
    %3574 = vsyncpa [#allocation7], 1
    %s3575 = scalar_lea.sflag [#allocation7], 1
    %3576 = vsyncpa %s3575, 1
    %3577 = vsyncpa [#allocation10], 1
    %3578 = vsyncpa [#allocation13], 1
    %3579 = vsyncpa [#allocation16], 1
    %3580 = vsyncpa [#allocation5], 1
    %s3581 = scalar_lea.sflag [#allocation5], 1
    %3582 = vsyncpa %s3581, 1

</llo_original>
